<compile_context>
chip_gen: v6e
topology: v6e:2x2x1
jax: 0.10.0
libtpu: 0.0.40
codegen_flags: <defaults>
</compile_context>

<pallas_src>
import jax
import jax.numpy as jnp
import numpy as np
from jax import lax
from jax.experimental import pallas as pl
from jax.experimental.pallas import tpu as pltpu

# bf16 MXU operands (f32 accumulation).  Set to jnp.float32 to recover <=1e-4
# agreement with the f32 reference.
_MATMUL_DTYPE = jnp.bfloat16


def basic_block_kernel(x_ref, w1_ref, s1_ref, b1_ref, w2_ref, s2_ref, b2_ref,
                       out_ref, xpad_ref, mid_ref):
    # x_ref  : (1, H, W, Cp)   f32  unpadded input (channels zero-padded to Cp)
    # w1_ref : (9*Cp, Cp)      bf16 conv1 weights, rows ordered (tap, cin)
    # s1,b1  : (1, Cp)         f32  folded BN1 scale / bias (zero on pad lanes)
    # w2_ref : (9*Cp, Cp)      bf16 conv2 weights
    # s2,b2  : (1, Cp)         f32  folded BN2 scale / bias
    # out_ref: (1, H, W, Cp)   f32
    # xpad_ref, mid_ref : (H+2, W+2, Cp) f32 VMEM scratch (spatial halo of 1)
    _, H, W, Cp = x_ref.shape

    # Zero the scratch (and hence the 1-pixel borders) only once: scratch
    # persists across grid steps and the interior is fully overwritten below,
    # so the borders stay zero for every batch element.
    @pl.when(pl.program_id(0) == 0)
    def _():
        xpad_ref[...] = jnp.zeros_like(xpad_ref)
        mid_ref[...] = jnp.zeros_like(mid_ref)

    x = x_ref[0]                                       # (H, W, Cp) f32
    xpad_ref[1:H + 1, 1:W + 1, :] = x                  # interior only

    def conv3x3_im2col(src_ref, w_ref):
        # Build the (H*W, 9*Cp) im2col slab (tap-major channel blocks) and do a
        # single MXU matmul with K = 9*Cp against the (9*Cp, Cp) weight slab.
        # TODO(synk): for realistic ResNet sizes (H*W >= 3136) tile the M dim
        # with an unrolled fori_loop over row strips to bound accumulator
        # live range.
        slab = jnp.concatenate(
            [src_ref[dy:dy + H, dx:dx + W, :].reshape(H * W, Cp)
             for dy in range(3) for dx in range(3)],
            axis=-1).astype(_MATMUL_DTYPE)             # (H*W, 9*Cp)
        return jnp.dot(slab, w_ref[...],
                       preferred_element_type=jnp.float32)   # (H*W, Cp) f32

    # ---- conv1 -> bn1 (folded affine) -> relu ----
    out1 = conv3x3_im2col(xpad_ref, w1_ref)
    out1 = jnp.maximum(out1 * s1_ref[...] + b1_ref[...], 0.0)

    # Re-pad the intermediate (interior write only; border stays zero).
    mid_ref[1:H + 1, 1:W + 1, :] = out1.reshape(H, W, Cp)

    # ---- conv2 -> bn2 -> residual add (from the resident input) -> relu ----
    out2 = conv3x3_im2col(mid_ref, w2_ref)
    out2 = out2 * s2_ref[...] + b2_ref[...]
    out2 = out2 + x.reshape(H * W, Cp)
    out_ref[0] = jnp.maximum(out2, 0.0).reshape(H, W, Cp)


def _round_up(n, m):
    return (n + m - 1) // m * m


def _fold_bn(gamma, beta, mean, var, cp, eps=1e-5):
    scale = gamma / jnp.sqrt(var + eps)
    bias = beta - mean * scale
    scale = jnp.pad(scale.astype(jnp.float32), (0, cp - scale.shape[0]))
    bias = jnp.pad(bias.astype(jnp.float32), (0, cp - bias.shape[0]))
    return scale.reshape(1, cp), bias.reshape(1, cp)


def _prep_conv_weight(w, cp):
    # (Cout, Cin, 3, 3) -> (ky, kx, Cin, Cout) -> (9, Cin, Cout), zero-pad both
    # channel dims to Cp, flatten to (9*Cp, Cp) matching the im2col slab layout.
    cout, cin, _, _ = w.shape
    wk = jnp.transpose(w, (2, 3, 1, 0)).reshape(9, cin, cout)
    wk = jnp.pad(wk, ((0, 0), (0, cp - cin), (0, cp - cout)))
    return wk.reshape(9 * cp, cp).astype(_MATMUL_DTYPE)


def basic_block_forward_nhwc(x_nhwc, params):
    """x_nhwc: (B, H, W, C) float32. Returns (B, H, W, C)."""
    (w1, g1, be1, m1, v1, w2, g2, be2, m2, v2) = params
    B, H, W, C = x_nhwc.shape
    Cp = max(128, _round_up(C, 128))          # lane-dense channel axis

    x_p = jnp.pad(x_nhwc.astype(jnp.float32),
                  ((0, 0), (0, 0), (0, 0), (0, Cp - C)))
    w1k = _prep_conv_weight(w1, Cp)
    w2k = _prep_conv_weight(w2, Cp)
    s1, b1 = _fold_bn(g1, be1, m1, v1, Cp)
    s2, b2 = _fold_bn(g2, be2, m2, v2, Cp)

    # TODO(synk): on v7x (2 TCs) with B == 1 or large images, add a spatial
    # "parallel" grid axis (halo-aware) so both TensorCores stay busy.
    out = pl.pallas_call(
        basic_block_kernel,
        out_shape=jax.ShapeDtypeStruct((B, H, W, Cp), jnp.float32),
        grid_spec=pltpu.PrefetchScalarGridSpec(
            num_scalar_prefetch=0,
            grid=(B,),
            in_specs=[
                pl.BlockSpec((1, H, W, Cp), lambda b: (b, 0, 0, 0)),
                pl.BlockSpec((9 * Cp, Cp), lambda b: (0, 0)),
                pl.BlockSpec((1, Cp), lambda b: (0, 0)),
                pl.BlockSpec((1, Cp), lambda b: (0, 0)),
                pl.BlockSpec((9 * Cp, Cp), lambda b: (0, 0)),
                pl.BlockSpec((1, Cp), lambda b: (0, 0)),
                pl.BlockSpec((1, Cp), lambda b: (0, 0)),
            ],
            out_specs=pl.BlockSpec((1, H, W, Cp), lambda b: (b, 0, 0, 0)),
            scratch_shapes=[
                pltpu.VMEM((H + 2, W + 2, Cp), jnp.float32),   # padded input
                pltpu.VMEM((H + 2, W + 2, Cp), jnp.float32),   # padded mid
            ],
        ),
        compiler_params=pltpu.CompilerParams(
            dimension_semantics=("parallel",),
            vmem_limit_bytes=32 * 1024 * 1024),
    )(x_p, w1k, s1, b1, w2k, s2, b2)

    return out[..., :C]


def basic_block_forward(x_nchw, params):
    """x_nchw: (B, C, H, W) float32. Returns (B, C, H, W)."""
    # TODO(synk): for a full network keep activations NHWC end-to-end and hoist
    # these per-block NCHW<->NHWC transposes to the network boundary.
    x_nhwc = jnp.transpose(x_nchw, (0, 2, 3, 1))
    out_nhwc = basic_block_forward_nhwc(x_nhwc, params)
    return jnp.transpose(out_nhwc, (0, 3, 1, 2))


def basic_block_reference(x_nchw, params, eps=1e-5):
    """Pure-JAX f32 reference (eval-mode BN), NCHW throughout."""
    (w1, g1, be1, m1, v1, w2, g2, be2, m2, v2) = params

    def conv3x3(x, w):
        return lax.conv_general_dilated(
            x, w, window_strides=(1, 1), padding=((1, 1), (1, 1)),
            dimension_numbers=("NCHW", "OIHW", "NCHW"))

    def bn(x, g, b, m, v):
        c = lambda a: a[None, :, None, None]
        return (x - c(m)) / jnp.sqrt(c(v) + eps) * c(g) + c(b)

    out = jax.nn.relu(bn(conv3x3(x_nchw, w1), g1, be1, m1, v1))
    out = bn(conv3x3(out, w2), g2, be2, m2, v2)
    return jax.nn.relu(out + x_nchw)


if __name__ == "__main__":
    # Small, PyTorch-consistent shapes: BasicBlock(inplanes=4, planes=4, stride=1).
    B, C, H, W = 2, 4, 16, 16
    key = jax.random.PRNGKey(0)
    keys = jax.random.split(key, 9)

    x = jax.random.normal(keys[0], (B, C, H, W), jnp.float32)

    # Deterministic synthetic parameters (shapes from the module __init__).
    w1 = 0.2 * jax.random.normal(keys[1], (C, C, 3, 3), jnp.float32)   # conv1.weight
    w2 = 0.2 * jax.random.normal(keys[2], (C, C, 3, 3), jnp.float32)   # conv2.weight
    g1 = 1.0 + 0.1 * jax.random.normal(keys[3], (C,), jnp.float32)     # bn1.weight
    be1 = 0.1 * jax.random.normal(keys[4], (C,), jnp.float32)          # bn1.bias
    m1 = 0.05 * jax.random.normal(keys[5], (C,), jnp.float32)          # bn1.running_mean
    v1 = 1.0 + 0.1 * jax.random.uniform(keys[5], (C,))                 # bn1.running_var
    g2 = 1.0 + 0.1 * jax.random.normal(keys[6], (C,), jnp.float32)     # bn2.weight
    be2 = 0.1 * jax.random.normal(keys[7], (C,), jnp.float32)          # bn2.bias
    m2 = 0.05 * jax.random.normal(keys[8], (C,), jnp.float32)          # bn2.running_mean
    v2 = 1.0 + 0.1 * jax.random.uniform(keys[8], (C,))                 # bn2.running_var

    params = (w1, g1, be1, m1, v1, w2, g2, be2, m2, v2)

    out = basic_block_forward(x, params)
    out = jax.block_until_ready(out)

    ref = jax.block_until_ready(basic_block_reference(x, params))

    # bf16 matmul operands (f32 accumulation) need a looser tolerance than the
    # pure-f32 path; set _MATMUL_DTYPE = jnp.float32 for <=1e-4 agreement.
    tol = 5e-2 if _MATMUL_DTYPE == jnp.bfloat16 else 1e-4
    np.testing.assert_allclose(np.asarray(out), np.asarray(ref), rtol=tol, atol=tol)

    print("KERNEL_OK")
</pallas_src>

<mosaic_0001>
module attributes {stable_mosaic.version = 11 : i64} {
  func.func @basic_block_kernel(%arg0: i32, %arg1: memref<1x16x16x128xf32, #tpu.memory_space<vmem>>, %arg2: memref<1152x128xbf16, #tpu.memory_space<vmem>>, %arg3: memref<1x128xf32, #tpu.memory_space<vmem>>, %arg4: memref<1x128xf32, #tpu.memory_space<vmem>>, %arg5: memref<1152x128xbf16, #tpu.memory_space<vmem>>, %arg6: memref<1x128xf32, #tpu.memory_space<vmem>>, %arg7: memref<1x128xf32, #tpu.memory_space<vmem>>, %arg8: memref<1x16x16x128xf32, #tpu.memory_space<vmem>>, %arg9: memref<18x18x128xf32, #tpu.memory_space<vmem>>, %arg10: memref<18x18x128xf32, #tpu.memory_space<vmem>>) attributes {dimension_semantics = [#tpu.dimension_semantics<parallel>], iteration_bounds = array<i64: 2>, scalar_prefetch = 0 : i64, scratch_operands = 2 : i64, tpu.core_type = #tpu.core_type<tc>, window_params = [{transform_indices = @transform_0, window_bounds = array<i64: 1, 16, 16, 128>}, {pipeline_mode = #tpu.pipeline_mode<synchronous>, transform_indices = @transform_1, window_bounds = array<i64: 1152, 128>}, {pipeline_mode = #tpu.pipeline_mode<synchronous>, transform_indices = @transform_2, window_bounds = array<i64: 1, 128>}, {pipeline_mode = #tpu.pipeline_mode<synchronous>, transform_indices = @transform_3, window_bounds = array<i64: 1, 128>}, {pipeline_mode = #tpu.pipeline_mode<synchronous>, transform_indices = @transform_4, window_bounds = array<i64: 1152, 128>}, {pipeline_mode = #tpu.pipeline_mode<synchronous>, transform_indices = @transform_5, window_bounds = array<i64: 1, 128>}, {pipeline_mode = #tpu.pipeline_mode<synchronous>, transform_indices = @transform_6, window_bounds = array<i64: 1, 128>}, {transform_indices = @transform_7, window_bounds = array<i64: 1, 16, 16, 128>}]} {
    %c0_i32 = arith.constant 0 : i32
    %0 = arith.cmpi eq, %arg0, %c0_i32 : i32
    %1 = arith.extui %0 : i1 to i32
    %c0_i32_0 = arith.constant 0 : i32
    %2 = arith.cmpi ne, %1, %c0_i32_0 : i32
    scf.if %2 {
      %cst_81 = arith.constant 0.000000e+00 : f32
      %74 = vector.broadcast %cst_81 : f32 to vector<18x18x128xf32>
      %c0_82 = arith.constant 0 : index
      %c0_83 = arith.constant 0 : index
      %c0_84 = arith.constant 0 : index
      %75 = vector.load %arg9[%c0_82, %c0_83, %c0_84] : memref<18x18x128xf32, #tpu.memory_space<vmem>>, vector<18x18x128xf32>
      tpu.vector_store %arg9[%c0_82, %c0_83, %c0_84], %74 {strides = array<i32>} : memref<18x18x128xf32, #tpu.memory_space<vmem>>, vector<18x18x128xf32>,
      %cst_85 = arith.constant 0.000000e+00 : f32
      %76 = vector.broadcast %cst_85 : f32 to vector<18x18x128xf32>
      %c0_86 = arith.constant 0 : index
      %c0_87 = arith.constant 0 : index
      %c0_88 = arith.constant 0 : index
      %77 = vector.load %arg10[%c0_86, %c0_87, %c0_88] : memref<18x18x128xf32, #tpu.memory_space<vmem>>, vector<18x18x128xf32>
      tpu.vector_store %arg10[%c0_86, %c0_87, %c0_88], %76 {strides = array<i32>} : memref<18x18x128xf32, #tpu.memory_space<vmem>>, vector<18x18x128xf32>,
    } else {
    }
    %c0 = arith.constant 0 : index
    %c0_1 = arith.constant 0 : index
    %c0_2 = arith.constant 0 : index
    %c0_3 = arith.constant 0 : index
    %3 = vector.load %arg1[%c0, %c0_1, %c0_2, %c0_3] : memref<1x16x16x128xf32, #tpu.memory_space<vmem>>, vector<1x16x16x128xf32>
    %4 = vector.shape_cast %3 : vector<1x16x16x128xf32> to vector<16x16x128xf32>
    %c1 = arith.constant 1 : index
    %c1_4 = arith.constant 1 : index
    %c0_5 = arith.constant 0 : index
    %5 = vector.load %arg9[%c1, %c1_4, %c0_5] : memref<18x18x128xf32, #tpu.memory_space<vmem>>, vector<16x16x128xf32>
    tpu.vector_store %arg9[%c1, %c1_4, %c0_5], %4 {strides = array<i32>} : memref<18x18x128xf32, #tpu.memory_space<vmem>>, vector<16x16x128xf32>,
    %c0_6 = arith.constant 0 : index
    %c0_7 = arith.constant 0 : index
    %c0_8 = arith.constant 0 : index
    %6 = vector.load %arg9[%c0_6, %c0_7, %c0_8] : memref<18x18x128xf32, #tpu.memory_space<vmem>>, vector<16x16x128xf32>
    %7 = vector.shape_cast %6 : vector<16x16x128xf32> to vector<256x128xf32>
    %c0_9 = arith.constant 0 : index
    %c1_10 = arith.constant 1 : index
    %c0_11 = arith.constant 0 : index
    %8 = vector.load %arg9[%c0_9, %c1_10, %c0_11] : memref<18x18x128xf32, #tpu.memory_space<vmem>>, vector<16x16x128xf32>
    %9 = vector.shape_cast %8 : vector<16x16x128xf32> to vector<256x128xf32>
    %c0_12 = arith.constant 0 : index
    %c2 = arith.constant 2 : index
    %c0_13 = arith.constant 0 : index
    %10 = vector.load %arg9[%c0_12, %c2, %c0_13] : memref<18x18x128xf32, #tpu.memory_space<vmem>>, vector<16x16x128xf32>
    %11 = vector.shape_cast %10 : vector<16x16x128xf32> to vector<256x128xf32>
    %c1_14 = arith.constant 1 : index
    %c0_15 = arith.constant 0 : index
    %c0_16 = arith.constant 0 : index
    %12 = vector.load %arg9[%c1_14, %c0_15, %c0_16] : memref<18x18x128xf32, #tpu.memory_space<vmem>>, vector<16x16x128xf32>
    %13 = vector.shape_cast %12 : vector<16x16x128xf32> to vector<256x128xf32>
    %c1_17 = arith.constant 1 : index
    %c1_18 = arith.constant 1 : index
    %c0_19 = arith.constant 0 : index
    %14 = vector.load %arg9[%c1_17, %c1_18, %c0_19] : memref<18x18x128xf32, #tpu.memory_space<vmem>>, vector<16x16x128xf32>
    %15 = vector.shape_cast %14 : vector<16x16x128xf32> to vector<256x128xf32>
    %c1_20 = arith.constant 1 : index
    %c2_21 = arith.constant 2 : index
    %c0_22 = arith.constant 0 : index
    %16 = vector.load %arg9[%c1_20, %c2_21, %c0_22] : memref<18x18x128xf32, #tpu.memory_space<vmem>>, vector<16x16x128xf32>
    %17 = vector.shape_cast %16 : vector<16x16x128xf32> to vector<256x128xf32>
    %c2_23 = arith.constant 2 : index
    %c0_24 = arith.constant 0 : index
    %c0_25 = arith.constant 0 : index
    %18 = vector.load %arg9[%c2_23, %c0_24, %c0_25] : memref<18x18x128xf32, #tpu.memory_space<vmem>>, vector<16x16x128xf32>
    %19 = vector.shape_cast %18 : vector<16x16x128xf32> to vector<256x128xf32>
    %c2_26 = arith.constant 2 : index
    %c1_27 = arith.constant 1 : index
    %c0_28 = arith.constant 0 : index
    %20 = vector.load %arg9[%c2_26, %c1_27, %c0_28] : memref<18x18x128xf32, #tpu.memory_space<vmem>>, vector<16x16x128xf32>
    %21 = vector.shape_cast %20 : vector<16x16x128xf32> to vector<256x128xf32>
    %c2_29 = arith.constant 2 : index
    %c2_30 = arith.constant 2 : index
    %c0_31 = arith.constant 0 : index
    %22 = vector.load %arg9[%c2_29, %c2_30, %c0_31] : memref<18x18x128xf32, #tpu.memory_space<vmem>>, vector<16x16x128xf32>
    %23 = vector.shape_cast %22 : vector<16x16x128xf32> to vector<256x128xf32>
    %24 = tpu.concatenate %7, %9, %11, %13, %15, %17, %19, %21, %23 in 1 : vector<256x128xf32>, vector<256x128xf32>, vector<256x128xf32>, vector<256x128xf32>, vector<256x128xf32>, vector<256x128xf32>, vector<256x128xf32>, vector<256x128xf32>, vector<256x128xf32> -> vector<256x1152xf32>
    %25 = arith.truncf %24 : vector<256x1152xf32> to vector<256x1152xbf16>
    %c0_32 = arith.constant 0 : index
    %c0_33 = arith.constant 0 : index
    %26 = vector.load %arg2[%c0_32, %c0_33] : memref<1152x128xbf16, #tpu.memory_space<vmem>>, vector<1152x128xbf16>
    %cst = arith.constant dense<0.000000e+00> : vector<256x128xf32>
    %27 = tpu.matmul %25, %26, %cst {dimension_numbers = #tpu.dot_dimension_numbers<[1], [0], [0], [1], [0, 0, 1, 1], [], []>} : vector<256x1152xbf16>, vector<1152x128xbf16>, vector<256x128xf32> -> vector<256x128xf32>
    %c0_34 = arith.constant 0 : index
    %c0_35 = arith.constant 0 : index
    %28 = vector.load %arg3[%c0_34, %c0_35] : memref<1x128xf32, #tpu.memory_space<vmem>>, vector<1x128xf32>
    %29 = vector.broadcast %28 : vector<1x128xf32> to vector<256x128xf32>
    %30 = arith.mulf %27, %29 : vector<256x128xf32>
    %c0_36 = arith.constant 0 : index
    %c0_37 = arith.constant 0 : index
    %31 = vector.load %arg4[%c0_36, %c0_37] : memref<1x128xf32, #tpu.memory_space<vmem>>, vector<1x128xf32>
    %32 = vector.broadcast %31 : vector<1x128xf32> to vector<256x128xf32>
    %33 = arith.addf %30, %32 : vector<256x128xf32>
    %cst_38 = arith.constant 0.000000e+00 : f32
    %34 = vector.broadcast %cst_38 : f32 to vector<256x128xf32>
    %35 = arith.maximumf %33, %34 : vector<256x128xf32>
    %36 = vector.shape_cast %35 : vector<256x128xf32> to vector<16x16x128xf32>
    %c1_39 = arith.constant 1 : index
    %c1_40 = arith.constant 1 : index
    %c0_41 = arith.constant 0 : index
    %37 = vector.load %arg10[%c1_39, %c1_40, %c0_41] : memref<18x18x128xf32, #tpu.memory_space<vmem>>, vector<16x16x128xf32>
    tpu.vector_store %arg10[%c1_39, %c1_40, %c0_41], %36 {strides = array<i32>} : memref<18x18x128xf32, #tpu.memory_space<vmem>>, vector<16x16x128xf32>,
    %c0_42 = arith.constant 0 : index
    %c0_43 = arith.constant 0 : index
    %c0_44 = arith.constant 0 : index
    %38 = vector.load %arg10[%c0_42, %c0_43, %c0_44] : memref<18x18x128xf32, #tpu.memory_space<vmem>>, vector<16x16x128xf32>
    %39 = vector.shape_cast %38 : vector<16x16x128xf32> to vector<256x128xf32>
    %c0_45 = arith.constant 0 : index
    %c1_46 = arith.constant 1 : index
    %c0_47 = arith.constant 0 : index
    %40 = vector.load %arg10[%c0_45, %c1_46, %c0_47] : memref<18x18x128xf32, #tpu.memory_space<vmem>>, vector<16x16x128xf32>
    %41 = vector.shape_cast %40 : vector<16x16x128xf32> to vector<256x128xf32>
    %c0_48 = arith.constant 0 : index
    %c2_49 = arith.constant 2 : index
    %c0_50 = arith.constant 0 : index
    %42 = vector.load %arg10[%c0_48, %c2_49, %c0_50] : memref<18x18x128xf32, #tpu.memory_space<vmem>>, vector<16x16x128xf32>
    %43 = vector.shape_cast %42 : vector<16x16x128xf32> to vector<256x128xf32>
    %c1_51 = arith.constant 1 : index
    %c0_52 = arith.constant 0 : index
    %c0_53 = arith.constant 0 : index
    %44 = vector.load %arg10[%c1_51, %c0_52, %c0_53] : memref<18x18x128xf32, #tpu.memory_space<vmem>>, vector<16x16x128xf32>
    %45 = vector.shape_cast %44 : vector<16x16x128xf32> to vector<256x128xf32>
    %c1_54 = arith.constant 1 : index
    %c1_55 = arith.constant 1 : index
    %c0_56 = arith.constant 0 : index
    %46 = vector.load %arg10[%c1_54, %c1_55, %c0_56] : memref<18x18x128xf32, #tpu.memory_space<vmem>>, vector<16x16x128xf32>
    %47 = vector.shape_cast %46 : vector<16x16x128xf32> to vector<256x128xf32>
    %c1_57 = arith.constant 1 : index
    %c2_58 = arith.constant 2 : index
    %c0_59 = arith.constant 0 : index
    %48 = vector.load %arg10[%c1_57, %c2_58, %c0_59] : memref<18x18x128xf32, #tpu.memory_space<vmem>>, vector<16x16x128xf32>
    %49 = vector.shape_cast %48 : vector<16x16x128xf32> to vector<256x128xf32>
    %c2_60 = arith.constant 2 : index
    %c0_61 = arith.constant 0 : index
    %c0_62 = arith.constant 0 : index
    %50 = vector.load %arg10[%c2_60, %c0_61, %c0_62] : memref<18x18x128xf32, #tpu.memory_space<vmem>>, vector<16x16x128xf32>
    %51 = vector.shape_cast %50 : vector<16x16x128xf32> to vector<256x128xf32>
    %c2_63 = arith.constant 2 : index
    %c1_64 = arith.constant 1 : index
    %c0_65 = arith.constant 0 : index
    %52 = vector.load %arg10[%c2_63, %c1_64, %c0_65] : memref<18x18x128xf32, #tpu.memory_space<vmem>>, vector<16x16x128xf32>
    %53 = vector.shape_cast %52 : vector<16x16x128xf32> to vector<256x128xf32>
    %c2_66 = arith.constant 2 : index
    %c2_67 = arith.constant 2 : index
    %c0_68 = arith.constant 0 : index
    %54 = vector.load %arg10[%c2_66, %c2_67, %c0_68] : memref<18x18x128xf32, #tpu.memory_space<vmem>>, vector<16x16x128xf32>
    %55 = vector.shape_cast %54 : vector<16x16x128xf32> to vector<256x128xf32>
    %56 = tpu.concatenate %39, %41, %43, %45, %47, %49, %51, %53, %55 in 1 : vector<256x128xf32>, vector<256x128xf32>, vector<256x128xf32>, vector<256x128xf32>, vector<256x128xf32>, vector<256x128xf32>, vector<256x128xf32>, vector<256x128xf32>, vector<256x128xf32> -> vector<256x1152xf32>
    %57 = arith.truncf %56 : vector<256x1152xf32> to vector<256x1152xbf16>
    %c0_69 = arith.constant 0 : index
    %c0_70 = arith.constant 0 : index
    %58 = vector.load %arg5[%c0_69, %c0_70] : memref<1152x128xbf16, #tpu.memory_space<vmem>>, vector<1152x128xbf16>
    %cst_71 = arith.constant dense<0.000000e+00> : vector<256x128xf32>
    %59 = tpu.matmul %57, %58, %cst_71 {dimension_numbers = #tpu.dot_dimension_numbers<[1], [0], [0], [1], [0, 0, 1, 1], [], []>} : vector<256x1152xbf16>, vector<1152x128xbf16>, vector<256x128xf32> -> vector<256x128xf32>
    %c0_72 = arith.constant 0 : index
    %c0_73 = arith.constant 0 : index
    %60 = vector.load %arg6[%c0_72, %c0_73] : memref<1x128xf32, #tpu.memory_space<vmem>>, vector<1x128xf32>
    %61 = vector.broadcast %60 : vector<1x128xf32> to vector<256x128xf32>
    %62 = arith.mulf %59, %61 : vector<256x128xf32>
    %c0_74 = arith.constant 0 : index
    %c0_75 = arith.constant 0 : index
    %63 = vector.load %arg7[%c0_74, %c0_75] : memref<1x128xf32, #tpu.memory_space<vmem>>, vector<1x128xf32>
    %64 = vector.broadcast %63 : vector<1x128xf32> to vector<256x128xf32>
    %65 = arith.addf %62, %64 : vector<256x128xf32>
    %66 = vector.shape_cast %4 : vector<16x16x128xf32> to vector<256x128xf32>
    %67 = arith.addf %65, %66 : vector<256x128xf32>
    %cst_76 = arith.constant 0.000000e+00 : f32
    %68 = vector.broadcast %cst_76 : f32 to vector<256x128xf32>
    %69 = arith.maximumf %67, %68 : vector<256x128xf32>
    %70 = vector.shape_cast %69 : vector<256x128xf32> to vector<16x16x128xf32>
    %c0_77 = arith.constant 0 : index
    %c0_78 = arith.constant 0 : index
    %c0_79 = arith.constant 0 : index
    %c0_80 = arith.constant 0 : index
    %71 = vector.load %arg8[%c0_77, %c0_78, %c0_79, %c0_80] : memref<1x16x16x128xf32, #tpu.memory_space<vmem>>, vector<1x16x16x128xf32>
    %72 = vector.shape_cast %71 : vector<1x16x16x128xf32> to vector<16x16x128xf32>
    %73 = vector.shape_cast %70 : vector<16x16x128xf32> to vector<1x16x16x128xf32>
    tpu.vector_store %arg8[%c0_77, %c0_78, %c0_79, %c0_80], %73 {strides = array<i32>} : memref<1x16x16x128xf32, #tpu.memory_space<vmem>>, vector<1x16x16x128xf32>,
    return
  }
  func.func @transform_0(%arg0: i32) -> (i32, i32, i32, i32) {
    %c0_i32 = arith.constant 0 : i32
    %c0_i32_0 = arith.constant 0 : i32
    %c0_i32_1 = arith.constant 0 : i32
    %c0_i32_2 = arith.constant 0 : i32
    return %arg0, %c0_i32, %c0_i32_0, %c0_i32_1 : i32, i32, i32, i32
  }
  func.func @transform_1(%arg0: i32) -> (i32, i32) {
    %c0_i32 = arith.constant 0 : i32
    %c0_i32_0 = arith.constant 0 : i32
    %c0_i32_1 = arith.constant 0 : i32
    return %c0_i32, %c0_i32_0 : i32, i32
  }
  func.func @transform_2(%arg0: i32) -> (i32, i32) {
    %c0_i32 = arith.constant 0 : i32
    %c0_i32_0 = arith.constant 0 : i32
    %c0_i32_1 = arith.constant 0 : i32
    return %c0_i32, %c0_i32_0 : i32, i32
  }
  func.func @transform_3(%arg0: i32) -> (i32, i32) {
    %c0_i32 = arith.constant 0 : i32
    %c0_i32_0 = arith.constant 0 : i32
    %c0_i32_1 = arith.constant 0 : i32
    return %c0_i32, %c0_i32_0 : i32, i32
  }
  func.func @transform_4(%arg0: i32) -> (i32, i32) {
    %c0_i32 = arith.constant 0 : i32
    %c0_i32_0 = arith.constant 0 : i32
    %c0_i32_1 = arith.constant 0 : i32
    return %c0_i32, %c0_i32_0 : i32, i32
  }
  func.func @transform_5(%arg0: i32) -> (i32, i32) {
    %c0_i32 = arith.constant 0 : i32
    %c0_i32_0 = arith.constant 0 : i32
    %c0_i32_1 = arith.constant 0 : i32
    return %c0_i32, %c0_i32_0 : i32, i32
  }
  func.func @transform_6(%arg0: i32) -> (i32, i32) {
    %c0_i32 = arith.constant 0 : i32
    %c0_i32_0 = arith.constant 0 : i32
    %c0_i32_1 = arith.constant 0 : i32
    return %c0_i32, %c0_i32_0 : i32, i32
  }
  func.func @transform_7(%arg0: i32) -> (i32, i32, i32, i32) {
    %c0_i32 = arith.constant 0 : i32
    %c0_i32_0 = arith.constant 0 : i32
    %c0_i32_1 = arith.constant 0 : i32
    %c0_i32_2 = arith.constant 0 : i32
    return %arg0, %c0_i32, %c0_i32_0, %c0_i32_1 : i32, i32, i32, i32
  }
}

</mosaic_0001>

<llo_original>
// kernel: tpu_custom_call.1
$region0: #{tpu_custom_call.1}
  #allocation0 [shape = 'u32[]', space=smem, size = 0x4, offset = 0x4, fixed_abs, tag = 'smem constant byte address 0x4 - core index']
  #allocation1 [shape = 'u32[144,128]{1,0:T(1,128)}', space=vmem, size = 0x12000, scoped, tag = 'internal scratch']
  #allocation2 [shape = 'f32[18,18,128]{2,1,0:T(8,128)}', space=vmem, size = 0x36000, scoped, tag = 'scratch operand']
  #allocation3 [shape = 'f32[18,18,128]{2,1,0:T(8,128)}', space=vmem, size = 0x36000, scoped, tag = 'scratch operand']
  %s0 = inlined_call_operand.hbm [shape: f32[2,16,16,128], index: 0, kind: input, shape index: {}]
  %s1 = inlined_call_operand.hbm [shape: bf16[1152,128], index: 1, kind: input, shape index: {}]
  %s2 = inlined_call_operand.vmem [shape: f32[1,128], index: 2, kind: input, shape index: {}]
  %s3 = inlined_call_operand.vmem [shape: f32[1,128], index: 3, kind: input, shape index: {}]
  %s4 = inlined_call_operand.hbm [shape: bf16[1152,128], index: 4, kind: input, shape index: {}]
  %s5 = inlined_call_operand.vmem [shape: f32[1,128], index: 5, kind: input, shape index: {}]
  %s6 = inlined_call_operand.vmem [shape: f32[1,128], index: 6, kind: input, shape index: {}]
  %s7 = inlined_call_operand.hbm [shape: f32[2,16,16,128], index: 7, kind: output, shape index: {}]
  %s8 = sld [smem:[#allocation0]]
  $region77: #{tpu_custom_call.1} parent=0
    _
  %s10 = ssub.s32 1, %s8
  %s11 = scalar_select 0, %s10, %s8
  $region1: #{tpu_custom_call.1} parent=0
    #allocation4 [shape = 'u8[262144]{0}', space=vmem, size = 0x40000, scoped, tag = 'input window, operand 0']
    #allocation5 [shape = 's32[2]{0}', space=sflag, size = 0x8, scoped, tag = 'scoped memory for tpu_custom_call.1']
    #allocation6 [shape = 's32[2]{0}', space=sflag, size = 0x8, scoped, tag = 'scoped memory for tpu_custom_call.1']
    #allocation7 [shape = 'u8[294912]{0}', space=vmem, size = 0x48000, scoped, tag = 'input window, operand 1, single buffered']
    #allocation8 [shape = 's32[1]{0}', space=sflag, size = 0x4, scoped, tag = 'scoped memory for tpu_custom_call.1']
    #allocation9 [shape = 'u8[294912]{0}', space=vmem, size = 0x48000, scoped, tag = 'input window, operand 4, single buffered']
    #allocation10 [shape = 'u8[262144]{0}', space=vmem, size = 0x40000, scoped, tag = 'output window, operand 0']
    %12 = vsyncpa [#allocation5], 0
    %s13 = scalar_lea.sflag [#allocation5], 1
    %14 = vsyncpa %s13, 0
    %15 = vsyncpa [#allocation8], 0
    %16 = vsyncpa [#allocation6], 0
    %s17 = scalar_lea.sflag [#allocation6], 1
    %18 = vsyncpa %s17, 0
    loop: start=0, step=1, limit=4
    $region2: #{tpu_custom_call.1} parent=1 // loop_pre_header
      _
    $region3: #{tpu_custom_call.1} parent=1 // loop_header
      %s20 = sphi 0, %s24
      %p21 = scmp.ge.s32.totalorder %s20, 4
      %s30 = sphi 0, %s32
      %s33 = sphi 0, %s30
      %s34 = sphi 0, %s33
      %s50 = sphi 0, %s34
      %s54 = sphi 0, %s54
      %s56 = sphi 0, %s54
      %s57 = sphi 0, %s56
      %s71 = sphi 0, %s57
      %s75 = sphi 0, %s75
      %s77 = sphi 0, %s75
      %s78 = sphi 0, %s77
      %s92 = sphi 0, %s78
      %s96 = sphi 0, %s96
      %s98 = sphi 0, %s96
      %s99 = sphi 0, %s98
      %s113 = sphi 0, %s99
      %s117 = sphi 0, %s117
      %s119 = sphi 0, %s117
      %s120 = sphi 0, %s119
      %s134 = sphi 0, %s120
      %s138 = sphi 0, %s138
      %s140 = sphi 0, %s138
      %s141 = sphi 0, %s140
      %s155 = sphi 0, %s141
      %s159 = sphi 0, %s159
      %s161 = sphi 0, %s159
      %s162 = sphi 0, %s161
      %s176 = sphi 0, %s162
      %s182 = sphi 0, %s184
      %s185 = sphi 0, %s182
      %s186 = sphi 0, %s185
      %s202 = sphi 0, %s186
    $region4: #{tpu_custom_call.1} parent=1 // loop_header_branch
      %23 = sbr.rel (%p21) target = $region8
    $region5: #{tpu_custom_call.1} parent=1 // loop_body
      %s25 = ssub.s32 %s20, 1
      %s26 = ssub.s32 %s20, 2
      %s27 = sadd.s32 %s20, 1
      %s28 = ssub.s32 %s20, %s27
      %p29 = scmp.eq.s32.totalorder %s28, 0
      %s31 = sadd.s32 %s30, 1
      %s32 = scalar_select %p29, %s30, %s31
      %p35 = pneg %p29
      %p36 = scmp.eq.s32.totalorder %s20, 1
      %p37 = por %p35, %p36
      %p38 = scmp.ne.s32.totalorder %s30, %s33
      %p39 = scmp.eq.s32.totalorder %s20, 0
      %p40 = por %p38, %p39
      %p41 = scmp.ne.s32.totalorder %s30, %s33
      %p42 = scmp.eq.s32.totalorder %s25, 1
      %p43 = por %p41, %p42
      %p44 = scmp.ne.s32.totalorder %s33, %s34
      %p45 = scmp.eq.s32.totalorder %s25, 0
      %p46 = por %p44, %p45
      %p47 = scmp.ne.s32.totalorder %s33, %s34
      %p48 = scmp.eq.s32.totalorder %s26, 1
      %p49 = por %p47, %p48
      %p51 = scmp.ne.s32.totalorder %s34, %s50
      %p52 = scmp.eq.s32.totalorder %s26, 0
      %p53 = por %p51, %p52
      %s55 = sadd.s32 %s54, 1
      %p58 = scmp.eq.s32.totalorder %s20, 1
      %p59 = scmp.ne.s32.totalorder %s54, %s56
      %p60 = scmp.eq.s32.totalorder %s20, 0
      %p61 = por %p59, %p60
      %p62 = scmp.ne.s32.totalorder %s54, %s56
      %p63 = scmp.eq.s32.totalorder %s25, 1
      %p64 = por %p62, %p63
      %p65 = scmp.ne.s32.totalorder %s56, %s57
      %p66 = scmp.eq.s32.totalorder %s25, 0
      %p67 = por %p65, %p66
      %p68 = scmp.ne.s32.totalorder %s56, %s57
      %p69 = scmp.eq.s32.totalorder %s26, 1
      %p70 = por %p68, %p69
      %p72 = scmp.ne.s32.totalorder %s57, %s71
      %p73 = scmp.eq.s32.totalorder %s26, 0
      %p74 = por %p72, %p73
      %s76 = sadd.s32 %s75, 1
      %p79 = scmp.eq.s32.totalorder %s20, 1
      %p80 = scmp.ne.s32.totalorder %s75, %s77
      %p81 = scmp.eq.s32.totalorder %s20, 0
      %p82 = por %p80, %p81
      %p83 = scmp.ne.s32.totalorder %s75, %s77
      %p84 = scmp.eq.s32.totalorder %s25, 1
      %p85 = por %p83, %p84
      %p86 = scmp.ne.s32.totalorder %s77, %s78
      %p87 = scmp.eq.s32.totalorder %s25, 0
      %p88 = por %p86, %p87
      %p89 = scmp.ne.s32.totalorder %s77, %s78
      %p90 = scmp.eq.s32.totalorder %s26, 1
      %p91 = por %p89, %p90
      %p93 = scmp.ne.s32.totalorder %s78, %s92
      %p94 = scmp.eq.s32.totalorder %s26, 0
      %p95 = por %p93, %p94
      %s97 = sadd.s32 %s96, 1
      %p100 = scmp.eq.s32.totalorder %s20, 1
      %p101 = scmp.ne.s32.totalorder %s96, %s98
      %p102 = scmp.eq.s32.totalorder %s20, 0
      %p103 = por %p101, %p102
      %p104 = scmp.ne.s32.totalorder %s96, %s98
      %p105 = scmp.eq.s32.totalorder %s25, 1
      %p106 = por %p104, %p105
      %p107 = scmp.ne.s32.totalorder %s98, %s99
      %p108 = scmp.eq.s32.totalorder %s25, 0
      %p109 = por %p107, %p108
      %p110 = scmp.ne.s32.totalorder %s98, %s99
      %p111 = scmp.eq.s32.totalorder %s26, 1
      %p112 = por %p110, %p111
      %p114 = scmp.ne.s32.totalorder %s99, %s113
      %p115 = scmp.eq.s32.totalorder %s26, 0
      %p116 = por %p114, %p115
      %s118 = sadd.s32 %s117, 1
      %p121 = scmp.eq.s32.totalorder %s20, 1
      %p122 = scmp.ne.s32.totalorder %s117, %s119
      %p123 = scmp.eq.s32.totalorder %s20, 0
      %p124 = por %p122, %p123
      %p125 = scmp.ne.s32.totalorder %s117, %s119
      %p126 = scmp.eq.s32.totalorder %s25, 1
      %p127 = por %p125, %p126
      %p128 = scmp.ne.s32.totalorder %s119, %s120
      %p129 = scmp.eq.s32.totalorder %s25, 0
      %p130 = por %p128, %p129
      %p131 = scmp.ne.s32.totalorder %s119, %s120
      %p132 = scmp.eq.s32.totalorder %s26, 1
      %p133 = por %p131, %p132
      %p135 = scmp.ne.s32.totalorder %s120, %s134
      %p136 = scmp.eq.s32.totalorder %s26, 0
      %p137 = por %p135, %p136
      %s139 = sadd.s32 %s138, 1
      %p142 = scmp.eq.s32.totalorder %s20, 1
      %p143 = scmp.ne.s32.totalorder %s138, %s140
      %p144 = scmp.eq.s32.totalorder %s20, 0
      %p145 = por %p143, %p144
      %p146 = scmp.ne.s32.totalorder %s138, %s140
      %p147 = scmp.eq.s32.totalorder %s25, 1
      %p148 = por %p146, %p147
      %p149 = scmp.ne.s32.totalorder %s140, %s141
      %p150 = scmp.eq.s32.totalorder %s25, 0
      %p151 = por %p149, %p150
      %p152 = scmp.ne.s32.totalorder %s140, %s141
      %p153 = scmp.eq.s32.totalorder %s26, 1
      %p154 = por %p152, %p153
      %p156 = scmp.ne.s32.totalorder %s141, %s155
      %p157 = scmp.eq.s32.totalorder %s26, 0
      %p158 = por %p156, %p157
      %s160 = sadd.s32 %s159, 1
      %p163 = scmp.eq.s32.totalorder %s20, 1
      %p164 = scmp.ne.s32.totalorder %s159, %s161
      %p165 = scmp.eq.s32.totalorder %s20, 0
      %p166 = por %p164, %p165
      %p167 = scmp.ne.s32.totalorder %s159, %s161
      %p168 = scmp.eq.s32.totalorder %s25, 1
      %p169 = por %p167, %p168
      %p170 = scmp.ne.s32.totalorder %s161, %s162
      %p171 = scmp.eq.s32.totalorder %s25, 0
      %p172 = por %p170, %p171
      %p173 = scmp.ne.s32.totalorder %s161, %s162
      %p174 = scmp.eq.s32.totalorder %s26, 1
      %p175 = por %p173, %p174
      %p177 = scmp.ne.s32.totalorder %s162, %s176
      %p178 = scmp.eq.s32.totalorder %s26, 0
      %p179 = por %p177, %p178
      %s180 = ssub.s32 %s20, %s27
      %p181 = scmp.eq.s32.totalorder %s180, 0
      %s183 = sadd.s32 %s182, 1
      %s184 = scalar_select %p181, %s182, %s183
      %p187 = pneg %p181
      %p188 = scmp.eq.s32.totalorder %s20, 1
      %p189 = por %p187, %p188
      %p190 = scmp.ne.s32.totalorder %s182, %s185
      %p191 = scmp.eq.s32.totalorder %s20, 0
      %p192 = por %p190, %p191
      %p193 = scmp.ne.s32.totalorder %s182, %s185
      %p194 = scmp.eq.s32.totalorder %s25, 1
      %p195 = por %p193, %p194
      %p196 = scmp.ne.s32.totalorder %s185, %s186
      %p197 = scmp.eq.s32.totalorder %s25, 0
      %p198 = por %p196, %p197
      %p199 = scmp.ne.s32.totalorder %s185, %s186
      %p200 = scmp.eq.s32.totalorder %s26, 1
      %p201 = por %p199, %p200
      %p203 = scmp.ne.s32.totalorder %s186, %s202
      %p204 = scmp.eq.s32.totalorder %s26, 0
      %p205 = por %p203, %p204
      %p206 = scmp.le.s32.totalorder 1, %s20
      %p207 = scmp.lt.s32.totalorder %s20, 3
      %p208 = pnand %p206, %p207
      %p209 = pneg %p208
      // Predicated region
      $region9: #{tpu_custom_call.1} parent=5 // pred_check
        _
      $region10: #{tpu_custom_call.1} parent=5 // pred_check_branch
        %211 = sbr.rel (%p208) target = $region12
      $region11: #{tpu_custom_call.1} parent=5 // pred_region
        %s212 = ssub.s32 %s20, 1
        // Predicated region
        $region13: #{tpu_custom_call.1} parent=11 // pred_check
          %p213 = pneg %p67
        $region14: #{tpu_custom_call.1} parent=11 // pred_check_branch
          %215 = sbr.rel (%p213) target = $region16
        $region15: #{tpu_custom_call.1} parent=11 // pred_region
          %s217 = ssub.s32 9216, 9216
          %218 = vsyncadd [#allocation8], %s217
          %s219 = sshll.u32 [#allocation7], 4
          %s220 = int_to_ptr.vmem [resolvable:$true] %s219
          %225 = dma.hbm_to_vmem [thread:$0]  %s1, 9216, %s220, [#allocation8], 64, 64, 4
        $region16: #{tpu_custom_call.1} parent=11 // pred_fallthru
          _
        // Predicated region
        $region17: #{tpu_custom_call.1} parent=11 // pred_check
          %p226 = pneg %p88
        $region18: #{tpu_custom_call.1} parent=11 // pred_check_branch
          %228 = sbr.rel (%p226) target = $region20
        $region19: #{tpu_custom_call.1} parent=11 // pred_region
          _
        $region20: #{tpu_custom_call.1} parent=11 // pred_fallthru
          _
        // Predicated region
        $region21: #{tpu_custom_call.1} parent=11 // pred_check
          %p229 = pneg %p109
        $region22: #{tpu_custom_call.1} parent=11 // pred_check_branch
          %231 = sbr.rel (%p229) target = $region24
        $region23: #{tpu_custom_call.1} parent=11 // pred_region
          _
        $region24: #{tpu_custom_call.1} parent=11 // pred_fallthru
          _
        // Predicated region
        $region25: #{tpu_custom_call.1} parent=11 // pred_check
          %p232 = pneg %p130
        $region26: #{tpu_custom_call.1} parent=11 // pred_check_branch
          %234 = sbr.rel (%p232) target = $region28
        $region27: #{tpu_custom_call.1} parent=11 // pred_region
          %s236 = ssub.s32 9216, 9216
          %237 = vsyncadd [#allocation8], %s236
          %s238 = sshll.u32 [#allocation9], 4
          %s239 = int_to_ptr.vmem [resolvable:$true] %s238
          %244 = dma.hbm_to_vmem [thread:$0]  %s4, 9216, %s239, [#allocation8], 64, 64, 4
        $region28: #{tpu_custom_call.1} parent=11 // pred_fallthru
          _
        // Predicated region
        $region29: #{tpu_custom_call.1} parent=11 // pred_check
          %p245 = pneg %p151
        $region30: #{tpu_custom_call.1} parent=11 // pred_check_branch
          %247 = sbr.rel (%p245) target = $region32
        $region31: #{tpu_custom_call.1} parent=11 // pred_region
          _
        $region32: #{tpu_custom_call.1} parent=11 // pred_fallthru
          _
        // Predicated region
        $region33: #{tpu_custom_call.1} parent=11 // pred_check
          %p248 = pneg %p172
        $region34: #{tpu_custom_call.1} parent=11 // pred_check_branch
          %250 = sbr.rel (%p248) target = $region36
        $region35: #{tpu_custom_call.1} parent=11 // pred_region
          _
        $region36: #{tpu_custom_call.1} parent=11 // pred_fallthru
          _
      $region12: #{tpu_custom_call.1} parent=5 // pred_fallthru
        _
      %p251 = scmp.lt.s32.totalorder %s20, 2
      // Predicated region
      $region37: #{tpu_custom_call.1} parent=5 // pred_check
        %p252 = pneg %p251
      $region38: #{tpu_custom_call.1} parent=5 // pred_check_branch
        %254 = sbr.rel (%p252) target = $region40
      $region39: #{tpu_custom_call.1} parent=5 // pred_region
        // Predicated region
        $region41: #{tpu_custom_call.1} parent=39 // pred_check
          %p255 = pneg %p40
        $region42: #{tpu_custom_call.1} parent=39 // pred_check_branch
          %257 = sbr.rel (%p255) target = $region44
        $region43: #{tpu_custom_call.1} parent=39 // pred_region
          %s258 = sand.u32 %s30, 1
          %s259 = scalar_lea.sflag [#allocation5], %s258
          %s260 = sand.u32 %s30, 1
          %s261 = smul.addr %s260, 256
          %s262 = scalar_lea.vmem [#allocation4], %s261
          %s264 = ssub.s32 4096, 4096
          %265 = vsyncadd %s259, %s264
          %s266 = smul.addr %s20, 32
          %s267 = smul.addr %s266, 128
          %s268 = scalar_lea.hbm %s0, %s267
          %s269 = sshll.u32 %s262, 4
          %s270 = int_to_ptr.vmem [resolvable:$true] %s269
          %275 = dma.hbm_to_vmem [thread:$0]  %s268, 4096, %s270, %s259, 128, 128, 8
        $region44: #{tpu_custom_call.1} parent=39 // pred_fallthru
          _
      $region40: #{tpu_custom_call.1} parent=5 // pred_fallthru
        _
      %p276 = scmp.le.s32.totalorder 1, %s20
      %p277 = scmp.lt.s32.totalorder %s20, 3
      %p278 = pnand %p276, %p277
      %p279 = pneg %p278
      // Predicated region
      $region45: #{tpu_custom_call.1} parent=5 // pred_check
        _
      $region46: #{tpu_custom_call.1} parent=5 // pred_check_branch
        %281 = sbr.rel (%p278) target = $region48
      $region47: #{tpu_custom_call.1} parent=5 // pred_region
        %s282 = ssub.s32 %s20, 1
        %s283 = sand.u32 %s33, 1
        %s284 = scalar_lea.sflag [#allocation5], %s283
        %s285 = sand.u32 %s33, 1
        %s286 = smul.addr %s285, 256
        %s287 = scalar_lea.vmem [#allocation4], %s286
        // Predicated region
        $region49: #{tpu_custom_call.1} parent=47 // pred_check
          %p288 = pneg %p46
        $region50: #{tpu_custom_call.1} parent=47 // pred_check_branch
          %290 = sbr.rel (%p288) target = $region52
        $region51: #{tpu_custom_call.1} parent=47 // pred_region
          %291 = dma.done %s284, 4096
        $region52: #{tpu_custom_call.1} parent=47 // pred_fallthru
          _
        // Predicated region
        $region53: #{tpu_custom_call.1} parent=47 // pred_check
          %p292 = pneg %p67
        $region54: #{tpu_custom_call.1} parent=47 // pred_check_branch
          %294 = sbr.rel (%p292) target = $region56
        $region55: #{tpu_custom_call.1} parent=47 // pred_region
          %295 = dma.done [#allocation8], 9216
        $region56: #{tpu_custom_call.1} parent=47 // pred_fallthru
          _
        // Predicated region
        $region57: #{tpu_custom_call.1} parent=47 // pred_check
          %p296 = pneg %p130
        $region58: #{tpu_custom_call.1} parent=47 // pred_check_branch
          %298 = sbr.rel (%p296) target = $region60
        $region59: #{tpu_custom_call.1} parent=47 // pred_region
          %299 = dma.done [#allocation8], 9216
        $region60: #{tpu_custom_call.1} parent=47 // pred_fallthru
          _
        %s300 = sand.u32 %s33, 1
        %s301 = scalar_lea.sflag [#allocation5], %s300
        %s302 = sand.u32 %s33, 1
        %s303 = smul.addr %s302, 256
        %s304 = scalar_lea.vmem [#allocation4], %s303
        %p305 = pneg %p46
        %p306 = pneg %p43
        %p307 = pneg %p67
        %p308 = pneg %p64
        %p309 = pneg %p88
        %p310 = pneg %p85
        %p311 = pneg %p109
        %p312 = pneg %p106
        %p313 = pneg %p130
        %p314 = pneg %p127
        %p315 = pneg %p151
        %p316 = pneg %p148
        %p317 = pneg %p172
        %p318 = pneg %p169
        %p319 = pneg %p198
        %p320 = pneg %p195
        %s321 = sand.u32 %s185, 1
        %s322 = scalar_lea.sflag [#allocation6], %s321
        %s323 = sand.u32 %s185, 1
        %s324 = smul.addr %s323, 256
        %s325 = scalar_lea.vmem [#allocation10], %s324
        %p327 = scmp.eq.s32.totalorder %s25, 0
        // Predicated region
        $region61: #{tpu_custom_call.1} parent=47 // pred_check
          %p328 = pneg %p327
        $region62: #{tpu_custom_call.1} parent=47 // pred_check_branch
          %330 = sbr.rel (%p328) target = $region64
        $region63: #{tpu_custom_call.1} parent=47 // pred_region
          %331 = vst [vmem:[#allocation2] sm:$0xff] 0.0
          %332 = vst [vmem:[#allocation2 + $0x8] sm:$0xff] 0.0
          %333 = vst [vmem:[#allocation2 + $0x10] sm:$0x3] 0.0
          %334 = vst [vmem:[#allocation2 + $0x18] sm:$0xff] 0.0
          %335 = vst [vmem:[#allocation2 + $0x20] sm:$0xff] 0.0
          %336 = vst [vmem:[#allocation2 + $0x28] sm:$0x3] 0.0
          %337 = vst [vmem:[#allocation2 + $0x30] sm:$0xff] 0.0
          %338 = vst [vmem:[#allocation2 + $0x38] sm:$0xff] 0.0
          %339 = vst [vmem:[#allocation2 + $0x40] sm:$0x3] 0.0
          %340 = vst [vmem:[#allocation2 + $0x48] sm:$0xff] 0.0
          %341 = vst [vmem:[#allocation2 + $0x50] sm:$0xff] 0.0
          %342 = vst [vmem:[#allocation2 + $0x58] sm:$0x3] 0.0
          %343 = vst [vmem:[#allocation2 + $0x60] sm:$0xff] 0.0
          %344 = vst [vmem:[#allocation2 + $0x68] sm:$0xff] 0.0
          %345 = vst [vmem:[#allocation2 + $0x70] sm:$0x3] 0.0
          %346 = vst [vmem:[#allocation2 + $0x78] sm:$0xff] 0.0
          %347 = vst [vmem:[#allocation2 + $0x80] sm:$0xff] 0.0
          %348 = vst [vmem:[#allocation2 + $0x88] sm:$0x3] 0.0
          %349 = vst [vmem:[#allocation2 + $0x90] sm:$0xff] 0.0
          %350 = vst [vmem:[#allocation2 + $0x98] sm:$0xff] 0.0
          %351 = vst [vmem:[#allocation2 + $0xa0] sm:$0x3] 0.0
          %352 = vst [vmem:[#allocation2 + $0xa8] sm:$0xff] 0.0
          %353 = vst [vmem:[#allocation2 + $0xb0] sm:$0xff] 0.0
          %354 = vst [vmem:[#allocation2 + $0xb8] sm:$0x3] 0.0
          %355 = vst [vmem:[#allocation2 + $0xc0] sm:$0xff] 0.0
          %356 = vst [vmem:[#allocation2 + $0xc8] sm:$0xff] 0.0
          %357 = vst [vmem:[#allocation2 + $0xd0] sm:$0x3] 0.0
          %358 = vst [vmem:[#allocation2 + $0xd8] sm:$0xff] 0.0
          %359 = vst [vmem:[#allocation2 + $0xe0] sm:$0xff] 0.0
          %360 = vst [vmem:[#allocation2 + $0xe8] sm:$0x3] 0.0
          %361 = vst [vmem:[#allocation2 + $0xf0] sm:$0xff] 0.0
          %362 = vst [vmem:[#allocation2 + $0xf8] sm:$0xff] 0.0
          %363 = vst [vmem:[#allocation2 + $0x100] sm:$0x3] 0.0
          %364 = vst [vmem:[#allocation2 + $0x108] sm:$0xff] 0.0
          %365 = vst [vmem:[#allocation2 + $0x110] sm:$0xff] 0.0
          %366 = vst [vmem:[#allocation2 + $0x118] sm:$0x3] 0.0
          %367 = vst [vmem:[#allocation2 + $0x120] sm:$0xff] 0.0
          %368 = vst [vmem:[#allocation2 + $0x128] sm:$0xff] 0.0
          %369 = vst [vmem:[#allocation2 + $0x130] sm:$0x3] 0.0
          %370 = vst [vmem:[#allocation2 + $0x138] sm:$0xff] 0.0
          %371 = vst [vmem:[#allocation2 + $0x140] sm:$0xff] 0.0
          %372 = vst [vmem:[#allocation2 + $0x148] sm:$0x3] 0.0
          %373 = vst [vmem:[#allocation2 + $0x150] sm:$0xff] 0.0
          %374 = vst [vmem:[#allocation2 + $0x158] sm:$0xff] 0.0
          %375 = vst [vmem:[#allocation2 + $0x160] sm:$0x3] 0.0
          %376 = vst [vmem:[#allocation2 + $0x168] sm:$0xff] 0.0
          %377 = vst [vmem:[#allocation2 + $0x170] sm:$0xff] 0.0
          %378 = vst [vmem:[#allocation2 + $0x178] sm:$0x3] 0.0
          %379 = vst [vmem:[#allocation2 + $0x180] sm:$0xff] 0.0
          %380 = vst [vmem:[#allocation2 + $0x188] sm:$0xff] 0.0
          %381 = vst [vmem:[#allocation2 + $0x190] sm:$0x3] 0.0
          %382 = vst [vmem:[#allocation2 + $0x198] sm:$0xff] 0.0
          %383 = vst [vmem:[#allocation2 + $0x1a0] sm:$0xff] 0.0
          %384 = vst [vmem:[#allocation2 + $0x1a8] sm:$0x3] 0.0
          %385 = vst [vmem:[#allocation3] sm:$0xff] 0.0
          %386 = vst [vmem:[#allocation3 + $0x8] sm:$0xff] 0.0
          %387 = vst [vmem:[#allocation3 + $0x10] sm:$0x3] 0.0
          %388 = vst [vmem:[#allocation3 + $0x18] sm:$0xff] 0.0
          %389 = vst [vmem:[#allocation3 + $0x20] sm:$0xff] 0.0
          %390 = vst [vmem:[#allocation3 + $0x28] sm:$0x3] 0.0
          %391 = vst [vmem:[#allocation3 + $0x30] sm:$0xff] 0.0
          %392 = vst [vmem:[#allocation3 + $0x38] sm:$0xff] 0.0
          %393 = vst [vmem:[#allocation3 + $0x40] sm:$0x3] 0.0
          %394 = vst [vmem:[#allocation3 + $0x48] sm:$0xff] 0.0
          %395 = vst [vmem:[#allocation3 + $0x50] sm:$0xff] 0.0
          %396 = vst [vmem:[#allocation3 + $0x58] sm:$0x3] 0.0
          %397 = vst [vmem:[#allocation3 + $0x60] sm:$0xff] 0.0
          %398 = vst [vmem:[#allocation3 + $0x68] sm:$0xff] 0.0
          %399 = vst [vmem:[#allocation3 + $0x70] sm:$0x3] 0.0
          %400 = vst [vmem:[#allocation3 + $0x78] sm:$0xff] 0.0
          %401 = vst [vmem:[#allocation3 + $0x80] sm:$0xff] 0.0
          %402 = vst [vmem:[#allocation3 + $0x88] sm:$0x3] 0.0
          %403 = vst [vmem:[#allocation3 + $0x90] sm:$0xff] 0.0
          %404 = vst [vmem:[#allocation3 + $0x98] sm:$0xff] 0.0
          %405 = vst [vmem:[#allocation3 + $0xa0] sm:$0x3] 0.0
          %406 = vst [vmem:[#allocation3 + $0xa8] sm:$0xff] 0.0
          %407 = vst [vmem:[#allocation3 + $0xb0] sm:$0xff] 0.0
          %408 = vst [vmem:[#allocation3 + $0xb8] sm:$0x3] 0.0
          %409 = vst [vmem:[#allocation3 + $0xc0] sm:$0xff] 0.0
          %410 = vst [vmem:[#allocation3 + $0xc8] sm:$0xff] 0.0
          %411 = vst [vmem:[#allocation3 + $0xd0] sm:$0x3] 0.0
          %412 = vst [vmem:[#allocation3 + $0xd8] sm:$0xff] 0.0
          %413 = vst [vmem:[#allocation3 + $0xe0] sm:$0xff] 0.0
          %414 = vst [vmem:[#allocation3 + $0xe8] sm:$0x3] 0.0
          %415 = vst [vmem:[#allocation3 + $0xf0] sm:$0xff] 0.0
          %416 = vst [vmem:[#allocation3 + $0xf8] sm:$0xff] 0.0
          %417 = vst [vmem:[#allocation3 + $0x100] sm:$0x3] 0.0
          %418 = vst [vmem:[#allocation3 + $0x108] sm:$0xff] 0.0
          %419 = vst [vmem:[#allocation3 + $0x110] sm:$0xff] 0.0
          %420 = vst [vmem:[#allocation3 + $0x118] sm:$0x3] 0.0
          %421 = vst [vmem:[#allocation3 + $0x120] sm:$0xff] 0.0
          %422 = vst [vmem:[#allocation3 + $0x128] sm:$0xff] 0.0
          %423 = vst [vmem:[#allocation3 + $0x130] sm:$0x3] 0.0
          %424 = vst [vmem:[#allocation3 + $0x138] sm:$0xff] 0.0
          %425 = vst [vmem:[#allocation3 + $0x140] sm:$0xff] 0.0
          %426 = vst [vmem:[#allocation3 + $0x148] sm:$0x3] 0.0
          %427 = vst [vmem:[#allocation3 + $0x150] sm:$0xff] 0.0
          %428 = vst [vmem:[#allocation3 + $0x158] sm:$0xff] 0.0
          %429 = vst [vmem:[#allocation3 + $0x160] sm:$0x3] 0.0
          %430 = vst [vmem:[#allocation3 + $0x168] sm:$0xff] 0.0
          %431 = vst [vmem:[#allocation3 + $0x170] sm:$0xff] 0.0
          %432 = vst [vmem:[#allocation3 + $0x178] sm:$0x3] 0.0
          %433 = vst [vmem:[#allocation3 + $0x180] sm:$0xff] 0.0
          %434 = vst [vmem:[#allocation3 + $0x188] sm:$0xff] 0.0
          %435 = vst [vmem:[#allocation3 + $0x190] sm:$0x3] 0.0
          %436 = vst [vmem:[#allocation3 + $0x198] sm:$0xff] 0.0
          %437 = vst [vmem:[#allocation3 + $0x1a0] sm:$0xff] 0.0
          %438 = vst [vmem:[#allocation3 + $0x1a8] sm:$0x3] 0.0
        $region64: #{tpu_custom_call.1} parent=47 // pred_fallthru
          _
        %v439 = vld [vmem:[%s287] sm:$0xff]
        %v440 = vld [vmem:[%s287 + $0x8] sm:$0xff]
        %v441 = vld [vmem:[%s287 + $0x10] sm:$0xff]
        %v442 = vld [vmem:[%s287 + $0x18] sm:$0xff]
        %v443 = vld [vmem:[%s287 + $0x20] sm:$0xff]
        %v444 = vld [vmem:[%s287 + $0x28] sm:$0xff]
        %v445 = vld [vmem:[%s287 + $0x30] sm:$0xff]
        %v446 = vld [vmem:[%s287 + $0x38] sm:$0xff]
        %v447 = vld [vmem:[%s287 + $0x40] sm:$0xff]
        %v448 = vld [vmem:[%s287 + $0x48] sm:$0xff]
        %v449 = vld [vmem:[%s287 + $0x50] sm:$0xff]
        %v450 = vld [vmem:[%s287 + $0x58] sm:$0xff]
        %v451 = vld [vmem:[%s287 + $0x60] sm:$0xff]
        %v452 = vld [vmem:[%s287 + $0x68] sm:$0xff]
        %v453 = vld [vmem:[%s287 + $0x70] sm:$0xff]
        %v454 = vld [vmem:[%s287 + $0x78] sm:$0xff]
        %v455 = vld [vmem:[%s287 + $0x80] sm:$0xff]
        %v456 = vld [vmem:[%s287 + $0x88] sm:$0xff]
        %v457 = vld [vmem:[%s287 + $0x90] sm:$0xff]
        %v458 = vld [vmem:[%s287 + $0x98] sm:$0xff]
        %v459 = vld [vmem:[%s287 + $0xa0] sm:$0xff]
        %v460 = vld [vmem:[%s287 + $0xa8] sm:$0xff]
        %v461 = vld [vmem:[%s287 + $0xb0] sm:$0xff]
        %v462 = vld [vmem:[%s287 + $0xb8] sm:$0xff]
        %v463 = vld [vmem:[%s287 + $0xc0] sm:$0xff]
        %v464 = vld [vmem:[%s287 + $0xc8] sm:$0xff]
        %v465 = vld [vmem:[%s287 + $0xd0] sm:$0xff]
        %v466 = vld [vmem:[%s287 + $0xd8] sm:$0xff]
        %v467 = vld [vmem:[%s287 + $0xe0] sm:$0xff]
        %v468 = vld [vmem:[%s287 + $0xe8] sm:$0xff]
        %v469 = vld [vmem:[%s287 + $0xf0] sm:$0xff]
        %v470 = vld [vmem:[%s287 + $0xf8] sm:$0xff]
        %s471 = scalar_lea.vmem [#allocation2], 24
        %472 = vst [vmem:[%s471 + $0x1] sm:$0xff] %v439
        %473 = vst [vmem:[%s471 + $0x9] sm:$0xff] %v440
        %474 = vst [vmem:[%s471 + $0x19] sm:$0xff] %v441
        %475 = vst [vmem:[%s471 + $0x21] sm:$0xff] %v442
        %476 = vst [vmem:[%s471 + $0x31] sm:$0xff] %v443
        %477 = vst [vmem:[%s471 + $0x39] sm:$0xff] %v444
        %478 = vst [vmem:[%s471 + $0x49] sm:$0xff] %v445
        %479 = vst [vmem:[%s471 + $0x51] sm:$0xff] %v446
        %480 = vst [vmem:[%s471 + $0x61] sm:$0xff] %v447
        %481 = vst [vmem:[%s471 + $0x69] sm:$0xff] %v448
        %482 = vst [vmem:[%s471 + $0x79] sm:$0xff] %v449
        %483 = vst [vmem:[%s471 + $0x81] sm:$0xff] %v450
        %484 = vst [vmem:[%s471 + $0x91] sm:$0xff] %v451
        %485 = vst [vmem:[%s471 + $0x99] sm:$0xff] %v452
        %486 = vst [vmem:[%s471 + $0xa9] sm:$0xff] %v453
        %487 = vst [vmem:[%s471 + $0xb1] sm:$0xff] %v454
        %488 = vst [vmem:[%s471 + $0xc1] sm:$0xff] %v455
        %489 = vst [vmem:[%s471 + $0xc9] sm:$0xff] %v456
        %490 = vst [vmem:[%s471 + $0xd9] sm:$0xff] %v457
        %491 = vst [vmem:[%s471 + $0xe1] sm:$0xff] %v458
        %492 = vst [vmem:[%s471 + $0xf1] sm:$0xff] %v459
        %493 = vst [vmem:[%s471 + $0xf9] sm:$0xff] %v460
        %494 = vst [vmem:[%s471 + $0x109] sm:$0xff] %v461
        %495 = vst [vmem:[%s471 + $0x111] sm:$0xff] %v462
        %496 = vst [vmem:[%s471 + $0x121] sm:$0xff] %v463
        %497 = vst [vmem:[%s471 + $0x129] sm:$0xff] %v464
        %498 = vst [vmem:[%s471 + $0x139] sm:$0xff] %v465
        %499 = vst [vmem:[%s471 + $0x141] sm:$0xff] %v466
        %500 = vst [vmem:[%s471 + $0x151] sm:$0xff] %v467
        %501 = vst [vmem:[%s471 + $0x159] sm:$0xff] %v468
        %502 = vst [vmem:[%s471 + $0x169] sm:$0xff] %v469
        %503 = vst [vmem:[%s471 + $0x171] sm:$0xff] %v470
        %v504 = vld [vmem:[#allocation2] sm:$0xff]
        %v505 = vld [vmem:[#allocation2 + $0x8] sm:$0xff]
        %v506 = vld [vmem:[#allocation2 + $0x18] sm:$0xff]
        %v507 = vld [vmem:[#allocation2 + $0x20] sm:$0xff]
        %v508 = vld [vmem:[#allocation2 + $0x30] sm:$0xff]
        %v509 = vld [vmem:[#allocation2 + $0x38] sm:$0xff]
        %v510 = vld [vmem:[#allocation2 + $0x48] sm:$0xff]
        %v511 = vld [vmem:[#allocation2 + $0x50] sm:$0xff]
        %v512 = vld [vmem:[#allocation2 + $0x60] sm:$0xff]
        %v513 = vld [vmem:[#allocation2 + $0x68] sm:$0xff]
        %v514 = vld [vmem:[#allocation2 + $0x78] sm:$0xff]
        %v515 = vld [vmem:[#allocation2 + $0x80] sm:$0xff]
        %v516 = vld [vmem:[#allocation2 + $0x90] sm:$0xff]
        %v517 = vld [vmem:[#allocation2 + $0x98] sm:$0xff]
        %v518 = vld [vmem:[#allocation2 + $0xa8] sm:$0xff]
        %v519 = vld [vmem:[#allocation2 + $0xb0] sm:$0xff]
        %v520 = vld [vmem:[#allocation2 + $0xc0] sm:$0xff]
        %v521 = vld [vmem:[#allocation2 + $0xc8] sm:$0xff]
        %v522 = vld [vmem:[#allocation2 + $0xd8] sm:$0xff]
        %v523 = vld [vmem:[#allocation2 + $0xe0] sm:$0xff]
        %v524 = vld [vmem:[#allocation2 + $0xf0] sm:$0xff]
        %v525 = vld [vmem:[#allocation2 + $0xf8] sm:$0xff]
        %v526 = vld [vmem:[#allocation2 + $0x108] sm:$0xff]
        %v527 = vld [vmem:[#allocation2 + $0x110] sm:$0xff]
        %v528 = vld [vmem:[#allocation2 + $0x120] sm:$0xff]
        %v529 = vld [vmem:[#allocation2 + $0x128] sm:$0xff]
        %v530 = vld [vmem:[#allocation2 + $0x138] sm:$0xff]
        %v531 = vld [vmem:[#allocation2 + $0x140] sm:$0xff]
        %v532 = vld [vmem:[#allocation2 + $0x150] sm:$0xff]
        %v533 = vld [vmem:[#allocation2 + $0x158] sm:$0xff]
        %v534 = vld [vmem:[#allocation2 + $0x168] sm:$0xff]
        %v535 = vld [vmem:[#allocation2 + $0x170] sm:$0xff]
        %v536 = vld [vmem:[#allocation2 + $0x1] sm:$0xff]
        %v537 = vld [vmem:[#allocation2 + $0x9] sm:$0xff]
        %v538 = vld [vmem:[#allocation2 + $0x19] sm:$0xff]
        %v539 = vld [vmem:[#allocation2 + $0x21] sm:$0xff]
        %v540 = vld [vmem:[#allocation2 + $0x31] sm:$0xff]
        %v541 = vld [vmem:[#allocation2 + $0x39] sm:$0xff]
        %v542 = vld [vmem:[#allocation2 + $0x49] sm:$0xff]
        %v543 = vld [vmem:[#allocation2 + $0x51] sm:$0xff]
        %v544 = vld [vmem:[#allocation2 + $0x61] sm:$0xff]
        %v545 = vld [vmem:[#allocation2 + $0x69] sm:$0xff]
        %v546 = vld [vmem:[#allocation2 + $0x79] sm:$0xff]
        %v547 = vld [vmem:[#allocation2 + $0x81] sm:$0xff]
        %v548 = vld [vmem:[#allocation2 + $0x91] sm:$0xff]
        %v549 = vld [vmem:[#allocation2 + $0x99] sm:$0xff]
        %v550 = vld [vmem:[#allocation2 + $0xa9] sm:$0xff]
        %v551 = vld [vmem:[#allocation2 + $0xb1] sm:$0xff]
        %v552 = vld [vmem:[#allocation2 + $0xc1] sm:$0xff]
        %v553 = vld [vmem:[#allocation2 + $0xc9] sm:$0xff]
        %v554 = vld [vmem:[#allocation2 + $0xd9] sm:$0xff]
        %v555 = vld [vmem:[#allocation2 + $0xe1] sm:$0xff]
        %v556 = vld [vmem:[#allocation2 + $0xf1] sm:$0xff]
        %v557 = vld [vmem:[#allocation2 + $0xf9] sm:$0xff]
        %v558 = vld [vmem:[#allocation2 + $0x109] sm:$0xff]
        %v559 = vld [vmem:[#allocation2 + $0x111] sm:$0xff]
        %v560 = vld [vmem:[#allocation2 + $0x121] sm:$0xff]
        %v561 = vld [vmem:[#allocation2 + $0x129] sm:$0xff]
        %v562 = vld [vmem:[#allocation2 + $0x139] sm:$0xff]
        %v563 = vld [vmem:[#allocation2 + $0x141] sm:$0xff]
        %v564 = vld [vmem:[#allocation2 + $0x151] sm:$0xff]
        %v565 = vld [vmem:[#allocation2 + $0x159] sm:$0xff]
        %v566 = vld [vmem:[#allocation2 + $0x169] sm:$0xff]
        %v567 = vld [vmem:[#allocation2 + $0x171] sm:$0xff]
        %v568 = vld [vmem:[#allocation2 + $0x2] sm:$0xff]
        %v569 = vld [vmem:[#allocation2 + $0xa] sm:$0xff]
        %v570 = vld [vmem:[#allocation2 + $0x1a] sm:$0xff]
        %v571 = vld [vmem:[#allocation2 + $0x22] sm:$0xff]
        %v572 = vld [vmem:[#allocation2 + $0x32] sm:$0xff]
        %v573 = vld [vmem:[#allocation2 + $0x3a] sm:$0xff]
        %v574 = vld [vmem:[#allocation2 + $0x4a] sm:$0xff]
        %v575 = vld [vmem:[#allocation2 + $0x52] sm:$0xff]
        %v576 = vld [vmem:[#allocation2 + $0x62] sm:$0xff]
        %v577 = vld [vmem:[#allocation2 + $0x6a] sm:$0xff]
        %v578 = vld [vmem:[#allocation2 + $0x7a] sm:$0xff]
        %v579 = vld [vmem:[#allocation2 + $0x82] sm:$0xff]
        %v580 = vld [vmem:[#allocation2 + $0x92] sm:$0xff]
        %v581 = vld [vmem:[#allocation2 + $0x9a] sm:$0xff]
        %v582 = vld [vmem:[#allocation2 + $0xaa] sm:$0xff]
        %v583 = vld [vmem:[#allocation2 + $0xb2] sm:$0xff]
        %v584 = vld [vmem:[#allocation2 + $0xc2] sm:$0xff]
        %v585 = vld [vmem:[#allocation2 + $0xca] sm:$0xff]
        %v586 = vld [vmem:[#allocation2 + $0xda] sm:$0xff]
        %v587 = vld [vmem:[#allocation2 + $0xe2] sm:$0xff]
        %v588 = vld [vmem:[#allocation2 + $0xf2] sm:$0xff]
        %v589 = vld [vmem:[#allocation2 + $0xfa] sm:$0xff]
        %v590 = vld [vmem:[#allocation2 + $0x10a] sm:$0xff]
        %v591 = vld [vmem:[#allocation2 + $0x112] sm:$0xff]
        %v592 = vld [vmem:[#allocation2 + $0x122] sm:$0xff]
        %v593 = vld [vmem:[#allocation2 + $0x12a] sm:$0xff]
        %v594 = vld [vmem:[#allocation2 + $0x13a] sm:$0xff]
        %v595 = vld [vmem:[#allocation2 + $0x142] sm:$0xff]
        %v596 = vld [vmem:[#allocation2 + $0x152] sm:$0xff]
        %v597 = vld [vmem:[#allocation2 + $0x15a] sm:$0xff]
        %v598 = vld [vmem:[#allocation2 + $0x16a] sm:$0xff]
        %v599 = vld [vmem:[#allocation2 + $0x172] sm:$0xff]
        %v600 = vld [vmem:[%s471] sm:$0xff]
        %v601 = vld [vmem:[%s471 + $0x8] sm:$0xff]
        %v602 = vld [vmem:[%s471 + $0x18] sm:$0xff]
        %v603 = vld [vmem:[%s471 + $0x20] sm:$0xff]
        %v604 = vld [vmem:[%s471 + $0x30] sm:$0xff]
        %v605 = vld [vmem:[%s471 + $0x38] sm:$0xff]
        %v606 = vld [vmem:[%s471 + $0x48] sm:$0xff]
        %v607 = vld [vmem:[%s471 + $0x50] sm:$0xff]
        %v608 = vld [vmem:[%s471 + $0x60] sm:$0xff]
        %v609 = vld [vmem:[%s471 + $0x68] sm:$0xff]
        %v610 = vld [vmem:[%s471 + $0x78] sm:$0xff]
        %v611 = vld [vmem:[%s471 + $0x80] sm:$0xff]
        %v612 = vld [vmem:[%s471 + $0x90] sm:$0xff]
        %v613 = vld [vmem:[%s471 + $0x98] sm:$0xff]
        %v614 = vld [vmem:[%s471 + $0xa8] sm:$0xff]
        %v615 = vld [vmem:[%s471 + $0xb0] sm:$0xff]
        %v616 = vld [vmem:[%s471 + $0xc0] sm:$0xff]
        %v617 = vld [vmem:[%s471 + $0xc8] sm:$0xff]
        %v618 = vld [vmem:[%s471 + $0xd8] sm:$0xff]
        %v619 = vld [vmem:[%s471 + $0xe0] sm:$0xff]
        %v620 = vld [vmem:[%s471 + $0xf0] sm:$0xff]
        %v621 = vld [vmem:[%s471 + $0xf8] sm:$0xff]
        %v622 = vld [vmem:[%s471 + $0x108] sm:$0xff]
        %v623 = vld [vmem:[%s471 + $0x110] sm:$0xff]
        %v624 = vld [vmem:[%s471 + $0x120] sm:$0xff]
        %v625 = vld [vmem:[%s471 + $0x128] sm:$0xff]
        %v626 = vld [vmem:[%s471 + $0x138] sm:$0xff]
        %v627 = vld [vmem:[%s471 + $0x140] sm:$0xff]
        %v628 = vld [vmem:[%s471 + $0x150] sm:$0xff]
        %v629 = vld [vmem:[%s471 + $0x158] sm:$0xff]
        %v630 = vld [vmem:[%s471 + $0x168] sm:$0xff]
        %v631 = vld [vmem:[%s471 + $0x170] sm:$0xff]
        %v632 = vld [vmem:[%s471 + $0x1] sm:$0xff]
        %v633 = vld [vmem:[%s471 + $0x9] sm:$0xff]
        %v634 = vld [vmem:[%s471 + $0x19] sm:$0xff]
        %v635 = vld [vmem:[%s471 + $0x21] sm:$0xff]
        %v636 = vld [vmem:[%s471 + $0x31] sm:$0xff]
        %v637 = vld [vmem:[%s471 + $0x39] sm:$0xff]
        %v638 = vld [vmem:[%s471 + $0x49] sm:$0xff]
        %v639 = vld [vmem:[%s471 + $0x51] sm:$0xff]
        %v640 = vld [vmem:[%s471 + $0x61] sm:$0xff]
        %v641 = vld [vmem:[%s471 + $0x69] sm:$0xff]
        %v642 = vld [vmem:[%s471 + $0x79] sm:$0xff]
        %v643 = vld [vmem:[%s471 + $0x81] sm:$0xff]
        %v644 = vld [vmem:[%s471 + $0x91] sm:$0xff]
        %v645 = vld [vmem:[%s471 + $0x99] sm:$0xff]
        %v646 = vld [vmem:[%s471 + $0xa9] sm:$0xff]
        %v647 = vld [vmem:[%s471 + $0xb1] sm:$0xff]
        %v648 = vld [vmem:[%s471 + $0xc1] sm:$0xff]
        %v649 = vld [vmem:[%s471 + $0xc9] sm:$0xff]
        %v650 = vld [vmem:[%s471 + $0xd9] sm:$0xff]
        %v651 = vld [vmem:[%s471 + $0xe1] sm:$0xff]
        %v652 = vld [vmem:[%s471 + $0xf1] sm:$0xff]
        %v653 = vld [vmem:[%s471 + $0xf9] sm:$0xff]
        %v654 = vld [vmem:[%s471 + $0x109] sm:$0xff]
        %v655 = vld [vmem:[%s471 + $0x111] sm:$0xff]
        %v656 = vld [vmem:[%s471 + $0x121] sm:$0xff]
        %v657 = vld [vmem:[%s471 + $0x129] sm:$0xff]
        %v658 = vld [vmem:[%s471 + $0x139] sm:$0xff]
        %v659 = vld [vmem:[%s471 + $0x141] sm:$0xff]
        %v660 = vld [vmem:[%s471 + $0x151] sm:$0xff]
        %v661 = vld [vmem:[%s471 + $0x159] sm:$0xff]
        %v662 = vld [vmem:[%s471 + $0x169] sm:$0xff]
        %v663 = vld [vmem:[%s471 + $0x171] sm:$0xff]
        %v664 = vld [vmem:[%s471 + $0x2] sm:$0xff]
        %v665 = vld [vmem:[%s471 + $0xa] sm:$0xff]
        %v666 = vld [vmem:[%s471 + $0x1a] sm:$0xff]
        %v667 = vld [vmem:[%s471 + $0x22] sm:$0xff]
        %v668 = vld [vmem:[%s471 + $0x32] sm:$0xff]
        %v669 = vld [vmem:[%s471 + $0x3a] sm:$0xff]
        %v670 = vld [vmem:[%s471 + $0x4a] sm:$0xff]
        %v671 = vld [vmem:[%s471 + $0x52] sm:$0xff]
        %v672 = vld [vmem:[%s471 + $0x62] sm:$0xff]
        %v673 = vld [vmem:[%s471 + $0x6a] sm:$0xff]
        %v674 = vld [vmem:[%s471 + $0x7a] sm:$0xff]
        %v675 = vld [vmem:[%s471 + $0x82] sm:$0xff]
        %v676 = vld [vmem:[%s471 + $0x92] sm:$0xff]
        %v677 = vld [vmem:[%s471 + $0x9a] sm:$0xff]
        %v678 = vld [vmem:[%s471 + $0xaa] sm:$0xff]
        %v679 = vld [vmem:[%s471 + $0xb2] sm:$0xff]
        %v680 = vld [vmem:[%s471 + $0xc2] sm:$0xff]
        %v681 = vld [vmem:[%s471 + $0xca] sm:$0xff]
        %v682 = vld [vmem:[%s471 + $0xda] sm:$0xff]
        %v683 = vld [vmem:[%s471 + $0xe2] sm:$0xff]
        %v684 = vld [vmem:[%s471 + $0xf2] sm:$0xff]
        %v685 = vld [vmem:[%s471 + $0xfa] sm:$0xff]
        %v686 = vld [vmem:[%s471 + $0x10a] sm:$0xff]
        %v687 = vld [vmem:[%s471 + $0x112] sm:$0xff]
        %v688 = vld [vmem:[%s471 + $0x122] sm:$0xff]
        %v689 = vld [vmem:[%s471 + $0x12a] sm:$0xff]
        %v690 = vld [vmem:[%s471 + $0x13a] sm:$0xff]
        %v691 = vld [vmem:[%s471 + $0x142] sm:$0xff]
        %v692 = vld [vmem:[%s471 + $0x152] sm:$0xff]
        %v693 = vld [vmem:[%s471 + $0x15a] sm:$0xff]
        %v694 = vld [vmem:[%s471 + $0x16a] sm:$0xff]
        %v695 = vld [vmem:[%s471 + $0x172] sm:$0xff]
        %s696 = scalar_lea.vmem [#allocation2], 48
        %v697 = vld [vmem:[%s696] sm:$0xff]
        %v698 = vld [vmem:[%s696 + $0x8] sm:$0xff]
        %v699 = vld [vmem:[%s696 + $0x18] sm:$0xff]
        %v700 = vld [vmem:[%s696 + $0x20] sm:$0xff]
        %v701 = vld [vmem:[%s696 + $0x30] sm:$0xff]
        %v702 = vld [vmem:[%s696 + $0x38] sm:$0xff]
        %v703 = vld [vmem:[%s696 + $0x48] sm:$0xff]
        %v704 = vld [vmem:[%s696 + $0x50] sm:$0xff]
        %v705 = vld [vmem:[%s696 + $0x60] sm:$0xff]
        %v706 = vld [vmem:[%s696 + $0x68] sm:$0xff]
        %v707 = vld [vmem:[%s696 + $0x78] sm:$0xff]
        %v708 = vld [vmem:[%s696 + $0x80] sm:$0xff]
        %v709 = vld [vmem:[%s696 + $0x90] sm:$0xff]
        %v710 = vld [vmem:[%s696 + $0x98] sm:$0xff]
        %v711 = vld [vmem:[%s696 + $0xa8] sm:$0xff]
        %v712 = vld [vmem:[%s696 + $0xb0] sm:$0xff]
        %v713 = vld [vmem:[%s696 + $0xc0] sm:$0xff]
        %v714 = vld [vmem:[%s696 + $0xc8] sm:$0xff]
        %v715 = vld [vmem:[%s696 + $0xd8] sm:$0xff]
        %v716 = vld [vmem:[%s696 + $0xe0] sm:$0xff]
        %v717 = vld [vmem:[%s696 + $0xf0] sm:$0xff]
        %v718 = vld [vmem:[%s696 + $0xf8] sm:$0xff]
        %v719 = vld [vmem:[%s696 + $0x108] sm:$0xff]
        %v720 = vld [vmem:[%s696 + $0x110] sm:$0xff]
        %v721 = vld [vmem:[%s696 + $0x120] sm:$0xff]
        %v722 = vld [vmem:[%s696 + $0x128] sm:$0xff]
        %v723 = vld [vmem:[%s696 + $0x138] sm:$0xff]
        %v724 = vld [vmem:[%s696 + $0x140] sm:$0xff]
        %v725 = vld [vmem:[%s696 + $0x150] sm:$0xff]
        %v726 = vld [vmem:[%s696 + $0x158] sm:$0xff]
        %v727 = vld [vmem:[%s696 + $0x168] sm:$0xff]
        %v728 = vld [vmem:[%s696 + $0x170] sm:$0xff]
        %v729 = vld [vmem:[%s696 + $0x1] sm:$0xff]
        %v730 = vld [vmem:[%s696 + $0x9] sm:$0xff]
        %v731 = vld [vmem:[%s696 + $0x19] sm:$0xff]
        %v732 = vld [vmem:[%s696 + $0x21] sm:$0xff]
        %v733 = vld [vmem:[%s696 + $0x31] sm:$0xff]
        %v734 = vld [vmem:[%s696 + $0x39] sm:$0xff]
        %v735 = vld [vmem:[%s696 + $0x49] sm:$0xff]
        %v736 = vld [vmem:[%s696 + $0x51] sm:$0xff]
        %v737 = vld [vmem:[%s696 + $0x61] sm:$0xff]
        %v738 = vld [vmem:[%s696 + $0x69] sm:$0xff]
        %v739 = vld [vmem:[%s696 + $0x79] sm:$0xff]
        %v740 = vld [vmem:[%s696 + $0x81] sm:$0xff]
        %v741 = vld [vmem:[%s696 + $0x91] sm:$0xff]
        %v742 = vld [vmem:[%s696 + $0x99] sm:$0xff]
        %v743 = vld [vmem:[%s696 + $0xa9] sm:$0xff]
        %v744 = vld [vmem:[%s696 + $0xb1] sm:$0xff]
        %v745 = vld [vmem:[%s696 + $0xc1] sm:$0xff]
        %v746 = vld [vmem:[%s696 + $0xc9] sm:$0xff]
        %v747 = vld [vmem:[%s696 + $0xd9] sm:$0xff]
        %v748 = vld [vmem:[%s696 + $0xe1] sm:$0xff]
        %v749 = vld [vmem:[%s696 + $0xf1] sm:$0xff]
        %v750 = vld [vmem:[%s696 + $0xf9] sm:$0xff]
        %v751 = vld [vmem:[%s696 + $0x109] sm:$0xff]
        %v752 = vld [vmem:[%s696 + $0x111] sm:$0xff]
        %v753 = vld [vmem:[%s696 + $0x121] sm:$0xff]
        %v754 = vld [vmem:[%s696 + $0x129] sm:$0xff]
        %v755 = vld [vmem:[%s696 + $0x139] sm:$0xff]
        %v756 = vld [vmem:[%s696 + $0x141] sm:$0xff]
        %v757 = vld [vmem:[%s696 + $0x151] sm:$0xff]
        %v758 = vld [vmem:[%s696 + $0x159] sm:$0xff]
        %v759 = vld [vmem:[%s696 + $0x169] sm:$0xff]
        %v760 = vld [vmem:[%s696 + $0x171] sm:$0xff]
        %v761 = vld [vmem:[%s696 + $0x2] sm:$0xff]
        %v762 = vld [vmem:[%s696 + $0xa] sm:$0xff]
        %v763 = vld [vmem:[%s696 + $0x1a] sm:$0xff]
        %v764 = vld [vmem:[%s696 + $0x22] sm:$0xff]
        %v765 = vld [vmem:[%s696 + $0x32] sm:$0xff]
        %v766 = vld [vmem:[%s696 + $0x3a] sm:$0xff]
        %v767 = vld [vmem:[%s696 + $0x4a] sm:$0xff]
        %v768 = vld [vmem:[%s696 + $0x52] sm:$0xff]
        %v769 = vld [vmem:[%s696 + $0x62] sm:$0xff]
        %v770 = vld [vmem:[%s696 + $0x6a] sm:$0xff]
        %v771 = vld [vmem:[%s696 + $0x7a] sm:$0xff]
        %v772 = vld [vmem:[%s696 + $0x82] sm:$0xff]
        %v773 = vld [vmem:[%s696 + $0x92] sm:$0xff]
        %v774 = vld [vmem:[%s696 + $0x9a] sm:$0xff]
        %v775 = vld [vmem:[%s696 + $0xaa] sm:$0xff]
        %v776 = vld [vmem:[%s696 + $0xb2] sm:$0xff]
        %v777 = vld [vmem:[%s696 + $0xc2] sm:$0xff]
        %v778 = vld [vmem:[%s696 + $0xca] sm:$0xff]
        %v779 = vld [vmem:[%s696 + $0xda] sm:$0xff]
        %v780 = vld [vmem:[%s696 + $0xe2] sm:$0xff]
        %v781 = vld [vmem:[%s696 + $0xf2] sm:$0xff]
        %v782 = vld [vmem:[%s696 + $0xfa] sm:$0xff]
        %v783 = vld [vmem:[%s696 + $0x10a] sm:$0xff]
        %v784 = vld [vmem:[%s696 + $0x112] sm:$0xff]
        %v785 = vld [vmem:[%s696 + $0x122] sm:$0xff]
        %v786 = vld [vmem:[%s696 + $0x12a] sm:$0xff]
        %v787 = vld [vmem:[%s696 + $0x13a] sm:$0xff]
        %v788 = vld [vmem:[%s696 + $0x142] sm:$0xff]
        %v789 = vld [vmem:[%s696 + $0x152] sm:$0xff]
        %v790 = vld [vmem:[%s696 + $0x15a] sm:$0xff]
        %v791 = vld [vmem:[%s696 + $0x16a] sm:$0xff]
        %v792 = vld [vmem:[%s696 + $0x172] sm:$0xff]
        %v793 = vpack.c.bf16 %v505, %v504
        %v794 = vpack.c.bf16 %v537, %v536
        %v795 = vpack.c.bf16 %v569, %v568
        %v796 = vpack.c.bf16 %v601, %v600
        %v797 = vpack.c.bf16 %v633, %v632
        %v798 = vpack.c.bf16 %v665, %v664
        %v799 = vpack.c.bf16 %v698, %v697
        %v800 = vpack.c.bf16 %v730, %v729
        %v801 = vpack.c.bf16 %v762, %v761
        %v802 = vpack.c.bf16 %v507, %v506
        %v803 = vpack.c.bf16 %v539, %v538
        %v804 = vpack.c.bf16 %v571, %v570
        %v805 = vpack.c.bf16 %v603, %v602
        %v806 = vpack.c.bf16 %v635, %v634
        %v807 = vpack.c.bf16 %v667, %v666
        %v808 = vpack.c.bf16 %v700, %v699
        %v809 = vpack.c.bf16 %v732, %v731
        %v810 = vpack.c.bf16 %v764, %v763
        %v811 = vpack.c.bf16 %v509, %v508
        %v812 = vpack.c.bf16 %v541, %v540
        %v813 = vpack.c.bf16 %v573, %v572
        %v814 = vpack.c.bf16 %v605, %v604
        %v815 = vpack.c.bf16 %v637, %v636
        %v816 = vpack.c.bf16 %v669, %v668
        %v817 = vpack.c.bf16 %v702, %v701
        %v818 = vpack.c.bf16 %v734, %v733
        %v819 = vpack.c.bf16 %v766, %v765
        %v820 = vpack.c.bf16 %v511, %v510
        %v821 = vpack.c.bf16 %v543, %v542
        %v822 = vpack.c.bf16 %v575, %v574
        %v823 = vpack.c.bf16 %v607, %v606
        %v824 = vpack.c.bf16 %v639, %v638
        %v825 = vpack.c.bf16 %v671, %v670
        %v826 = vpack.c.bf16 %v704, %v703
        %v827 = vpack.c.bf16 %v736, %v735
        %v828 = vpack.c.bf16 %v768, %v767
        %v829 = vpack.c.bf16 %v513, %v512
        %v830 = vpack.c.bf16 %v545, %v544
        %v831 = vpack.c.bf16 %v577, %v576
        %v832 = vpack.c.bf16 %v609, %v608
        %v833 = vpack.c.bf16 %v641, %v640
        %v834 = vpack.c.bf16 %v673, %v672
        %v835 = vpack.c.bf16 %v706, %v705
        %v836 = vpack.c.bf16 %v738, %v737
        %v837 = vpack.c.bf16 %v770, %v769
        %v838 = vpack.c.bf16 %v515, %v514
        %v839 = vpack.c.bf16 %v547, %v546
        %v840 = vpack.c.bf16 %v579, %v578
        %v841 = vpack.c.bf16 %v611, %v610
        %v842 = vpack.c.bf16 %v643, %v642
        %v843 = vpack.c.bf16 %v675, %v674
        %v844 = vpack.c.bf16 %v708, %v707
        %v845 = vpack.c.bf16 %v740, %v739
        %v846 = vpack.c.bf16 %v772, %v771
        %v847 = vpack.c.bf16 %v517, %v516
        %v848 = vpack.c.bf16 %v549, %v548
        %v849 = vpack.c.bf16 %v581, %v580
        %v850 = vpack.c.bf16 %v613, %v612
        %v851 = vpack.c.bf16 %v645, %v644
        %v852 = vpack.c.bf16 %v677, %v676
        %v853 = vpack.c.bf16 %v710, %v709
        %v854 = vpack.c.bf16 %v742, %v741
        %v855 = vpack.c.bf16 %v774, %v773
        %v856 = vpack.c.bf16 %v519, %v518
        %v857 = vpack.c.bf16 %v551, %v550
        %v858 = vpack.c.bf16 %v583, %v582
        %v859 = vpack.c.bf16 %v615, %v614
        %v860 = vpack.c.bf16 %v647, %v646
        %v861 = vpack.c.bf16 %v679, %v678
        %v862 = vpack.c.bf16 %v712, %v711
        %v863 = vpack.c.bf16 %v744, %v743
        %v864 = vpack.c.bf16 %v776, %v775
        %v865 = vpack.c.bf16 %v521, %v520
        %v866 = vpack.c.bf16 %v553, %v552
        %v867 = vpack.c.bf16 %v585, %v584
        %v868 = vpack.c.bf16 %v617, %v616
        %v869 = vpack.c.bf16 %v649, %v648
        %v870 = vpack.c.bf16 %v681, %v680
        %v871 = vpack.c.bf16 %v714, %v713
        %v872 = vpack.c.bf16 %v746, %v745
        %v873 = vpack.c.bf16 %v778, %v777
        %v874 = vpack.c.bf16 %v523, %v522
        %v875 = vpack.c.bf16 %v555, %v554
        %v876 = vpack.c.bf16 %v587, %v586
        %v877 = vpack.c.bf16 %v619, %v618
        %v878 = vpack.c.bf16 %v651, %v650
        %v879 = vpack.c.bf16 %v683, %v682
        %v880 = vpack.c.bf16 %v716, %v715
        %v881 = vpack.c.bf16 %v748, %v747
        %v882 = vpack.c.bf16 %v780, %v779
        %v883 = vpack.c.bf16 %v525, %v524
        %v884 = vpack.c.bf16 %v557, %v556
        %v885 = vpack.c.bf16 %v589, %v588
        %v886 = vpack.c.bf16 %v621, %v620
        %v887 = vpack.c.bf16 %v653, %v652
        %v888 = vpack.c.bf16 %v685, %v684
        %v889 = vpack.c.bf16 %v718, %v717
        %v890 = vpack.c.bf16 %v750, %v749
        %v891 = vpack.c.bf16 %v782, %v781
        %v892 = vpack.c.bf16 %v527, %v526
        %v893 = vpack.c.bf16 %v559, %v558
        %v894 = vpack.c.bf16 %v591, %v590
        %v895 = vpack.c.bf16 %v623, %v622
        %v896 = vpack.c.bf16 %v655, %v654
        %v897 = vpack.c.bf16 %v687, %v686
        %v898 = vpack.c.bf16 %v720, %v719
        %v899 = vpack.c.bf16 %v752, %v751
        %v900 = vpack.c.bf16 %v784, %v783
        %v901 = vpack.c.bf16 %v529, %v528
        %v902 = vpack.c.bf16 %v561, %v560
        %v903 = vpack.c.bf16 %v593, %v592
        %v904 = vpack.c.bf16 %v625, %v624
        %v905 = vpack.c.bf16 %v657, %v656
        %v906 = vpack.c.bf16 %v689, %v688
        %v907 = vpack.c.bf16 %v722, %v721
        %v908 = vpack.c.bf16 %v754, %v753
        %v909 = vpack.c.bf16 %v786, %v785
        %v910 = vpack.c.bf16 %v531, %v530
        %v911 = vpack.c.bf16 %v563, %v562
        %v912 = vpack.c.bf16 %v595, %v594
        %v913 = vpack.c.bf16 %v627, %v626
        %v914 = vpack.c.bf16 %v659, %v658
        %v915 = vpack.c.bf16 %v691, %v690
        %v916 = vpack.c.bf16 %v724, %v723
        %v917 = vpack.c.bf16 %v756, %v755
        %v918 = vpack.c.bf16 %v788, %v787
        %v919 = vpack.c.bf16 %v533, %v532
        %v920 = vpack.c.bf16 %v565, %v564
        %v921 = vpack.c.bf16 %v597, %v596
        %v922 = vpack.c.bf16 %v629, %v628
        %v923 = vpack.c.bf16 %v661, %v660
        %v924 = vpack.c.bf16 %v693, %v692
        %v925 = vpack.c.bf16 %v726, %v725
        %v926 = vpack.c.bf16 %v758, %v757
        %v927 = vpack.c.bf16 %v790, %v789
        %v928 = vpack.c.bf16 %v535, %v534
        %v929 = vpack.c.bf16 %v567, %v566
        %v930 = vpack.c.bf16 %v599, %v598
        %v931 = vpack.c.bf16 %v631, %v630
        %v932 = vpack.c.bf16 %v663, %v662
        %v933 = vpack.c.bf16 %v695, %v694
        %v934 = vpack.c.bf16 %v728, %v727
        %v935 = vpack.c.bf16 %v760, %v759
        %v936 = vpack.c.bf16 %v792, %v791
        %v937 = vld [vmem:[#allocation7] sm:$0xf]
        %v938 = vld [vmem:[#allocation7 + $0x4] sm:$0xf]
        %v939 = vld [vmem:[#allocation7 + $0x8] sm:$0xf]
        %v940 = vld [vmem:[#allocation7 + $0xc] sm:$0xf]
        %v941 = vld [vmem:[#allocation7 + $0x10] sm:$0xf]
        %v942 = vld [vmem:[#allocation7 + $0x14] sm:$0xf]
        %v943 = vld [vmem:[#allocation7 + $0x18] sm:$0xf]
        %v944 = vld [vmem:[#allocation7 + $0x1c] sm:$0xf]
        %v945 = vld [vmem:[#allocation7 + $0x20] sm:$0xf]
        %v946 = vld [vmem:[#allocation7 + $0x24] sm:$0xf]
        %v947 = vld [vmem:[#allocation7 + $0x28] sm:$0xf]
        %v948 = vld [vmem:[#allocation7 + $0x2c] sm:$0xf]
        %v949 = vld [vmem:[#allocation7 + $0x30] sm:$0xf]
        %v950 = vld [vmem:[#allocation7 + $0x34] sm:$0xf]
        %v951 = vld [vmem:[#allocation7 + $0x38] sm:$0xf]
        %v952 = vld [vmem:[#allocation7 + $0x3c] sm:$0xf]
        %v953 = vld [vmem:[#allocation7 + $0x40] sm:$0xf]
        %v954 = vld [vmem:[#allocation7 + $0x44] sm:$0xf]
        %v955 = vld [vmem:[#allocation7 + $0x48] sm:$0xf]
        %v956 = vld [vmem:[#allocation7 + $0x4c] sm:$0xf]
        %v957 = vld [vmem:[#allocation7 + $0x50] sm:$0xf]
        %v958 = vld [vmem:[#allocation7 + $0x54] sm:$0xf]
        %v959 = vld [vmem:[#allocation7 + $0x58] sm:$0xf]
        %v960 = vld [vmem:[#allocation7 + $0x5c] sm:$0xf]
        %v961 = vld [vmem:[#allocation7 + $0x60] sm:$0xf]
        %v962 = vld [vmem:[#allocation7 + $0x64] sm:$0xf]
        %v963 = vld [vmem:[#allocation7 + $0x68] sm:$0xf]
        %v964 = vld [vmem:[#allocation7 + $0x6c] sm:$0xf]
        %v965 = vld [vmem:[#allocation7 + $0x70] sm:$0xf]
        %v966 = vld [vmem:[#allocation7 + $0x74] sm:$0xf]
        %v967 = vld [vmem:[#allocation7 + $0x78] sm:$0xf]
        %v968 = vld [vmem:[#allocation7 + $0x7c] sm:$0xf]
        %v969 = vld [vmem:[#allocation7 + $0x80] sm:$0xf]
        %v970 = vld [vmem:[#allocation7 + $0x84] sm:$0xf]
        %v971 = vld [vmem:[#allocation7 + $0x88] sm:$0xf]
        %v972 = vld [vmem:[#allocation7 + $0x8c] sm:$0xf]
        %v973 = vld [vmem:[#allocation7 + $0x90] sm:$0xf]
        %v974 = vld [vmem:[#allocation7 + $0x94] sm:$0xf]
        %v975 = vld [vmem:[#allocation7 + $0x98] sm:$0xf]
        %v976 = vld [vmem:[#allocation7 + $0x9c] sm:$0xf]
        %v977 = vld [vmem:[#allocation7 + $0xa0] sm:$0xf]
        %v978 = vld [vmem:[#allocation7 + $0xa4] sm:$0xf]
        %v979 = vld [vmem:[#allocation7 + $0xa8] sm:$0xf]
        %v980 = vld [vmem:[#allocation7 + $0xac] sm:$0xf]
        %v981 = vld [vmem:[#allocation7 + $0xb0] sm:$0xf]
        %v982 = vld [vmem:[#allocation7 + $0xb4] sm:$0xf]
        %v983 = vld [vmem:[#allocation7 + $0xb8] sm:$0xf]
        %v984 = vld [vmem:[#allocation7 + $0xbc] sm:$0xf]
        %v985 = vld [vmem:[#allocation7 + $0xc0] sm:$0xf]
        %v986 = vld [vmem:[#allocation7 + $0xc4] sm:$0xf]
        %v987 = vld [vmem:[#allocation7 + $0xc8] sm:$0xf]
        %v988 = vld [vmem:[#allocation7 + $0xcc] sm:$0xf]
        %v989 = vld [vmem:[#allocation7 + $0xd0] sm:$0xf]
        %v990 = vld [vmem:[#allocation7 + $0xd4] sm:$0xf]
        %v991 = vld [vmem:[#allocation7 + $0xd8] sm:$0xf]
        %v992 = vld [vmem:[#allocation7 + $0xdc] sm:$0xf]
        %v993 = vld [vmem:[#allocation7 + $0xe0] sm:$0xf]
        %v994 = vld [vmem:[#allocation7 + $0xe4] sm:$0xf]
        %v995 = vld [vmem:[#allocation7 + $0xe8] sm:$0xf]
        %v996 = vld [vmem:[#allocation7 + $0xec] sm:$0xf]
        %v997 = vld [vmem:[#allocation7 + $0xf0] sm:$0xf]
        %v998 = vld [vmem:[#allocation7 + $0xf4] sm:$0xf]
        %v999 = vld [vmem:[#allocation7 + $0xf8] sm:$0xf]
        %v1000 = vld [vmem:[#allocation7 + $0xfc] sm:$0xf]
        %v1001 = vld [vmem:[#allocation7 + $0x100] sm:$0xf]
        %v1002 = vld [vmem:[#allocation7 + $0x104] sm:$0xf]
        %v1003 = vld [vmem:[#allocation7 + $0x108] sm:$0xf]
        %v1004 = vld [vmem:[#allocation7 + $0x10c] sm:$0xf]
        %v1005 = vld [vmem:[#allocation7 + $0x110] sm:$0xf]
        %v1006 = vld [vmem:[#allocation7 + $0x114] sm:$0xf]
        %v1007 = vld [vmem:[#allocation7 + $0x118] sm:$0xf]
        %v1008 = vld [vmem:[#allocation7 + $0x11c] sm:$0xf]
        %v1009 = vld [vmem:[#allocation7 + $0x120] sm:$0xf]
        %v1010 = vld [vmem:[#allocation7 + $0x124] sm:$0xf]
        %v1011 = vld [vmem:[#allocation7 + $0x128] sm:$0xf]
        %v1012 = vld [vmem:[#allocation7 + $0x12c] sm:$0xf]
        %v1013 = vld [vmem:[#allocation7 + $0x130] sm:$0xf]
        %v1014 = vld [vmem:[#allocation7 + $0x134] sm:$0xf]
        %v1015 = vld [vmem:[#allocation7 + $0x138] sm:$0xf]
        %v1016 = vld [vmem:[#allocation7 + $0x13c] sm:$0xf]
        %v1017 = vld [vmem:[#allocation7 + $0x140] sm:$0xf]
        %v1018 = vld [vmem:[#allocation7 + $0x144] sm:$0xf]
        %v1019 = vld [vmem:[#allocation7 + $0x148] sm:$0xf]
        %v1020 = vld [vmem:[#allocation7 + $0x14c] sm:$0xf]
        %v1021 = vld [vmem:[#allocation7 + $0x150] sm:$0xf]
        %v1022 = vld [vmem:[#allocation7 + $0x154] sm:$0xf]
        %v1023 = vld [vmem:[#allocation7 + $0x158] sm:$0xf]
        %v1024 = vld [vmem:[#allocation7 + $0x15c] sm:$0xf]
        %v1025 = vld [vmem:[#allocation7 + $0x160] sm:$0xf]
        %v1026 = vld [vmem:[#allocation7 + $0x164] sm:$0xf]
        %v1027 = vld [vmem:[#allocation7 + $0x168] sm:$0xf]
        %v1028 = vld [vmem:[#allocation7 + $0x16c] sm:$0xf]
        %v1029 = vld [vmem:[#allocation7 + $0x170] sm:$0xf]
        %v1030 = vld [vmem:[#allocation7 + $0x174] sm:$0xf]
        %v1031 = vld [vmem:[#allocation7 + $0x178] sm:$0xf]
        %v1032 = vld [vmem:[#allocation7 + $0x17c] sm:$0xf]
        %v1033 = vld [vmem:[#allocation7 + $0x180] sm:$0xf]
        %v1034 = vld [vmem:[#allocation7 + $0x184] sm:$0xf]
        %v1035 = vld [vmem:[#allocation7 + $0x188] sm:$0xf]
        %v1036 = vld [vmem:[#allocation7 + $0x18c] sm:$0xf]
        %v1037 = vld [vmem:[#allocation7 + $0x190] sm:$0xf]
        %v1038 = vld [vmem:[#allocation7 + $0x194] sm:$0xf]
        %v1039 = vld [vmem:[#allocation7 + $0x198] sm:$0xf]
        %v1040 = vld [vmem:[#allocation7 + $0x19c] sm:$0xf]
        %v1041 = vld [vmem:[#allocation7 + $0x1a0] sm:$0xf]
        %v1042 = vld [vmem:[#allocation7 + $0x1a4] sm:$0xf]
        %v1043 = vld [vmem:[#allocation7 + $0x1a8] sm:$0xf]
        %v1044 = vld [vmem:[#allocation7 + $0x1ac] sm:$0xf]
        %v1045 = vld [vmem:[#allocation7 + $0x1b0] sm:$0xf]
        %v1046 = vld [vmem:[#allocation7 + $0x1b4] sm:$0xf]
        %v1047 = vld [vmem:[#allocation7 + $0x1b8] sm:$0xf]
        %v1048 = vld [vmem:[#allocation7 + $0x1bc] sm:$0xf]
        %v1049 = vld [vmem:[#allocation7 + $0x1c0] sm:$0xf]
        %v1050 = vld [vmem:[#allocation7 + $0x1c4] sm:$0xf]
        %v1051 = vld [vmem:[#allocation7 + $0x1c8] sm:$0xf]
        %v1052 = vld [vmem:[#allocation7 + $0x1cc] sm:$0xf]
        %v1053 = vld [vmem:[#allocation7 + $0x1d0] sm:$0xf]
        %v1054 = vld [vmem:[#allocation7 + $0x1d4] sm:$0xf]
        %v1055 = vld [vmem:[#allocation7 + $0x1d8] sm:$0xf]
        %v1056 = vld [vmem:[#allocation7 + $0x1dc] sm:$0xf]
        %v1057 = vld [vmem:[#allocation7 + $0x1e0] sm:$0xf]
        %v1058 = vld [vmem:[#allocation7 + $0x1e4] sm:$0xf]
        %v1059 = vld [vmem:[#allocation7 + $0x1e8] sm:$0xf]
        %v1060 = vld [vmem:[#allocation7 + $0x1ec] sm:$0xf]
        %v1061 = vld [vmem:[#allocation7 + $0x1f0] sm:$0xf]
        %v1062 = vld [vmem:[#allocation7 + $0x1f4] sm:$0xf]
        %v1063 = vld [vmem:[#allocation7 + $0x1f8] sm:$0xf]
        %v1064 = vld [vmem:[#allocation7 + $0x1fc] sm:$0xf]
        %v1065 = vld [vmem:[#allocation7 + $0x200] sm:$0xf]
        %v1066 = vld [vmem:[#allocation7 + $0x204] sm:$0xf]
        %v1067 = vld [vmem:[#allocation7 + $0x208] sm:$0xf]
        %v1068 = vld [vmem:[#allocation7 + $0x20c] sm:$0xf]
        %v1069 = vld [vmem:[#allocation7 + $0x210] sm:$0xf]
        %v1070 = vld [vmem:[#allocation7 + $0x214] sm:$0xf]
        %v1071 = vld [vmem:[#allocation7 + $0x218] sm:$0xf]
        %v1072 = vld [vmem:[#allocation7 + $0x21c] sm:$0xf]
        %v1073 = vld [vmem:[#allocation7 + $0x220] sm:$0xf]
        %v1074 = vld [vmem:[#allocation7 + $0x224] sm:$0xf]
        %v1075 = vld [vmem:[#allocation7 + $0x228] sm:$0xf]
        %v1076 = vld [vmem:[#allocation7 + $0x22c] sm:$0xf]
        %v1077 = vld [vmem:[#allocation7 + $0x230] sm:$0xf]
        %v1078 = vld [vmem:[#allocation7 + $0x234] sm:$0xf]
        %v1079 = vld [vmem:[#allocation7 + $0x238] sm:$0xf]
        %v1080 = vld [vmem:[#allocation7 + $0x23c] sm:$0xf]
        %v1225 = vunpack.c.l.b16 %v937
        %v1226 = vunpack.c.l.b16 %v938
        %v1227 = vunpack.c.l.b16 %v939
        %v1228 = vunpack.c.l.b16 %v940
        %v1229 = vunpack.c.l.b16 %v941
        %v1230 = vunpack.c.l.b16 %v942
        %v1231 = vunpack.c.l.b16 %v943
        %v1232 = vunpack.c.l.b16 %v944
        %v1233 = vunpack.c.l.b16 %v945
        %v1234 = vunpack.c.l.b16 %v946
        %v1235 = vunpack.c.l.b16 %v947
        %v1236 = vunpack.c.l.b16 %v948
        %v1237 = vunpack.c.l.b16 %v949
        %v1238 = vunpack.c.l.b16 %v950
        %v1239 = vunpack.c.l.b16 %v951
        %v1240 = vunpack.c.l.b16 %v952
        %v1241 = vunpack.c.l.b16 %v953
        %v1242 = vunpack.c.l.b16 %v954
        %v1243 = vunpack.c.l.b16 %v955
        %v1244 = vunpack.c.l.b16 %v956
        %v1245 = vunpack.c.l.b16 %v957
        %v1246 = vunpack.c.l.b16 %v958
        %v1247 = vunpack.c.l.b16 %v959
        %v1248 = vunpack.c.l.b16 %v960
        %v1249 = vunpack.c.l.b16 %v961
        %v1250 = vunpack.c.l.b16 %v962
        %v1251 = vunpack.c.l.b16 %v963
        %v1252 = vunpack.c.l.b16 %v964
        %v1253 = vunpack.c.l.b16 %v965
        %v1254 = vunpack.c.l.b16 %v966
        %v1255 = vunpack.c.l.b16 %v967
        %v1256 = vunpack.c.l.b16 %v968
        %v1257 = vunpack.c.l.b16 %v969
        %v1258 = vunpack.c.l.b16 %v970
        %v1259 = vunpack.c.l.b16 %v971
        %v1260 = vunpack.c.l.b16 %v972
        %v1261 = vunpack.c.l.b16 %v973
        %v1262 = vunpack.c.l.b16 %v974
        %v1263 = vunpack.c.l.b16 %v975
        %v1264 = vunpack.c.l.b16 %v976
        %v1265 = vunpack.c.l.b16 %v977
        %v1266 = vunpack.c.l.b16 %v978
        %v1267 = vunpack.c.l.b16 %v979
        %v1268 = vunpack.c.l.b16 %v980
        %v1269 = vunpack.c.l.b16 %v981
        %v1270 = vunpack.c.l.b16 %v982
        %v1271 = vunpack.c.l.b16 %v983
        %v1272 = vunpack.c.l.b16 %v984
        %v1273 = vunpack.c.l.b16 %v985
        %v1274 = vunpack.c.l.b16 %v986
        %v1275 = vunpack.c.l.b16 %v987
        %v1276 = vunpack.c.l.b16 %v988
        %v1277 = vunpack.c.l.b16 %v989
        %v1278 = vunpack.c.l.b16 %v990
        %v1279 = vunpack.c.l.b16 %v991
        %v1280 = vunpack.c.l.b16 %v992
        %v1281 = vunpack.c.l.b16 %v993
        %v1282 = vunpack.c.l.b16 %v994
        %v1283 = vunpack.c.l.b16 %v995
        %v1284 = vunpack.c.l.b16 %v996
        %v1285 = vunpack.c.l.b16 %v997
        %v1286 = vunpack.c.l.b16 %v998
        %v1287 = vunpack.c.l.b16 %v999
        %v1288 = vunpack.c.l.b16 %v1000
        %v1289 = vunpack.c.l.b16 %v1001
        %v1290 = vunpack.c.l.b16 %v1002
        %v1291 = vunpack.c.l.b16 %v1003
        %v1292 = vunpack.c.l.b16 %v1004
        %v1293 = vunpack.c.l.b16 %v1005
        %v1294 = vunpack.c.l.b16 %v1006
        %v1295 = vunpack.c.l.b16 %v1007
        %v1296 = vunpack.c.l.b16 %v1008
        %v1297 = vunpack.c.l.b16 %v1009
        %v1298 = vunpack.c.l.b16 %v1010
        %v1299 = vunpack.c.l.b16 %v1011
        %v1300 = vunpack.c.l.b16 %v1012
        %v1301 = vunpack.c.l.b16 %v1013
        %v1302 = vunpack.c.l.b16 %v1014
        %v1303 = vunpack.c.l.b16 %v1015
        %v1304 = vunpack.c.l.b16 %v1016
        %v1305 = vunpack.c.l.b16 %v1017
        %v1306 = vunpack.c.l.b16 %v1018
        %v1307 = vunpack.c.l.b16 %v1019
        %v1308 = vunpack.c.l.b16 %v1020
        %v1309 = vunpack.c.l.b16 %v1021
        %v1310 = vunpack.c.l.b16 %v1022
        %v1311 = vunpack.c.l.b16 %v1023
        %v1312 = vunpack.c.l.b16 %v1024
        %v1313 = vunpack.c.l.b16 %v1025
        %v1314 = vunpack.c.l.b16 %v1026
        %v1315 = vunpack.c.l.b16 %v1027
        %v1316 = vunpack.c.l.b16 %v1028
        %v1317 = vunpack.c.l.b16 %v1029
        %v1318 = vunpack.c.l.b16 %v1030
        %v1319 = vunpack.c.l.b16 %v1031
        %v1320 = vunpack.c.l.b16 %v1032
        %v1321 = vunpack.c.l.b16 %v1033
        %v1322 = vunpack.c.l.b16 %v1034
        %v1323 = vunpack.c.l.b16 %v1035
        %v1324 = vunpack.c.l.b16 %v1036
        %v1325 = vunpack.c.l.b16 %v1037
        %v1326 = vunpack.c.l.b16 %v1038
        %v1327 = vunpack.c.l.b16 %v1039
        %v1328 = vunpack.c.l.b16 %v1040
        %v1329 = vunpack.c.l.b16 %v1041
        %v1330 = vunpack.c.l.b16 %v1042
        %v1331 = vunpack.c.l.b16 %v1043
        %v1332 = vunpack.c.l.b16 %v1044
        %v1333 = vunpack.c.l.b16 %v1045
        %v1334 = vunpack.c.l.b16 %v1046
        %v1335 = vunpack.c.l.b16 %v1047
        %v1336 = vunpack.c.l.b16 %v1048
        %v1337 = vunpack.c.l.b16 %v1049
        %v1338 = vunpack.c.l.b16 %v1050
        %v1339 = vunpack.c.l.b16 %v1051
        %v1340 = vunpack.c.l.b16 %v1052
        %v1341 = vunpack.c.l.b16 %v1053
        %v1342 = vunpack.c.l.b16 %v1054
        %v1343 = vunpack.c.l.b16 %v1055
        %v1344 = vunpack.c.l.b16 %v1056
        %v1345 = vunpack.c.l.b16 %v1057
        %v1346 = vunpack.c.l.b16 %v1058
        %v1347 = vunpack.c.l.b16 %v1059
        %v1348 = vunpack.c.l.b16 %v1060
        %v1349 = vunpack.c.l.b16 %v1061
        %v1350 = vunpack.c.l.b16 %v1062
        %v1351 = vunpack.c.l.b16 %v1063
        %v1352 = vunpack.c.l.b16 %v1064
        %v1353 = vunpack.c.l.b16 %v1065
        %v1354 = vunpack.c.l.b16 %v1066
        %v1355 = vunpack.c.l.b16 %v1067
        %v1356 = vunpack.c.l.b16 %v1068
        %v1357 = vunpack.c.l.b16 %v1069
        %v1358 = vunpack.c.l.b16 %v1070
        %v1359 = vunpack.c.l.b16 %v1071
        %v1360 = vunpack.c.l.b16 %v1072
        %v1361 = vunpack.c.l.b16 %v1073
        %v1362 = vunpack.c.l.b16 %v1074
        %v1363 = vunpack.c.l.b16 %v1075
        %v1364 = vunpack.c.l.b16 %v1076
        %v1365 = vunpack.c.l.b16 %v1077
        %v1366 = vunpack.c.l.b16 %v1078
        %v1367 = vunpack.c.l.b16 %v1079
        %v1368 = vunpack.c.l.b16 %v1080
        %v1369 = vpack.c.b16 %v1226, %v1225
        %v1370 = vpack.c.b16 %v1228, %v1227
        %v1371 = vpack.c.b16 %v1230, %v1229
        %v1372 = vpack.c.b16 %v1232, %v1231
        %v1373 = vpack.c.b16 %v1234, %v1233
        %v1374 = vpack.c.b16 %v1236, %v1235
        %v1375 = vpack.c.b16 %v1238, %v1237
        %v1376 = vpack.c.b16 %v1240, %v1239
        %v1377 = vpack.c.b16 %v1242, %v1241
        %v1378 = vpack.c.b16 %v1244, %v1243
        %v1379 = vpack.c.b16 %v1246, %v1245
        %v1380 = vpack.c.b16 %v1248, %v1247
        %v1381 = vpack.c.b16 %v1250, %v1249
        %v1382 = vpack.c.b16 %v1252, %v1251
        %v1383 = vpack.c.b16 %v1254, %v1253
        %v1384 = vpack.c.b16 %v1256, %v1255
        %v1385 = vpack.c.b16 %v1258, %v1257
        %v1386 = vpack.c.b16 %v1260, %v1259
        %v1387 = vpack.c.b16 %v1262, %v1261
        %v1388 = vpack.c.b16 %v1264, %v1263
        %v1389 = vpack.c.b16 %v1266, %v1265
        %v1390 = vpack.c.b16 %v1268, %v1267
        %v1391 = vpack.c.b16 %v1270, %v1269
        %v1392 = vpack.c.b16 %v1272, %v1271
        %v1393 = vpack.c.b16 %v1274, %v1273
        %v1394 = vpack.c.b16 %v1276, %v1275
        %v1395 = vpack.c.b16 %v1278, %v1277
        %v1396 = vpack.c.b16 %v1280, %v1279
        %v1397 = vpack.c.b16 %v1282, %v1281
        %v1398 = vpack.c.b16 %v1284, %v1283
        %v1399 = vpack.c.b16 %v1286, %v1285
        %v1400 = vpack.c.b16 %v1288, %v1287
        %v1401 = vpack.c.b16 %v1290, %v1289
        %v1402 = vpack.c.b16 %v1292, %v1291
        %v1403 = vpack.c.b16 %v1294, %v1293
        %v1404 = vpack.c.b16 %v1296, %v1295
        %v1405 = vpack.c.b16 %v1298, %v1297
        %v1406 = vpack.c.b16 %v1300, %v1299
        %v1407 = vpack.c.b16 %v1302, %v1301
        %v1408 = vpack.c.b16 %v1304, %v1303
        %v1409 = vpack.c.b16 %v1306, %v1305
        %v1410 = vpack.c.b16 %v1308, %v1307
        %v1411 = vpack.c.b16 %v1310, %v1309
        %v1412 = vpack.c.b16 %v1312, %v1311
        %v1413 = vpack.c.b16 %v1314, %v1313
        %v1414 = vpack.c.b16 %v1316, %v1315
        %v1415 = vpack.c.b16 %v1318, %v1317
        %v1416 = vpack.c.b16 %v1320, %v1319
        %v1417 = vpack.c.b16 %v1322, %v1321
        %v1418 = vpack.c.b16 %v1324, %v1323
        %v1419 = vpack.c.b16 %v1326, %v1325
        %v1420 = vpack.c.b16 %v1328, %v1327
        %v1421 = vpack.c.b16 %v1330, %v1329
        %v1422 = vpack.c.b16 %v1332, %v1331
        %v1423 = vpack.c.b16 %v1334, %v1333
        %v1424 = vpack.c.b16 %v1336, %v1335
        %v1425 = vpack.c.b16 %v1338, %v1337
        %v1426 = vpack.c.b16 %v1340, %v1339
        %v1427 = vpack.c.b16 %v1342, %v1341
        %v1428 = vpack.c.b16 %v1344, %v1343
        %v1429 = vpack.c.b16 %v1346, %v1345
        %v1430 = vpack.c.b16 %v1348, %v1347
        %v1431 = vpack.c.b16 %v1350, %v1349
        %v1432 = vpack.c.b16 %v1352, %v1351
        %v1433 = vpack.c.b16 %v1354, %v1353
        %v1434 = vpack.c.b16 %v1356, %v1355
        %v1435 = vpack.c.b16 %v1358, %v1357
        %v1436 = vpack.c.b16 %v1360, %v1359
        %v1437 = vpack.c.b16 %v1362, %v1361
        %v1438 = vpack.c.b16 %v1364, %v1363
        %v1439 = vpack.c.b16 %v1366, %v1365
        %v1440 = vpack.c.b16 %v1368, %v1367
        %1513 = vmatprep.subr.bf16.mxu0 0
        %1514 = vmatpush1.bf16.msra.mxu0 %v1376
        %1515 = vmatprep.subr.bf16.mxu0 0
        %1516 = vmatpush1.bf16.msra.mxu0 %v1375
        %1517 = vmatprep.subr.bf16.mxu0 0
        %1518 = vmatpush1.bf16.msra.mxu0 %v1374
        %1519 = vmatprep.subr.bf16.mxu0 0
        %1520 = vmatpush1.bf16.msra.mxu0 %v1373
        %1521 = vmatprep.subr.bf16.mxu0 0
        %1522 = vmatpush1.bf16.msra.mxu0 %v1372
        %1523 = vmatprep.subr.bf16.mxu0 0
        %1524 = vmatpush1.bf16.msra.mxu0 %v1371
        %1525 = vmatprep.subr.bf16.mxu0 0
        %1526 = vmatpush1.bf16.msra.mxu0 %v1370
        %1527 = vmatprep.subr.bf16.mxu0 0
        %1528 = vmatpush1.bf16.msra.mxu0 %v1369
        %1529 = vmatprep.subr.bf16.mxu0 0
        %1530 = vmatpush2.bf16.msra.mxu0 %v1384
        %1531 = vmatprep.subr.bf16.mxu0 0
        %1532 = vmatpush2.bf16.msra.mxu0 %v1383
        %1533 = vmatprep.subr.bf16.mxu0 0
        %1534 = vmatpush2.bf16.msra.mxu0 %v1382
        %1535 = vmatprep.subr.bf16.mxu0 0
        %1536 = vmatpush2.bf16.msra.mxu0 %v1381
        %1537 = vmatprep.subr.bf16.mxu0 0
        %1538 = vmatpush2.bf16.msra.mxu0 %v1380
        %1539 = vmatprep.subr.bf16.mxu0 0
        %1540 = vmatpush2.bf16.msra.mxu0 %v1379
        %1541 = vmatprep.subr.bf16.mxu0 0
        %1542 = vmatpush2.bf16.msra.mxu0 %v1378
        %1543 = vmatprep.subr.bf16.mxu0 0
        %1544 = vmatpush2.bf16.msra.mxu0 %v1377
        %1545 = vmatprep.mubr.bf16.mxu0 %v794
        %1546 = vmatmul.mubr.bf16.gmra.mxu0 %v793
        %v1547 = vpop.f32.mrf.mxu0
        %v1548 = vadd.f32 0.0, %v1547
        %v1549 = vpop.f32.mrf.mxu0
        %v1550 = vpop.f32.mrf.mxu0
        %v1551 = vadd.f32 0.0, %v1550
        %v1552 = vpop.f32.mrf.mxu0
        %1553 = vmatprep.mubr.bf16.mxu0 %v803
        %1554 = vmatmul.mubr.bf16.gmra.mxu0 %v802
        %v1555 = vpop.f32.mrf.mxu0
        %v1556 = vadd.f32 0.0, %v1555
        %v1557 = vpop.f32.mrf.mxu0
        %v1558 = vpop.f32.mrf.mxu0
        %v1559 = vadd.f32 0.0, %v1558
        %v1560 = vpop.f32.mrf.mxu0
        %1561 = vmatprep.mubr.bf16.mxu0 %v812
        %1562 = vmatmul.mubr.bf16.gmra.mxu0 %v811
        %v1563 = vpop.f32.mrf.mxu0
        %v1564 = vadd.f32 0.0, %v1563
        %v1565 = vpop.f32.mrf.mxu0
        %v1566 = vpop.f32.mrf.mxu0
        %v1567 = vadd.f32 0.0, %v1566
        %v1568 = vpop.f32.mrf.mxu0
        %1569 = vmatprep.mubr.bf16.mxu0 %v821
        %1570 = vmatmul.mubr.bf16.gmra.mxu0 %v820
        %v1571 = vpop.f32.mrf.mxu0
        %v1572 = vadd.f32 0.0, %v1571
        %v1573 = vpop.f32.mrf.mxu0
        %v1574 = vpop.f32.mrf.mxu0
        %v1575 = vadd.f32 0.0, %v1574
        %v1576 = vpop.f32.mrf.mxu0
        %1577 = vmatprep.mubr.bf16.mxu0 %v830
        %1578 = vmatmul.mubr.bf16.gmra.mxu0 %v829
        %v1579 = vpop.f32.mrf.mxu0
        %v1580 = vadd.f32 0.0, %v1579
        %v1581 = vpop.f32.mrf.mxu0
        %v1582 = vpop.f32.mrf.mxu0
        %v1583 = vadd.f32 0.0, %v1582
        %v1584 = vpop.f32.mrf.mxu0
        %1585 = vmatprep.mubr.bf16.mxu0 %v839
        %1586 = vmatmul.mubr.bf16.gmra.mxu0 %v838
        %v1587 = vpop.f32.mrf.mxu0
        %v1588 = vadd.f32 0.0, %v1587
        %v1589 = vpop.f32.mrf.mxu0
        %v1590 = vpop.f32.mrf.mxu0
        %v1591 = vadd.f32 0.0, %v1590
        %v1592 = vpop.f32.mrf.mxu0
        %1593 = vmatprep.mubr.bf16.mxu0 %v848
        %1594 = vmatmul.mubr.bf16.gmra.mxu0 %v847
        %v1595 = vpop.f32.mrf.mxu0
        %v1596 = vadd.f32 0.0, %v1595
        %v1597 = vpop.f32.mrf.mxu0
        %v1598 = vpop.f32.mrf.mxu0
        %v1599 = vadd.f32 0.0, %v1598
        %v1600 = vpop.f32.mrf.mxu0
        %1601 = vmatprep.mubr.bf16.mxu0 %v857
        %1602 = vmatmul.mubr.bf16.gmra.mxu0 %v856
        %v1603 = vpop.f32.mrf.mxu0
        %v1604 = vadd.f32 0.0, %v1603
        %v1605 = vpop.f32.mrf.mxu0
        %v1606 = vpop.f32.mrf.mxu0
        %v1607 = vadd.f32 0.0, %v1606
        %v1608 = vpop.f32.mrf.mxu0
        %1609 = vmatprep.mubr.bf16.mxu0 %v866
        %1610 = vmatmul.mubr.bf16.gmra.mxu0 %v865
        %v1611 = vpop.f32.mrf.mxu0
        %v1612 = vadd.f32 0.0, %v1611
        %v1613 = vpop.f32.mrf.mxu0
        %v1614 = vpop.f32.mrf.mxu0
        %v1615 = vadd.f32 0.0, %v1614
        %v1616 = vpop.f32.mrf.mxu0
        %1617 = vmatprep.mubr.bf16.mxu0 %v875
        %1618 = vmatmul.mubr.bf16.gmra.mxu0 %v874
        %v1619 = vpop.f32.mrf.mxu0
        %v1620 = vadd.f32 0.0, %v1619
        %v1621 = vpop.f32.mrf.mxu0
        %v1622 = vpop.f32.mrf.mxu0
        %v1623 = vadd.f32 0.0, %v1622
        %v1624 = vpop.f32.mrf.mxu0
        %1625 = vmatprep.mubr.bf16.mxu0 %v884
        %1626 = vmatmul.mubr.bf16.gmra.mxu0 %v883
        %v1627 = vpop.f32.mrf.mxu0
        %v1628 = vadd.f32 0.0, %v1627
        %v1629 = vpop.f32.mrf.mxu0
        %v1630 = vpop.f32.mrf.mxu0
        %v1631 = vadd.f32 0.0, %v1630
        %v1632 = vpop.f32.mrf.mxu0
        %1633 = vmatprep.mubr.bf16.mxu0 %v893
        %1634 = vmatmul.mubr.bf16.gmra.mxu0 %v892
        %v1635 = vpop.f32.mrf.mxu0
        %v1636 = vadd.f32 0.0, %v1635
        %v1637 = vpop.f32.mrf.mxu0
        %v1638 = vpop.f32.mrf.mxu0
        %v1639 = vadd.f32 0.0, %v1638
        %v1640 = vpop.f32.mrf.mxu0
        %1641 = vmatprep.mubr.bf16.mxu0 %v902
        %1642 = vmatmul.mubr.bf16.gmra.mxu0 %v901
        %v1643 = vpop.f32.mrf.mxu0
        %v1644 = vadd.f32 0.0, %v1643
        %v1645 = vpop.f32.mrf.mxu0
        %v1646 = vpop.f32.mrf.mxu0
        %v1647 = vadd.f32 0.0, %v1646
        %v1648 = vpop.f32.mrf.mxu0
        %1649 = vmatprep.mubr.bf16.mxu0 %v911
        %1650 = vmatmul.mubr.bf16.gmra.mxu0 %v910
        %v1651 = vpop.f32.mrf.mxu0
        %v1652 = vadd.f32 0.0, %v1651
        %v1653 = vpop.f32.mrf.mxu0
        %v1654 = vpop.f32.mrf.mxu0
        %v1655 = vadd.f32 0.0, %v1654
        %v1656 = vpop.f32.mrf.mxu0
        %1657 = vmatprep.mubr.bf16.mxu0 %v920
        %1658 = vmatmul.mubr.bf16.gmra.mxu0 %v919
        %v1659 = vpop.f32.mrf.mxu0
        %v1660 = vadd.f32 0.0, %v1659
        %v1661 = vpop.f32.mrf.mxu0
        %v1662 = vpop.f32.mrf.mxu0
        %v1663 = vadd.f32 0.0, %v1662
        %v1664 = vpop.f32.mrf.mxu0
        %1665 = vmatprep.mubr.bf16.mxu0 %v929
        %1666 = vmatmul.mubr.bf16.gmra.mxu0 %v928
        %v1667 = vpop.f32.mrf.mxu0
        %v1668 = vadd.f32 0.0, %v1667
        %v1669 = vpop.f32.mrf.mxu0
        %v1670 = vpop.f32.mrf.mxu0
        %v1671 = vadd.f32 0.0, %v1670
        %v1672 = vpop.f32.mrf.mxu0
        %1673 = vdwg.mxu0
        %1674 = vmatprep.subr.bf16.mxu0 0
        %1675 = vmatpush1.bf16.msra.mxu0 %v1392
        %1676 = vmatprep.subr.bf16.mxu0 0
        %1677 = vmatpush1.bf16.msra.mxu0 %v1391
        %1678 = vmatprep.subr.bf16.mxu0 0
        %1679 = vmatpush1.bf16.msra.mxu0 %v1390
        %1680 = vmatprep.subr.bf16.mxu0 0
        %1681 = vmatpush1.bf16.msra.mxu0 %v1389
        %1682 = vmatprep.subr.bf16.mxu0 0
        %1683 = vmatpush1.bf16.msra.mxu0 %v1388
        %1684 = vmatprep.subr.bf16.mxu0 0
        %1685 = vmatpush1.bf16.msra.mxu0 %v1387
        %1686 = vmatprep.subr.bf16.mxu0 0
        %1687 = vmatpush1.bf16.msra.mxu0 %v1386
        %1688 = vmatprep.subr.bf16.mxu0 0
        %1689 = vmatpush1.bf16.msra.mxu0 %v1385
        %1690 = vmatprep.subr.bf16.mxu0 0
        %1691 = vmatpush2.bf16.msra.mxu0 %v1400
        %1692 = vmatprep.subr.bf16.mxu0 0
        %1693 = vmatpush2.bf16.msra.mxu0 %v1399
        %1694 = vmatprep.subr.bf16.mxu0 0
        %1695 = vmatpush2.bf16.msra.mxu0 %v1398
        %1696 = vmatprep.subr.bf16.mxu0 0
        %1697 = vmatpush2.bf16.msra.mxu0 %v1397
        %1698 = vmatprep.subr.bf16.mxu0 0
        %1699 = vmatpush2.bf16.msra.mxu0 %v1396
        %1700 = vmatprep.subr.bf16.mxu0 0
        %1701 = vmatpush2.bf16.msra.mxu0 %v1395
        %1702 = vmatprep.subr.bf16.mxu0 0
        %1703 = vmatpush2.bf16.msra.mxu0 %v1394
        %1704 = vmatprep.subr.bf16.mxu0 0
        %1705 = vmatpush2.bf16.msra.mxu0 %v1393
        %1706 = vmatprep.mubr.bf16.mxu0 %v796
        %1707 = vmatmul.mubr.bf16.gmra.mxu0 %v795
        %v1708 = vpop.f32.mrf.mxu0
        %v1709 = vadd.f32 %v1548, %v1708
        %v1710 = vpop.f32.mrf.mxu0
        %v1711 = vpop.f32.mrf.mxu0
        %v1712 = vadd.f32 %v1551, %v1711
        %v1713 = vpop.f32.mrf.mxu0
        %1714 = vmatprep.mubr.bf16.mxu0 %v805
        %1715 = vmatmul.mubr.bf16.gmra.mxu0 %v804
        %v1716 = vpop.f32.mrf.mxu0
        %v1717 = vadd.f32 %v1556, %v1716
        %v1718 = vpop.f32.mrf.mxu0
        %v1719 = vpop.f32.mrf.mxu0
        %v1720 = vadd.f32 %v1559, %v1719
        %v1721 = vpop.f32.mrf.mxu0
        %1722 = vmatprep.mubr.bf16.mxu0 %v814
        %1723 = vmatmul.mubr.bf16.gmra.mxu0 %v813
        %v1724 = vpop.f32.mrf.mxu0
        %v1725 = vadd.f32 %v1564, %v1724
        %v1726 = vpop.f32.mrf.mxu0
        %v1727 = vpop.f32.mrf.mxu0
        %v1728 = vadd.f32 %v1567, %v1727
        %v1729 = vpop.f32.mrf.mxu0
        %1730 = vmatprep.mubr.bf16.mxu0 %v823
        %1731 = vmatmul.mubr.bf16.gmra.mxu0 %v822
        %v1732 = vpop.f32.mrf.mxu0
        %v1733 = vadd.f32 %v1572, %v1732
        %v1734 = vpop.f32.mrf.mxu0
        %v1735 = vpop.f32.mrf.mxu0
        %v1736 = vadd.f32 %v1575, %v1735
        %v1737 = vpop.f32.mrf.mxu0
        %1738 = vmatprep.mubr.bf16.mxu0 %v832
        %1739 = vmatmul.mubr.bf16.gmra.mxu0 %v831
        %v1740 = vpop.f32.mrf.mxu0
        %v1741 = vadd.f32 %v1580, %v1740
        %v1742 = vpop.f32.mrf.mxu0
        %v1743 = vpop.f32.mrf.mxu0
        %v1744 = vadd.f32 %v1583, %v1743
        %v1745 = vpop.f32.mrf.mxu0
        %1746 = vmatprep.mubr.bf16.mxu0 %v841
        %1747 = vmatmul.mubr.bf16.gmra.mxu0 %v840
        %v1748 = vpop.f32.mrf.mxu0
        %v1749 = vadd.f32 %v1588, %v1748
        %v1750 = vpop.f32.mrf.mxu0
        %v1751 = vpop.f32.mrf.mxu0
        %v1752 = vadd.f32 %v1591, %v1751
        %v1753 = vpop.f32.mrf.mxu0
        %1754 = vmatprep.mubr.bf16.mxu0 %v850
        %1755 = vmatmul.mubr.bf16.gmra.mxu0 %v849
        %v1756 = vpop.f32.mrf.mxu0
        %v1757 = vadd.f32 %v1596, %v1756
        %v1758 = vpop.f32.mrf.mxu0
        %v1759 = vpop.f32.mrf.mxu0
        %v1760 = vadd.f32 %v1599, %v1759
        %v1761 = vpop.f32.mrf.mxu0
        %1762 = vmatprep.mubr.bf16.mxu0 %v859
        %1763 = vmatmul.mubr.bf16.gmra.mxu0 %v858
        %v1764 = vpop.f32.mrf.mxu0
        %v1765 = vadd.f32 %v1604, %v1764
        %v1766 = vpop.f32.mrf.mxu0
        %v1767 = vpop.f32.mrf.mxu0
        %v1768 = vadd.f32 %v1607, %v1767
        %v1769 = vpop.f32.mrf.mxu0
        %1770 = vmatprep.mubr.bf16.mxu0 %v868
        %1771 = vmatmul.mubr.bf16.gmra.mxu0 %v867
        %v1772 = vpop.f32.mrf.mxu0
        %v1773 = vadd.f32 %v1612, %v1772
        %v1774 = vpop.f32.mrf.mxu0
        %v1775 = vpop.f32.mrf.mxu0
        %v1776 = vadd.f32 %v1615, %v1775
        %v1777 = vpop.f32.mrf.mxu0
        %1778 = vmatprep.mubr.bf16.mxu0 %v877
        %1779 = vmatmul.mubr.bf16.gmra.mxu0 %v876
        %v1780 = vpop.f32.mrf.mxu0
        %v1781 = vadd.f32 %v1620, %v1780
        %v1782 = vpop.f32.mrf.mxu0
        %v1783 = vpop.f32.mrf.mxu0
        %v1784 = vadd.f32 %v1623, %v1783
        %v1785 = vpop.f32.mrf.mxu0
        %1786 = vmatprep.mubr.bf16.mxu0 %v886
        %1787 = vmatmul.mubr.bf16.gmra.mxu0 %v885
        %v1788 = vpop.f32.mrf.mxu0
        %v1789 = vadd.f32 %v1628, %v1788
        %v1790 = vpop.f32.mrf.mxu0
        %v1791 = vpop.f32.mrf.mxu0
        %v1792 = vadd.f32 %v1631, %v1791
        %v1793 = vpop.f32.mrf.mxu0
        %1794 = vmatprep.mubr.bf16.mxu0 %v895
        %1795 = vmatmul.mubr.bf16.gmra.mxu0 %v894
        %v1796 = vpop.f32.mrf.mxu0
        %v1797 = vadd.f32 %v1636, %v1796
        %v1798 = vpop.f32.mrf.mxu0
        %v1799 = vpop.f32.mrf.mxu0
        %v1800 = vadd.f32 %v1639, %v1799
        %v1801 = vpop.f32.mrf.mxu0
        %1802 = vmatprep.mubr.bf16.mxu0 %v904
        %1803 = vmatmul.mubr.bf16.gmra.mxu0 %v903
        %v1804 = vpop.f32.mrf.mxu0
        %v1805 = vadd.f32 %v1644, %v1804
        %v1806 = vpop.f32.mrf.mxu0
        %v1807 = vpop.f32.mrf.mxu0
        %v1808 = vadd.f32 %v1647, %v1807
        %v1809 = vpop.f32.mrf.mxu0
        %1810 = vmatprep.mubr.bf16.mxu0 %v913
        %1811 = vmatmul.mubr.bf16.gmra.mxu0 %v912
        %v1812 = vpop.f32.mrf.mxu0
        %v1813 = vadd.f32 %v1652, %v1812
        %v1814 = vpop.f32.mrf.mxu0
        %v1815 = vpop.f32.mrf.mxu0
        %v1816 = vadd.f32 %v1655, %v1815
        %v1817 = vpop.f32.mrf.mxu0
        %1818 = vmatprep.mubr.bf16.mxu0 %v922
        %1819 = vmatmul.mubr.bf16.gmra.mxu0 %v921
        %v1820 = vpop.f32.mrf.mxu0
        %v1821 = vadd.f32 %v1660, %v1820
        %v1822 = vpop.f32.mrf.mxu0
        %v1823 = vpop.f32.mrf.mxu0
        %v1824 = vadd.f32 %v1663, %v1823
        %v1825 = vpop.f32.mrf.mxu0
        %1826 = vmatprep.mubr.bf16.mxu0 %v931
        %1827 = vmatmul.mubr.bf16.gmra.mxu0 %v930
        %v1828 = vpop.f32.mrf.mxu0
        %v1829 = vadd.f32 %v1668, %v1828
        %v1830 = vpop.f32.mrf.mxu0
        %v1831 = vpop.f32.mrf.mxu0
        %v1832 = vadd.f32 %v1671, %v1831
        %v1833 = vpop.f32.mrf.mxu0
        %1834 = vdwg.mxu0
        %1835 = vmatprep.subr.bf16.mxu0 0
        %1836 = vmatpush1.bf16.msra.mxu0 %v1408
        %1837 = vmatprep.subr.bf16.mxu0 0
        %1838 = vmatpush1.bf16.msra.mxu0 %v1407
        %1839 = vmatprep.subr.bf16.mxu0 0
        %1840 = vmatpush1.bf16.msra.mxu0 %v1406
        %1841 = vmatprep.subr.bf16.mxu0 0
        %1842 = vmatpush1.bf16.msra.mxu0 %v1405
        %1843 = vmatprep.subr.bf16.mxu0 0
        %1844 = vmatpush1.bf16.msra.mxu0 %v1404
        %1845 = vmatprep.subr.bf16.mxu0 0
        %1846 = vmatpush1.bf16.msra.mxu0 %v1403
        %1847 = vmatprep.subr.bf16.mxu0 0
        %1848 = vmatpush1.bf16.msra.mxu0 %v1402
        %1849 = vmatprep.subr.bf16.mxu0 0
        %1850 = vmatpush1.bf16.msra.mxu0 %v1401
        %1851 = vmatprep.subr.bf16.mxu0 0
        %1852 = vmatpush2.bf16.msra.mxu0 %v1416
        %1853 = vmatprep.subr.bf16.mxu0 0
        %1854 = vmatpush2.bf16.msra.mxu0 %v1415
        %1855 = vmatprep.subr.bf16.mxu0 0
        %1856 = vmatpush2.bf16.msra.mxu0 %v1414
        %1857 = vmatprep.subr.bf16.mxu0 0
        %1858 = vmatpush2.bf16.msra.mxu0 %v1413
        %1859 = vmatprep.subr.bf16.mxu0 0
        %1860 = vmatpush2.bf16.msra.mxu0 %v1412
        %1861 = vmatprep.subr.bf16.mxu0 0
        %1862 = vmatpush2.bf16.msra.mxu0 %v1411
        %1863 = vmatprep.subr.bf16.mxu0 0
        %1864 = vmatpush2.bf16.msra.mxu0 %v1410
        %1865 = vmatprep.subr.bf16.mxu0 0
        %1866 = vmatpush2.bf16.msra.mxu0 %v1409
        %1867 = vmatprep.mubr.bf16.mxu0 %v798
        %1868 = vmatmul.mubr.bf16.gmra.mxu0 %v797
        %v1869 = vpop.f32.mrf.mxu0
        %v1870 = vadd.f32 %v1709, %v1869
        %v1871 = vpop.f32.mrf.mxu0
        %v1872 = vpop.f32.mrf.mxu0
        %v1873 = vadd.f32 %v1712, %v1872
        %v1874 = vpop.f32.mrf.mxu0
        %1875 = vmatprep.mubr.bf16.mxu0 %v807
        %1876 = vmatmul.mubr.bf16.gmra.mxu0 %v806
        %v1877 = vpop.f32.mrf.mxu0
        %v1878 = vadd.f32 %v1717, %v1877
        %v1879 = vpop.f32.mrf.mxu0
        %v1880 = vpop.f32.mrf.mxu0
        %v1881 = vadd.f32 %v1720, %v1880
        %v1882 = vpop.f32.mrf.mxu0
        %1883 = vmatprep.mubr.bf16.mxu0 %v816
        %1884 = vmatmul.mubr.bf16.gmra.mxu0 %v815
        %v1885 = vpop.f32.mrf.mxu0
        %v1886 = vadd.f32 %v1725, %v1885
        %v1887 = vpop.f32.mrf.mxu0
        %v1888 = vpop.f32.mrf.mxu0
        %v1889 = vadd.f32 %v1728, %v1888
        %v1890 = vpop.f32.mrf.mxu0
        %1891 = vmatprep.mubr.bf16.mxu0 %v825
        %1892 = vmatmul.mubr.bf16.gmra.mxu0 %v824
        %v1893 = vpop.f32.mrf.mxu0
        %v1894 = vadd.f32 %v1733, %v1893
        %v1895 = vpop.f32.mrf.mxu0
        %v1896 = vpop.f32.mrf.mxu0
        %v1897 = vadd.f32 %v1736, %v1896
        %v1898 = vpop.f32.mrf.mxu0
        %1899 = vmatprep.mubr.bf16.mxu0 %v834
        %1900 = vmatmul.mubr.bf16.gmra.mxu0 %v833
        %v1901 = vpop.f32.mrf.mxu0
        %v1902 = vadd.f32 %v1741, %v1901
        %v1903 = vpop.f32.mrf.mxu0
        %v1904 = vpop.f32.mrf.mxu0
        %v1905 = vadd.f32 %v1744, %v1904
        %v1906 = vpop.f32.mrf.mxu0
        %1907 = vmatprep.mubr.bf16.mxu0 %v843
        %1908 = vmatmul.mubr.bf16.gmra.mxu0 %v842
        %v1909 = vpop.f32.mrf.mxu0
        %v1910 = vadd.f32 %v1749, %v1909
        %v1911 = vpop.f32.mrf.mxu0
        %v1912 = vpop.f32.mrf.mxu0
        %v1913 = vadd.f32 %v1752, %v1912
        %v1914 = vpop.f32.mrf.mxu0
        %1915 = vmatprep.mubr.bf16.mxu0 %v852
        %1916 = vmatmul.mubr.bf16.gmra.mxu0 %v851
        %v1917 = vpop.f32.mrf.mxu0
        %v1918 = vadd.f32 %v1757, %v1917
        %v1919 = vpop.f32.mrf.mxu0
        %v1920 = vpop.f32.mrf.mxu0
        %v1921 = vadd.f32 %v1760, %v1920
        %v1922 = vpop.f32.mrf.mxu0
        %1923 = vmatprep.mubr.bf16.mxu0 %v861
        %1924 = vmatmul.mubr.bf16.gmra.mxu0 %v860
        %v1925 = vpop.f32.mrf.mxu0
        %v1926 = vadd.f32 %v1765, %v1925
        %v1927 = vpop.f32.mrf.mxu0
        %v1928 = vpop.f32.mrf.mxu0
        %v1929 = vadd.f32 %v1768, %v1928
        %v1930 = vpop.f32.mrf.mxu0
        %1931 = vmatprep.mubr.bf16.mxu0 %v870
        %1932 = vmatmul.mubr.bf16.gmra.mxu0 %v869
        %v1933 = vpop.f32.mrf.mxu0
        %v1934 = vadd.f32 %v1773, %v1933
        %v1935 = vpop.f32.mrf.mxu0
        %v1936 = vpop.f32.mrf.mxu0
        %v1937 = vadd.f32 %v1776, %v1936
        %v1938 = vpop.f32.mrf.mxu0
        %1939 = vmatprep.mubr.bf16.mxu0 %v879
        %1940 = vmatmul.mubr.bf16.gmra.mxu0 %v878
        %v1941 = vpop.f32.mrf.mxu0
        %v1942 = vadd.f32 %v1781, %v1941
        %v1943 = vpop.f32.mrf.mxu0
        %v1944 = vpop.f32.mrf.mxu0
        %v1945 = vadd.f32 %v1784, %v1944
        %v1946 = vpop.f32.mrf.mxu0
        %1947 = vmatprep.mubr.bf16.mxu0 %v888
        %1948 = vmatmul.mubr.bf16.gmra.mxu0 %v887
        %v1949 = vpop.f32.mrf.mxu0
        %v1950 = vadd.f32 %v1789, %v1949
        %v1951 = vpop.f32.mrf.mxu0
        %v1952 = vpop.f32.mrf.mxu0
        %v1953 = vadd.f32 %v1792, %v1952
        %v1954 = vpop.f32.mrf.mxu0
        %1955 = vmatprep.mubr.bf16.mxu0 %v897
        %1956 = vmatmul.mubr.bf16.gmra.mxu0 %v896
        %v1957 = vpop.f32.mrf.mxu0
        %v1958 = vadd.f32 %v1797, %v1957
        %v1959 = vpop.f32.mrf.mxu0
        %v1960 = vpop.f32.mrf.mxu0
        %v1961 = vadd.f32 %v1800, %v1960
        %v1962 = vpop.f32.mrf.mxu0
        %1963 = vmatprep.mubr.bf16.mxu0 %v906
        %1964 = vmatmul.mubr.bf16.gmra.mxu0 %v905
        %v1965 = vpop.f32.mrf.mxu0
        %v1966 = vadd.f32 %v1805, %v1965
        %v1967 = vpop.f32.mrf.mxu0
        %v1968 = vpop.f32.mrf.mxu0
        %v1969 = vadd.f32 %v1808, %v1968
        %v1970 = vpop.f32.mrf.mxu0
        %1971 = vmatprep.mubr.bf16.mxu0 %v915
        %1972 = vmatmul.mubr.bf16.gmra.mxu0 %v914
        %v1973 = vpop.f32.mrf.mxu0
        %v1974 = vadd.f32 %v1813, %v1973
        %v1975 = vpop.f32.mrf.mxu0
        %v1976 = vpop.f32.mrf.mxu0
        %v1977 = vadd.f32 %v1816, %v1976
        %v1978 = vpop.f32.mrf.mxu0
        %1979 = vmatprep.mubr.bf16.mxu0 %v924
        %1980 = vmatmul.mubr.bf16.gmra.mxu0 %v923
        %v1981 = vpop.f32.mrf.mxu0
        %v1982 = vadd.f32 %v1821, %v1981
        %v1983 = vpop.f32.mrf.mxu0
        %v1984 = vpop.f32.mrf.mxu0
        %v1985 = vadd.f32 %v1824, %v1984
        %v1986 = vpop.f32.mrf.mxu0
        %1987 = vmatprep.mubr.bf16.mxu0 %v933
        %1988 = vmatmul.mubr.bf16.gmra.mxu0 %v932
        %v1989 = vpop.f32.mrf.mxu0
        %v1990 = vadd.f32 %v1829, %v1989
        %v1991 = vpop.f32.mrf.mxu0
        %v1992 = vpop.f32.mrf.mxu0
        %v1993 = vadd.f32 %v1832, %v1992
        %v1994 = vpop.f32.mrf.mxu0
        %1995 = vdwg.mxu0
        %1996 = vmatprep.subr.bf16.mxu0 0
        %1997 = vmatpush1.bf16.msra.mxu0 %v1424
        %1998 = vmatprep.subr.bf16.mxu0 0
        %1999 = vmatpush1.bf16.msra.mxu0 %v1423
        %2000 = vmatprep.subr.bf16.mxu0 0
        %2001 = vmatpush1.bf16.msra.mxu0 %v1422
        %2002 = vmatprep.subr.bf16.mxu0 0
        %2003 = vmatpush1.bf16.msra.mxu0 %v1421
        %2004 = vmatprep.subr.bf16.mxu0 0
        %2005 = vmatpush1.bf16.msra.mxu0 %v1420
        %2006 = vmatprep.subr.bf16.mxu0 0
        %2007 = vmatpush1.bf16.msra.mxu0 %v1419
        %2008 = vmatprep.subr.bf16.mxu0 0
        %2009 = vmatpush1.bf16.msra.mxu0 %v1418
        %2010 = vmatprep.subr.bf16.mxu0 0
        %2011 = vmatpush1.bf16.msra.mxu0 %v1417
        %2012 = vmatprep.subr.bf16.mxu0 0
        %2013 = vmatpush2.bf16.msra.mxu0 %v1432
        %2014 = vmatprep.subr.bf16.mxu0 0
        %2015 = vmatpush2.bf16.msra.mxu0 %v1431
        %2016 = vmatprep.subr.bf16.mxu0 0
        %2017 = vmatpush2.bf16.msra.mxu0 %v1430
        %2018 = vmatprep.subr.bf16.mxu0 0
        %2019 = vmatpush2.bf16.msra.mxu0 %v1429
        %2020 = vmatprep.subr.bf16.mxu0 0
        %2021 = vmatpush2.bf16.msra.mxu0 %v1428
        %2022 = vmatprep.subr.bf16.mxu0 0
        %2023 = vmatpush2.bf16.msra.mxu0 %v1427
        %2024 = vmatprep.subr.bf16.mxu0 0
        %2025 = vmatpush2.bf16.msra.mxu0 %v1426
        %2026 = vmatprep.subr.bf16.mxu0 0
        %2027 = vmatpush2.bf16.msra.mxu0 %v1425
        %2028 = vmatprep.mubr.bf16.mxu0 %v800
        %2029 = vmatmul.mubr.bf16.gmra.mxu0 %v799
        %v2030 = vpop.f32.mrf.mxu0
        %v2031 = vadd.f32 %v1870, %v2030
        %v2032 = vpop.f32.mrf.mxu0
        %v2033 = vpop.f32.mrf.mxu0
        %v2034 = vadd.f32 %v1873, %v2033
        %v2035 = vpop.f32.mrf.mxu0
        %2036 = vmatprep.mubr.bf16.mxu0 %v809
        %2037 = vmatmul.mubr.bf16.gmra.mxu0 %v808
        %v2038 = vpop.f32.mrf.mxu0
        %v2039 = vadd.f32 %v1878, %v2038
        %v2040 = vpop.f32.mrf.mxu0
        %v2041 = vpop.f32.mrf.mxu0
        %v2042 = vadd.f32 %v1881, %v2041
        %v2043 = vpop.f32.mrf.mxu0
        %2044 = vmatprep.mubr.bf16.mxu0 %v818
        %2045 = vmatmul.mubr.bf16.gmra.mxu0 %v817
        %v2046 = vpop.f32.mrf.mxu0
        %v2047 = vadd.f32 %v1886, %v2046
        %v2048 = vpop.f32.mrf.mxu0
        %v2049 = vpop.f32.mrf.mxu0
        %v2050 = vadd.f32 %v1889, %v2049
        %v2051 = vpop.f32.mrf.mxu0
        %2052 = vmatprep.mubr.bf16.mxu0 %v827
        %2053 = vmatmul.mubr.bf16.gmra.mxu0 %v826
        %v2054 = vpop.f32.mrf.mxu0
        %v2055 = vadd.f32 %v1894, %v2054
        %v2056 = vpop.f32.mrf.mxu0
        %v2057 = vpop.f32.mrf.mxu0
        %v2058 = vadd.f32 %v1897, %v2057
        %v2059 = vpop.f32.mrf.mxu0
        %2060 = vmatprep.mubr.bf16.mxu0 %v836
        %2061 = vmatmul.mubr.bf16.gmra.mxu0 %v835
        %v2062 = vpop.f32.mrf.mxu0
        %v2063 = vadd.f32 %v1902, %v2062
        %v2064 = vpop.f32.mrf.mxu0
        %v2065 = vpop.f32.mrf.mxu0
        %v2066 = vadd.f32 %v1905, %v2065
        %v2067 = vpop.f32.mrf.mxu0
        %2068 = vmatprep.mubr.bf16.mxu0 %v845
        %2069 = vmatmul.mubr.bf16.gmra.mxu0 %v844
        %v2070 = vpop.f32.mrf.mxu0
        %v2071 = vadd.f32 %v1910, %v2070
        %v2072 = vpop.f32.mrf.mxu0
        %v2073 = vpop.f32.mrf.mxu0
        %v2074 = vadd.f32 %v1913, %v2073
        %v2075 = vpop.f32.mrf.mxu0
        %2076 = vmatprep.mubr.bf16.mxu0 %v854
        %2077 = vmatmul.mubr.bf16.gmra.mxu0 %v853
        %v2078 = vpop.f32.mrf.mxu0
        %v2079 = vadd.f32 %v1918, %v2078
        %v2080 = vpop.f32.mrf.mxu0
        %v2081 = vpop.f32.mrf.mxu0
        %v2082 = vadd.f32 %v1921, %v2081
        %v2083 = vpop.f32.mrf.mxu0
        %2084 = vmatprep.mubr.bf16.mxu0 %v863
        %2085 = vmatmul.mubr.bf16.gmra.mxu0 %v862
        %v2086 = vpop.f32.mrf.mxu0
        %v2087 = vadd.f32 %v1926, %v2086
        %v2088 = vpop.f32.mrf.mxu0
        %v2089 = vpop.f32.mrf.mxu0
        %v2090 = vadd.f32 %v1929, %v2089
        %v2091 = vpop.f32.mrf.mxu0
        %2092 = vmatprep.mubr.bf16.mxu0 %v872
        %2093 = vmatmul.mubr.bf16.gmra.mxu0 %v871
        %v2094 = vpop.f32.mrf.mxu0
        %v2095 = vadd.f32 %v1934, %v2094
        %v2096 = vpop.f32.mrf.mxu0
        %v2097 = vpop.f32.mrf.mxu0
        %v2098 = vadd.f32 %v1937, %v2097
        %v2099 = vpop.f32.mrf.mxu0
        %2100 = vmatprep.mubr.bf16.mxu0 %v881
        %2101 = vmatmul.mubr.bf16.gmra.mxu0 %v880
        %v2102 = vpop.f32.mrf.mxu0
        %v2103 = vadd.f32 %v1942, %v2102
        %v2104 = vpop.f32.mrf.mxu0
        %v2105 = vpop.f32.mrf.mxu0
        %v2106 = vadd.f32 %v1945, %v2105
        %v2107 = vpop.f32.mrf.mxu0
        %2108 = vmatprep.mubr.bf16.mxu0 %v890
        %2109 = vmatmul.mubr.bf16.gmra.mxu0 %v889
        %v2110 = vpop.f32.mrf.mxu0
        %v2111 = vadd.f32 %v1950, %v2110
        %v2112 = vpop.f32.mrf.mxu0
        %v2113 = vpop.f32.mrf.mxu0
        %v2114 = vadd.f32 %v1953, %v2113
        %v2115 = vpop.f32.mrf.mxu0
        %2116 = vmatprep.mubr.bf16.mxu0 %v899
        %2117 = vmatmul.mubr.bf16.gmra.mxu0 %v898
        %v2118 = vpop.f32.mrf.mxu0
        %v2119 = vadd.f32 %v1958, %v2118
        %v2120 = vpop.f32.mrf.mxu0
        %v2121 = vpop.f32.mrf.mxu0
        %v2122 = vadd.f32 %v1961, %v2121
        %v2123 = vpop.f32.mrf.mxu0
        %2124 = vmatprep.mubr.bf16.mxu0 %v908
        %2125 = vmatmul.mubr.bf16.gmra.mxu0 %v907
        %v2126 = vpop.f32.mrf.mxu0
        %v2127 = vadd.f32 %v1966, %v2126
        %v2128 = vpop.f32.mrf.mxu0
        %v2129 = vpop.f32.mrf.mxu0
        %v2130 = vadd.f32 %v1969, %v2129
        %v2131 = vpop.f32.mrf.mxu0
        %2132 = vmatprep.mubr.bf16.mxu0 %v917
        %2133 = vmatmul.mubr.bf16.gmra.mxu0 %v916
        %v2134 = vpop.f32.mrf.mxu0
        %v2135 = vadd.f32 %v1974, %v2134
        %v2136 = vpop.f32.mrf.mxu0
        %v2137 = vpop.f32.mrf.mxu0
        %v2138 = vadd.f32 %v1977, %v2137
        %v2139 = vpop.f32.mrf.mxu0
        %2140 = vmatprep.mubr.bf16.mxu0 %v926
        %2141 = vmatmul.mubr.bf16.gmra.mxu0 %v925
        %v2142 = vpop.f32.mrf.mxu0
        %v2143 = vadd.f32 %v1982, %v2142
        %v2144 = vpop.f32.mrf.mxu0
        %v2145 = vpop.f32.mrf.mxu0
        %v2146 = vadd.f32 %v1985, %v2145
        %v2147 = vpop.f32.mrf.mxu0
        %2148 = vmatprep.mubr.bf16.mxu0 %v935
        %2149 = vmatmul.mubr.bf16.gmra.mxu0 %v934
        %v2150 = vpop.f32.mrf.mxu0
        %v2151 = vadd.f32 %v1990, %v2150
        %v2152 = vpop.f32.mrf.mxu0
        %v2153 = vpop.f32.mrf.mxu0
        %v2154 = vadd.f32 %v1993, %v2153
        %v2155 = vpop.f32.mrf.mxu0
        %2156 = vdwg.mxu0
        %2157 = vmatprep.subr.bf16.mxu0 0
        %2158 = vmatpush1.bf16.msra.mxu0 %v1440
        %2159 = vmatprep.subr.bf16.mxu0 0
        %2160 = vmatpush1.bf16.msra.mxu0 %v1439
        %2161 = vmatprep.subr.bf16.mxu0 0
        %2162 = vmatpush1.bf16.msra.mxu0 %v1438
        %2163 = vmatprep.subr.bf16.mxu0 0
        %2164 = vmatpush1.bf16.msra.mxu0 %v1437
        %2165 = vmatprep.subr.bf16.mxu0 0
        %2166 = vmatpush1.bf16.msra.mxu0 %v1436
        %2167 = vmatprep.subr.bf16.mxu0 0
        %2168 = vmatpush1.bf16.msra.mxu0 %v1435
        %2169 = vmatprep.subr.bf16.mxu0 0
        %2170 = vmatpush1.bf16.msra.mxu0 %v1434
        %2171 = vmatprep.subr.bf16.mxu0 0
        %2172 = vmatpush1.bf16.msra.mxu0 %v1433
        %2173 = vmatprep.subr.bf16.mxu0 0
        %2174 = vmatpush2.bf16.msra.mxu0 0
        %2175 = vmatprep.subr.bf16.mxu0 0
        %2176 = vmatpush2.bf16.msra.mxu0 0
        %2177 = vmatprep.subr.bf16.mxu0 0
        %2178 = vmatpush2.bf16.msra.mxu0 0
        %2179 = vmatprep.subr.bf16.mxu0 0
        %2180 = vmatpush2.bf16.msra.mxu0 0
        %2181 = vmatprep.subr.bf16.mxu0 0
        %2182 = vmatpush2.bf16.msra.mxu0 0
        %2183 = vmatprep.subr.bf16.mxu0 0
        %2184 = vmatpush2.bf16.msra.mxu0 0
        %2185 = vmatprep.subr.bf16.mxu0 0
        %2186 = vmatpush2.bf16.msra.mxu0 0
        %2187 = vmatprep.subr.bf16.mxu0 0
        %2188 = vmatpush2.bf16.msra.mxu0 0
        %2189 = vmatprep.mubr.bf16.mxu0 0
        %2190 = vmatmul.mubr.bf16.gmra.mxu0 %v801
        %v2191 = vpop.f32.mrf.mxu0
        %v2192 = vadd.f32 %v2031, %v2191
        %v2193 = vpop.f32.mrf.mxu0
        %v2194 = vpop.f32.mrf.mxu0
        %v2195 = vadd.f32 %v2034, %v2194
        %v2196 = vpop.f32.mrf.mxu0
        %2197 = vmatprep.mubr.bf16.mxu0 0
        %2198 = vmatmul.mubr.bf16.gmra.mxu0 %v810
        %v2199 = vpop.f32.mrf.mxu0
        %v2200 = vadd.f32 %v2039, %v2199
        %v2201 = vpop.f32.mrf.mxu0
        %v2202 = vpop.f32.mrf.mxu0
        %v2203 = vadd.f32 %v2042, %v2202
        %v2204 = vpop.f32.mrf.mxu0
        %2205 = vmatprep.mubr.bf16.mxu0 0
        %2206 = vmatmul.mubr.bf16.gmra.mxu0 %v819
        %v2207 = vpop.f32.mrf.mxu0
        %v2208 = vadd.f32 %v2047, %v2207
        %v2209 = vpop.f32.mrf.mxu0
        %v2210 = vpop.f32.mrf.mxu0
        %v2211 = vadd.f32 %v2050, %v2210
        %v2212 = vpop.f32.mrf.mxu0
        %2213 = vmatprep.mubr.bf16.mxu0 0
        %2214 = vmatmul.mubr.bf16.gmra.mxu0 %v828
        %v2215 = vpop.f32.mrf.mxu0
        %v2216 = vadd.f32 %v2055, %v2215
        %v2217 = vpop.f32.mrf.mxu0
        %v2218 = vpop.f32.mrf.mxu0
        %v2219 = vadd.f32 %v2058, %v2218
        %v2220 = vpop.f32.mrf.mxu0
        %2221 = vmatprep.mubr.bf16.mxu0 0
        %2222 = vmatmul.mubr.bf16.gmra.mxu0 %v837
        %v2223 = vpop.f32.mrf.mxu0
        %v2224 = vadd.f32 %v2063, %v2223
        %v2225 = vpop.f32.mrf.mxu0
        %v2226 = vpop.f32.mrf.mxu0
        %v2227 = vadd.f32 %v2066, %v2226
        %v2228 = vpop.f32.mrf.mxu0
        %2229 = vmatprep.mubr.bf16.mxu0 0
        %2230 = vmatmul.mubr.bf16.gmra.mxu0 %v846
        %v2231 = vpop.f32.mrf.mxu0
        %v2232 = vadd.f32 %v2071, %v2231
        %v2233 = vpop.f32.mrf.mxu0
        %v2234 = vpop.f32.mrf.mxu0
        %v2235 = vadd.f32 %v2074, %v2234
        %v2236 = vpop.f32.mrf.mxu0
        %2237 = vmatprep.mubr.bf16.mxu0 0
        %2238 = vmatmul.mubr.bf16.gmra.mxu0 %v855
        %v2239 = vpop.f32.mrf.mxu0
        %v2240 = vadd.f32 %v2079, %v2239
        %v2241 = vpop.f32.mrf.mxu0
        %v2242 = vpop.f32.mrf.mxu0
        %v2243 = vadd.f32 %v2082, %v2242
        %v2244 = vpop.f32.mrf.mxu0
        %2245 = vmatprep.mubr.bf16.mxu0 0
        %2246 = vmatmul.mubr.bf16.gmra.mxu0 %v864
        %v2247 = vpop.f32.mrf.mxu0
        %v2248 = vadd.f32 %v2087, %v2247
        %v2249 = vpop.f32.mrf.mxu0
        %v2250 = vpop.f32.mrf.mxu0
        %v2251 = vadd.f32 %v2090, %v2250
        %v2252 = vpop.f32.mrf.mxu0
        %2253 = vmatprep.mubr.bf16.mxu0 0
        %2254 = vmatmul.mubr.bf16.gmra.mxu0 %v873
        %v2255 = vpop.f32.mrf.mxu0
        %v2256 = vadd.f32 %v2095, %v2255
        %v2257 = vpop.f32.mrf.mxu0
        %v2258 = vpop.f32.mrf.mxu0
        %v2259 = vadd.f32 %v2098, %v2258
        %v2260 = vpop.f32.mrf.mxu0
        %2261 = vmatprep.mubr.bf16.mxu0 0
        %2262 = vmatmul.mubr.bf16.gmra.mxu0 %v882
        %v2263 = vpop.f32.mrf.mxu0
        %v2264 = vadd.f32 %v2103, %v2263
        %v2265 = vpop.f32.mrf.mxu0
        %v2266 = vpop.f32.mrf.mxu0
        %v2267 = vadd.f32 %v2106, %v2266
        %v2268 = vpop.f32.mrf.mxu0
        %2269 = vmatprep.mubr.bf16.mxu0 0
        %2270 = vmatmul.mubr.bf16.gmra.mxu0 %v891
        %v2271 = vpop.f32.mrf.mxu0
        %v2272 = vadd.f32 %v2111, %v2271
        %v2273 = vpop.f32.mrf.mxu0
        %v2274 = vpop.f32.mrf.mxu0
        %v2275 = vadd.f32 %v2114, %v2274
        %v2276 = vpop.f32.mrf.mxu0
        %2277 = vmatprep.mubr.bf16.mxu0 0
        %2278 = vmatmul.mubr.bf16.gmra.mxu0 %v900
        %v2279 = vpop.f32.mrf.mxu0
        %v2280 = vadd.f32 %v2119, %v2279
        %v2281 = vpop.f32.mrf.mxu0
        %v2282 = vpop.f32.mrf.mxu0
        %v2283 = vadd.f32 %v2122, %v2282
        %v2284 = vpop.f32.mrf.mxu0
        %2285 = vmatprep.mubr.bf16.mxu0 0
        %2286 = vmatmul.mubr.bf16.gmra.mxu0 %v909
        %v2287 = vpop.f32.mrf.mxu0
        %v2288 = vadd.f32 %v2127, %v2287
        %v2289 = vpop.f32.mrf.mxu0
        %v2290 = vpop.f32.mrf.mxu0
        %v2291 = vadd.f32 %v2130, %v2290
        %v2292 = vpop.f32.mrf.mxu0
        %2293 = vmatprep.mubr.bf16.mxu0 0
        %2294 = vmatmul.mubr.bf16.gmra.mxu0 %v918
        %v2295 = vpop.f32.mrf.mxu0
        %v2296 = vadd.f32 %v2135, %v2295
        %v2297 = vpop.f32.mrf.mxu0
        %v2298 = vpop.f32.mrf.mxu0
        %v2299 = vadd.f32 %v2138, %v2298
        %v2300 = vpop.f32.mrf.mxu0
        %2301 = vmatprep.mubr.bf16.mxu0 0
        %2302 = vmatmul.mubr.bf16.gmra.mxu0 %v927
        %v2303 = vpop.f32.mrf.mxu0
        %v2304 = vadd.f32 %v2143, %v2303
        %v2305 = vpop.f32.mrf.mxu0
        %v2306 = vpop.f32.mrf.mxu0
        %v2307 = vadd.f32 %v2146, %v2306
        %v2308 = vpop.f32.mrf.mxu0
        %2309 = vmatprep.mubr.bf16.mxu0 0
        %2310 = vmatmul.mubr.bf16.gmra.mxu0 %v936
        %v2311 = vpop.f32.mrf.mxu0
        %v2312 = vadd.f32 %v2151, %v2311
        %v2313 = vpop.f32.mrf.mxu0
        %v2314 = vpop.f32.mrf.mxu0
        %v2315 = vadd.f32 %v2154, %v2314
        %v2316 = vpop.f32.mrf.mxu0
        %2317 = vdwg.mxu0
        %v2318 = vld [vmem:[%s2] sm:$0x1]
        %v2320 = vlaneseq
        %v2321 = vshrl.u32 %v2320, 7
        %v2322 = vsub.s32 0, %v2321
        %v2323 = vrot.slane %v2318, %v2322
        %v2325 = vmul.f32 %v2192, %v2323
        %v2326 = vmul.f32 %v2195, %v2323
        %v2327 = vmul.f32 %v2200, %v2323
        %v2328 = vmul.f32 %v2203, %v2323
        %v2329 = vmul.f32 %v2208, %v2323
        %v2330 = vmul.f32 %v2211, %v2323
        %v2331 = vmul.f32 %v2216, %v2323
        %v2332 = vmul.f32 %v2219, %v2323
        %v2333 = vmul.f32 %v2224, %v2323
        %v2334 = vmul.f32 %v2227, %v2323
        %v2335 = vmul.f32 %v2232, %v2323
        %v2336 = vmul.f32 %v2235, %v2323
        %v2337 = vmul.f32 %v2240, %v2323
        %v2338 = vmul.f32 %v2243, %v2323
        %v2339 = vmul.f32 %v2248, %v2323
        %v2340 = vmul.f32 %v2251, %v2323
        %v2341 = vmul.f32 %v2256, %v2323
        %v2342 = vmul.f32 %v2259, %v2323
        %v2343 = vmul.f32 %v2264, %v2323
        %v2344 = vmul.f32 %v2267, %v2323
        %v2345 = vmul.f32 %v2272, %v2323
        %v2346 = vmul.f32 %v2275, %v2323
        %v2347 = vmul.f32 %v2280, %v2323
        %v2348 = vmul.f32 %v2283, %v2323
        %v2349 = vmul.f32 %v2288, %v2323
        %v2350 = vmul.f32 %v2291, %v2323
        %v2351 = vmul.f32 %v2296, %v2323
        %v2352 = vmul.f32 %v2299, %v2323
        %v2353 = vmul.f32 %v2304, %v2323
        %v2354 = vmul.f32 %v2307, %v2323
        %v2355 = vmul.f32 %v2312, %v2323
        %v2356 = vmul.f32 %v2315, %v2323
        %v2357 = vld [vmem:[%s3] sm:$0x1]
        %v2359 = vlaneseq
        %v2360 = vshrl.u32 %v2359, 7
        %v2361 = vsub.s32 0, %v2360
        %v2362 = vrot.slane %v2357, %v2361
        %v2364 = vadd.f32 %v2325, %v2362
        %v2365 = vadd.f32 %v2326, %v2362
        %v2366 = vadd.f32 %v2327, %v2362
        %v2367 = vadd.f32 %v2328, %v2362
        %v2368 = vadd.f32 %v2329, %v2362
        %v2369 = vadd.f32 %v2330, %v2362
        %v2370 = vadd.f32 %v2331, %v2362
        %v2371 = vadd.f32 %v2332, %v2362
        %v2372 = vadd.f32 %v2333, %v2362
        %v2373 = vadd.f32 %v2334, %v2362
        %v2374 = vadd.f32 %v2335, %v2362
        %v2375 = vadd.f32 %v2336, %v2362
        %v2376 = vadd.f32 %v2337, %v2362
        %v2377 = vadd.f32 %v2338, %v2362
        %v2378 = vadd.f32 %v2339, %v2362
        %v2379 = vadd.f32 %v2340, %v2362
        %v2380 = vadd.f32 %v2341, %v2362
        %v2381 = vadd.f32 %v2342, %v2362
        %v2382 = vadd.f32 %v2343, %v2362
        %v2383 = vadd.f32 %v2344, %v2362
        %v2384 = vadd.f32 %v2345, %v2362
        %v2385 = vadd.f32 %v2346, %v2362
        %v2386 = vadd.f32 %v2347, %v2362
        %v2387 = vadd.f32 %v2348, %v2362
        %v2388 = vadd.f32 %v2349, %v2362
        %v2389 = vadd.f32 %v2350, %v2362
        %v2390 = vadd.f32 %v2351, %v2362
        %v2391 = vadd.f32 %v2352, %v2362
        %v2392 = vadd.f32 %v2353, %v2362
        %v2393 = vadd.f32 %v2354, %v2362
        %v2394 = vadd.f32 %v2355, %v2362
        %v2395 = vadd.f32 %v2356, %v2362
        %v2396 = vmax.f32 %v2364, 0.0
        %v2397 = vmax.f32 %v2365, 0.0
        %v2398 = vmax.f32 %v2366, 0.0
        %v2399 = vmax.f32 %v2367, 0.0
        %v2400 = vmax.f32 %v2368, 0.0
        %v2401 = vmax.f32 %v2369, 0.0
        %v2402 = vmax.f32 %v2370, 0.0
        %v2403 = vmax.f32 %v2371, 0.0
        %v2404 = vmax.f32 %v2372, 0.0
        %v2405 = vmax.f32 %v2373, 0.0
        %v2406 = vmax.f32 %v2374, 0.0
        %v2407 = vmax.f32 %v2375, 0.0
        %v2408 = vmax.f32 %v2376, 0.0
        %v2409 = vmax.f32 %v2377, 0.0
        %v2410 = vmax.f32 %v2378, 0.0
        %v2411 = vmax.f32 %v2379, 0.0
        %v2412 = vmax.f32 %v2380, 0.0
        %v2413 = vmax.f32 %v2381, 0.0
        %v2414 = vmax.f32 %v2382, 0.0
        %v2415 = vmax.f32 %v2383, 0.0
        %v2416 = vmax.f32 %v2384, 0.0
        %v2417 = vmax.f32 %v2385, 0.0
        %v2418 = vmax.f32 %v2386, 0.0
        %v2419 = vmax.f32 %v2387, 0.0
        %v2420 = vmax.f32 %v2388, 0.0
        %v2421 = vmax.f32 %v2389, 0.0
        %v2422 = vmax.f32 %v2390, 0.0
        %v2423 = vmax.f32 %v2391, 0.0
        %v2424 = vmax.f32 %v2392, 0.0
        %v2425 = vmax.f32 %v2393, 0.0
        %v2426 = vmax.f32 %v2394, 0.0
        %v2427 = vmax.f32 %v2395, 0.0
        %s2428 = scalar_lea.vmem [#allocation3], 24
        %2429 = vst [vmem:[%s2428 + $0x1] sm:$0xff] %v2396
        %2430 = vst [vmem:[%s2428 + $0x9] sm:$0xff] %v2397
        %2431 = vst [vmem:[%s2428 + $0x19] sm:$0xff] %v2398
        %2432 = vst [vmem:[%s2428 + $0x21] sm:$0xff] %v2399
        %2433 = vst [vmem:[%s2428 + $0x31] sm:$0xff] %v2400
        %2434 = vst [vmem:[%s2428 + $0x39] sm:$0xff] %v2401
        %2435 = vst [vmem:[%s2428 + $0x49] sm:$0xff] %v2402
        %2436 = vst [vmem:[%s2428 + $0x51] sm:$0xff] %v2403
        %2437 = vst [vmem:[%s2428 + $0x61] sm:$0xff] %v2404
        %2438 = vst [vmem:[%s2428 + $0x69] sm:$0xff] %v2405
        %2439 = vst [vmem:[%s2428 + $0x79] sm:$0xff] %v2406
        %2440 = vst [vmem:[%s2428 + $0x81] sm:$0xff] %v2407
        %2441 = vst [vmem:[%s2428 + $0x91] sm:$0xff] %v2408
        %2442 = vst [vmem:[%s2428 + $0x99] sm:$0xff] %v2409
        %2443 = vst [vmem:[%s2428 + $0xa9] sm:$0xff] %v2410
        %2444 = vst [vmem:[%s2428 + $0xb1] sm:$0xff] %v2411
        %2445 = vst [vmem:[%s2428 + $0xc1] sm:$0xff] %v2412
        %2446 = vst [vmem:[%s2428 + $0xc9] sm:$0xff] %v2413
        %2447 = vst [vmem:[%s2428 + $0xd9] sm:$0xff] %v2414
        %2448 = vst [vmem:[%s2428 + $0xe1] sm:$0xff] %v2415
        %2449 = vst [vmem:[%s2428 + $0xf1] sm:$0xff] %v2416
        %2450 = vst [vmem:[%s2428 + $0xf9] sm:$0xff] %v2417
        %2451 = vst [vmem:[%s2428 + $0x109] sm:$0xff] %v2418
        %2452 = vst [vmem:[%s2428 + $0x111] sm:$0xff] %v2419
        %2453 = vst [vmem:[%s2428 + $0x121] sm:$0xff] %v2420
        %2454 = vst [vmem:[%s2428 + $0x129] sm:$0xff] %v2421
        %2455 = vst [vmem:[%s2428 + $0x139] sm:$0xff] %v2422
        %2456 = vst [vmem:[%s2428 + $0x141] sm:$0xff] %v2423
        %2457 = vst [vmem:[%s2428 + $0x151] sm:$0xff] %v2424
        %2458 = vst [vmem:[%s2428 + $0x159] sm:$0xff] %v2425
        %2459 = vst [vmem:[%s2428 + $0x169] sm:$0xff] %v2426
        %2460 = vst [vmem:[%s2428 + $0x171] sm:$0xff] %v2427
        %v2461 = vld [vmem:[#allocation3] sm:$0xff]
        %v2462 = vld [vmem:[#allocation3 + $0x8] sm:$0xff]
        %v2463 = vld [vmem:[#allocation3 + $0x18] sm:$0xff]
        %v2464 = vld [vmem:[#allocation3 + $0x20] sm:$0xff]
        %v2465 = vld [vmem:[#allocation3 + $0x30] sm:$0xff]
        %v2466 = vld [vmem:[#allocation3 + $0x38] sm:$0xff]
        %v2467 = vld [vmem:[#allocation3 + $0x48] sm:$0xff]
        %v2468 = vld [vmem:[#allocation3 + $0x50] sm:$0xff]
        %v2469 = vld [vmem:[#allocation3 + $0x60] sm:$0xff]
        %v2470 = vld [vmem:[#allocation3 + $0x68] sm:$0xff]
        %v2471 = vld [vmem:[#allocation3 + $0x78] sm:$0xff]
        %v2472 = vld [vmem:[#allocation3 + $0x80] sm:$0xff]
        %v2473 = vld [vmem:[#allocation3 + $0x90] sm:$0xff]
        %v2474 = vld [vmem:[#allocation3 + $0x98] sm:$0xff]
        %v2475 = vld [vmem:[#allocation3 + $0xa8] sm:$0xff]
        %v2476 = vld [vmem:[#allocation3 + $0xb0] sm:$0xff]
        %v2477 = vld [vmem:[#allocation3 + $0xc0] sm:$0xff]
        %v2478 = vld [vmem:[#allocation3 + $0xc8] sm:$0xff]
        %v2479 = vld [vmem:[#allocation3 + $0xd8] sm:$0xff]
        %v2480 = vld [vmem:[#allocation3 + $0xe0] sm:$0xff]
        %v2481 = vld [vmem:[#allocation3 + $0xf0] sm:$0xff]
        %v2482 = vld [vmem:[#allocation3 + $0xf8] sm:$0xff]
        %v2483 = vld [vmem:[#allocation3 + $0x108] sm:$0xff]
        %v2484 = vld [vmem:[#allocation3 + $0x110] sm:$0xff]
        %v2485 = vld [vmem:[#allocation3 + $0x120] sm:$0xff]
        %v2486 = vld [vmem:[#allocation3 + $0x128] sm:$0xff]
        %v2487 = vld [vmem:[#allocation3 + $0x138] sm:$0xff]
        %v2488 = vld [vmem:[#allocation3 + $0x140] sm:$0xff]
        %v2489 = vld [vmem:[#allocation3 + $0x150] sm:$0xff]
        %v2490 = vld [vmem:[#allocation3 + $0x158] sm:$0xff]
        %v2491 = vld [vmem:[#allocation3 + $0x168] sm:$0xff]
        %v2492 = vld [vmem:[#allocation3 + $0x170] sm:$0xff]
        %v2493 = vld [vmem:[#allocation3 + $0x1] sm:$0xff]
        %v2494 = vld [vmem:[#allocation3 + $0x9] sm:$0xff]
        %v2495 = vld [vmem:[#allocation3 + $0x19] sm:$0xff]
        %v2496 = vld [vmem:[#allocation3 + $0x21] sm:$0xff]
        %v2497 = vld [vmem:[#allocation3 + $0x31] sm:$0xff]
        %v2498 = vld [vmem:[#allocation3 + $0x39] sm:$0xff]
        %v2499 = vld [vmem:[#allocation3 + $0x49] sm:$0xff]
        %v2500 = vld [vmem:[#allocation3 + $0x51] sm:$0xff]
        %v2501 = vld [vmem:[#allocation3 + $0x61] sm:$0xff]
        %v2502 = vld [vmem:[#allocation3 + $0x69] sm:$0xff]
        %v2503 = vld [vmem:[#allocation3 + $0x79] sm:$0xff]
        %v2504 = vld [vmem:[#allocation3 + $0x81] sm:$0xff]
        %v2505 = vld [vmem:[#allocation3 + $0x91] sm:$0xff]
        %v2506 = vld [vmem:[#allocation3 + $0x99] sm:$0xff]
        %v2507 = vld [vmem:[#allocation3 + $0xa9] sm:$0xff]
        %v2508 = vld [vmem:[#allocation3 + $0xb1] sm:$0xff]
        %v2509 = vld [vmem:[#allocation3 + $0xc1] sm:$0xff]
        %v2510 = vld [vmem:[#allocation3 + $0xc9] sm:$0xff]
        %v2511 = vld [vmem:[#allocation3 + $0xd9] sm:$0xff]
        %v2512 = vld [vmem:[#allocation3 + $0xe1] sm:$0xff]
        %v2513 = vld [vmem:[#allocation3 + $0xf1] sm:$0xff]
        %v2514 = vld [vmem:[#allocation3 + $0xf9] sm:$0xff]
        %v2515 = vld [vmem:[#allocation3 + $0x109] sm:$0xff]
        %v2516 = vld [vmem:[#allocation3 + $0x111] sm:$0xff]
        %v2517 = vld [vmem:[#allocation3 + $0x121] sm:$0xff]
        %v2518 = vld [vmem:[#allocation3 + $0x129] sm:$0xff]
        %v2519 = vld [vmem:[#allocation3 + $0x139] sm:$0xff]
        %v2520 = vld [vmem:[#allocation3 + $0x141] sm:$0xff]
        %v2521 = vld [vmem:[#allocation3 + $0x151] sm:$0xff]
        %v2522 = vld [vmem:[#allocation3 + $0x159] sm:$0xff]
        %v2523 = vld [vmem:[#allocation3 + $0x169] sm:$0xff]
        %v2524 = vld [vmem:[#allocation3 + $0x171] sm:$0xff]
        %v2525 = vld [vmem:[#allocation3 + $0x2] sm:$0xff]
        %v2526 = vld [vmem:[#allocation3 + $0xa] sm:$0xff]
        %v2527 = vld [vmem:[#allocation3 + $0x1a] sm:$0xff]
        %v2528 = vld [vmem:[#allocation3 + $0x22] sm:$0xff]
        %v2529 = vld [vmem:[#allocation3 + $0x32] sm:$0xff]
        %v2530 = vld [vmem:[#allocation3 + $0x3a] sm:$0xff]
        %v2531 = vld [vmem:[#allocation3 + $0x4a] sm:$0xff]
        %v2532 = vld [vmem:[#allocation3 + $0x52] sm:$0xff]
        %v2533 = vld [vmem:[#allocation3 + $0x62] sm:$0xff]
        %v2534 = vld [vmem:[#allocation3 + $0x6a] sm:$0xff]
        %v2535 = vld [vmem:[#allocation3 + $0x7a] sm:$0xff]
        %v2536 = vld [vmem:[#allocation3 + $0x82] sm:$0xff]
        %v2537 = vld [vmem:[#allocation3 + $0x92] sm:$0xff]
        %v2538 = vld [vmem:[#allocation3 + $0x9a] sm:$0xff]
        %v2539 = vld [vmem:[#allocation3 + $0xaa] sm:$0xff]
        %v2540 = vld [vmem:[#allocation3 + $0xb2] sm:$0xff]
        %v2541 = vld [vmem:[#allocation3 + $0xc2] sm:$0xff]
        %v2542 = vld [vmem:[#allocation3 + $0xca] sm:$0xff]
        %v2543 = vld [vmem:[#allocation3 + $0xda] sm:$0xff]
        %v2544 = vld [vmem:[#allocation3 + $0xe2] sm:$0xff]
        %v2545 = vld [vmem:[#allocation3 + $0xf2] sm:$0xff]
        %v2546 = vld [vmem:[#allocation3 + $0xfa] sm:$0xff]
        %v2547 = vld [vmem:[#allocation3 + $0x10a] sm:$0xff]
        %v2548 = vld [vmem:[#allocation3 + $0x112] sm:$0xff]
        %v2549 = vld [vmem:[#allocation3 + $0x122] sm:$0xff]
        %v2550 = vld [vmem:[#allocation3 + $0x12a] sm:$0xff]
        %v2551 = vld [vmem:[#allocation3 + $0x13a] sm:$0xff]
        %v2552 = vld [vmem:[#allocation3 + $0x142] sm:$0xff]
        %v2553 = vld [vmem:[#allocation3 + $0x152] sm:$0xff]
        %v2554 = vld [vmem:[#allocation3 + $0x15a] sm:$0xff]
        %v2555 = vld [vmem:[#allocation3 + $0x16a] sm:$0xff]
        %v2556 = vld [vmem:[#allocation3 + $0x172] sm:$0xff]
        %v2557 = vld [vmem:[%s2428] sm:$0xff]
        %v2558 = vld [vmem:[%s2428 + $0x8] sm:$0xff]
        %v2559 = vld [vmem:[%s2428 + $0x18] sm:$0xff]
        %v2560 = vld [vmem:[%s2428 + $0x20] sm:$0xff]
        %v2561 = vld [vmem:[%s2428 + $0x30] sm:$0xff]
        %v2562 = vld [vmem:[%s2428 + $0x38] sm:$0xff]
        %v2563 = vld [vmem:[%s2428 + $0x48] sm:$0xff]
        %v2564 = vld [vmem:[%s2428 + $0x50] sm:$0xff]
        %v2565 = vld [vmem:[%s2428 + $0x60] sm:$0xff]
        %v2566 = vld [vmem:[%s2428 + $0x68] sm:$0xff]
        %v2567 = vld [vmem:[%s2428 + $0x78] sm:$0xff]
        %v2568 = vld [vmem:[%s2428 + $0x80] sm:$0xff]
        %v2569 = vld [vmem:[%s2428 + $0x90] sm:$0xff]
        %v2570 = vld [vmem:[%s2428 + $0x98] sm:$0xff]
        %v2571 = vld [vmem:[%s2428 + $0xa8] sm:$0xff]
        %v2572 = vld [vmem:[%s2428 + $0xb0] sm:$0xff]
        %v2573 = vld [vmem:[%s2428 + $0xc0] sm:$0xff]
        %v2574 = vld [vmem:[%s2428 + $0xc8] sm:$0xff]
        %v2575 = vld [vmem:[%s2428 + $0xd8] sm:$0xff]
        %v2576 = vld [vmem:[%s2428 + $0xe0] sm:$0xff]
        %v2577 = vld [vmem:[%s2428 + $0xf0] sm:$0xff]
        %v2578 = vld [vmem:[%s2428 + $0xf8] sm:$0xff]
        %v2579 = vld [vmem:[%s2428 + $0x108] sm:$0xff]
        %v2580 = vld [vmem:[%s2428 + $0x110] sm:$0xff]
        %v2581 = vld [vmem:[%s2428 + $0x120] sm:$0xff]
        %v2582 = vld [vmem:[%s2428 + $0x128] sm:$0xff]
        %v2583 = vld [vmem:[%s2428 + $0x138] sm:$0xff]
        %v2584 = vld [vmem:[%s2428 + $0x140] sm:$0xff]
        %v2585 = vld [vmem:[%s2428 + $0x150] sm:$0xff]
        %v2586 = vld [vmem:[%s2428 + $0x158] sm:$0xff]
        %v2587 = vld [vmem:[%s2428 + $0x168] sm:$0xff]
        %v2588 = vld [vmem:[%s2428 + $0x170] sm:$0xff]
        %v2589 = vld [vmem:[%s2428 + $0x1] sm:$0xff]
        %v2590 = vld [vmem:[%s2428 + $0x9] sm:$0xff]
        %v2591 = vld [vmem:[%s2428 + $0x19] sm:$0xff]
        %v2592 = vld [vmem:[%s2428 + $0x21] sm:$0xff]
        %v2593 = vld [vmem:[%s2428 + $0x31] sm:$0xff]
        %v2594 = vld [vmem:[%s2428 + $0x39] sm:$0xff]
        %v2595 = vld [vmem:[%s2428 + $0x49] sm:$0xff]
        %v2596 = vld [vmem:[%s2428 + $0x51] sm:$0xff]
        %v2597 = vld [vmem:[%s2428 + $0x61] sm:$0xff]
        %v2598 = vld [vmem:[%s2428 + $0x69] sm:$0xff]
        %v2599 = vld [vmem:[%s2428 + $0x79] sm:$0xff]
        %v2600 = vld [vmem:[%s2428 + $0x81] sm:$0xff]
        %v2601 = vld [vmem:[%s2428 + $0x91] sm:$0xff]
        %v2602 = vld [vmem:[%s2428 + $0x99] sm:$0xff]
        %v2603 = vld [vmem:[%s2428 + $0xa9] sm:$0xff]
        %v2604 = vld [vmem:[%s2428 + $0xb1] sm:$0xff]
        %v2605 = vld [vmem:[%s2428 + $0xc1] sm:$0xff]
        %v2606 = vld [vmem:[%s2428 + $0xc9] sm:$0xff]
        %v2607 = vld [vmem:[%s2428 + $0xd9] sm:$0xff]
        %v2608 = vld [vmem:[%s2428 + $0xe1] sm:$0xff]
        %v2609 = vld [vmem:[%s2428 + $0xf1] sm:$0xff]
        %v2610 = vld [vmem:[%s2428 + $0xf9] sm:$0xff]
        %v2611 = vld [vmem:[%s2428 + $0x109] sm:$0xff]
        %v2612 = vld [vmem:[%s2428 + $0x111] sm:$0xff]
        %v2613 = vld [vmem:[%s2428 + $0x121] sm:$0xff]
        %v2614 = vld [vmem:[%s2428 + $0x129] sm:$0xff]
        %v2615 = vld [vmem:[%s2428 + $0x139] sm:$0xff]
        %v2616 = vld [vmem:[%s2428 + $0x141] sm:$0xff]
        %v2617 = vld [vmem:[%s2428 + $0x151] sm:$0xff]
        %v2618 = vld [vmem:[%s2428 + $0x159] sm:$0xff]
        %v2619 = vld [vmem:[%s2428 + $0x169] sm:$0xff]
        %v2620 = vld [vmem:[%s2428 + $0x171] sm:$0xff]
        %v2621 = vld [vmem:[%s2428 + $0x2] sm:$0xff]
        %v2622 = vld [vmem:[%s2428 + $0xa] sm:$0xff]
        %v2623 = vld [vmem:[%s2428 + $0x1a] sm:$0xff]
        %v2624 = vld [vmem:[%s2428 + $0x22] sm:$0xff]
        %v2625 = vld [vmem:[%s2428 + $0x32] sm:$0xff]
        %v2626 = vld [vmem:[%s2428 + $0x3a] sm:$0xff]
        %v2627 = vld [vmem:[%s2428 + $0x4a] sm:$0xff]
        %v2628 = vld [vmem:[%s2428 + $0x52] sm:$0xff]
        %v2629 = vld [vmem:[%s2428 + $0x62] sm:$0xff]
        %v2630 = vld [vmem:[%s2428 + $0x6a] sm:$0xff]
        %v2631 = vld [vmem:[%s2428 + $0x7a] sm:$0xff]
        %v2632 = vld [vmem:[%s2428 + $0x82] sm:$0xff]
        %v2633 = vld [vmem:[%s2428 + $0x92] sm:$0xff]
        %v2634 = vld [vmem:[%s2428 + $0x9a] sm:$0xff]
        %v2635 = vld [vmem:[%s2428 + $0xaa] sm:$0xff]
        %v2636 = vld [vmem:[%s2428 + $0xb2] sm:$0xff]
        %v2637 = vld [vmem:[%s2428 + $0xc2] sm:$0xff]
        %v2638 = vld [vmem:[%s2428 + $0xca] sm:$0xff]
        %v2639 = vld [vmem:[%s2428 + $0xda] sm:$0xff]
        %v2640 = vld [vmem:[%s2428 + $0xe2] sm:$0xff]
        %v2641 = vld [vmem:[%s2428 + $0xf2] sm:$0xff]
        %v2642 = vld [vmem:[%s2428 + $0xfa] sm:$0xff]
        %v2643 = vld [vmem:[%s2428 + $0x10a] sm:$0xff]
        %v2644 = vld [vmem:[%s2428 + $0x112] sm:$0xff]
        %v2645 = vld [vmem:[%s2428 + $0x122] sm:$0xff]
        %v2646 = vld [vmem:[%s2428 + $0x12a] sm:$0xff]
        %v2647 = vld [vmem:[%s2428 + $0x13a] sm:$0xff]
        %v2648 = vld [vmem:[%s2428 + $0x142] sm:$0xff]
        %v2649 = vld [vmem:[%s2428 + $0x152] sm:$0xff]
        %v2650 = vld [vmem:[%s2428 + $0x15a] sm:$0xff]
        %v2651 = vld [vmem:[%s2428 + $0x16a] sm:$0xff]
        %v2652 = vld [vmem:[%s2428 + $0x172] sm:$0xff]
        %s2653 = scalar_lea.vmem [#allocation3], 48
        %v2654 = vld [vmem:[%s2653] sm:$0xff]
        %v2655 = vld [vmem:[%s2653 + $0x8] sm:$0xff]
        %v2656 = vld [vmem:[%s2653 + $0x18] sm:$0xff]
        %v2657 = vld [vmem:[%s2653 + $0x20] sm:$0xff]
        %v2658 = vld [vmem:[%s2653 + $0x30] sm:$0xff]
        %v2659 = vld [vmem:[%s2653 + $0x38] sm:$0xff]
        %v2660 = vld [vmem:[%s2653 + $0x48] sm:$0xff]
        %v2661 = vld [vmem:[%s2653 + $0x50] sm:$0xff]
        %v2662 = vld [vmem:[%s2653 + $0x60] sm:$0xff]
        %v2663 = vld [vmem:[%s2653 + $0x68] sm:$0xff]
        %v2664 = vld [vmem:[%s2653 + $0x78] sm:$0xff]
        %v2665 = vld [vmem:[%s2653 + $0x80] sm:$0xff]
        %v2666 = vld [vmem:[%s2653 + $0x90] sm:$0xff]
        %v2667 = vld [vmem:[%s2653 + $0x98] sm:$0xff]
        %v2668 = vld [vmem:[%s2653 + $0xa8] sm:$0xff]
        %v2669 = vld [vmem:[%s2653 + $0xb0] sm:$0xff]
        %v2670 = vld [vmem:[%s2653 + $0xc0] sm:$0xff]
        %v2671 = vld [vmem:[%s2653 + $0xc8] sm:$0xff]
        %v2672 = vld [vmem:[%s2653 + $0xd8] sm:$0xff]
        %v2673 = vld [vmem:[%s2653 + $0xe0] sm:$0xff]
        %v2674 = vld [vmem:[%s2653 + $0xf0] sm:$0xff]
        %v2675 = vld [vmem:[%s2653 + $0xf8] sm:$0xff]
        %v2676 = vld [vmem:[%s2653 + $0x108] sm:$0xff]
        %v2677 = vld [vmem:[%s2653 + $0x110] sm:$0xff]
        %v2678 = vld [vmem:[%s2653 + $0x120] sm:$0xff]
        %v2679 = vld [vmem:[%s2653 + $0x128] sm:$0xff]
        %v2680 = vld [vmem:[%s2653 + $0x138] sm:$0xff]
        %v2681 = vld [vmem:[%s2653 + $0x140] sm:$0xff]
        %v2682 = vld [vmem:[%s2653 + $0x150] sm:$0xff]
        %v2683 = vld [vmem:[%s2653 + $0x158] sm:$0xff]
        %v2684 = vld [vmem:[%s2653 + $0x168] sm:$0xff]
        %v2685 = vld [vmem:[%s2653 + $0x170] sm:$0xff]
        %v2686 = vld [vmem:[%s2653 + $0x1] sm:$0xff]
        %v2687 = vld [vmem:[%s2653 + $0x9] sm:$0xff]
        %v2688 = vld [vmem:[%s2653 + $0x19] sm:$0xff]
        %v2689 = vld [vmem:[%s2653 + $0x21] sm:$0xff]
        %v2690 = vld [vmem:[%s2653 + $0x31] sm:$0xff]
        %v2691 = vld [vmem:[%s2653 + $0x39] sm:$0xff]
        %v2692 = vld [vmem:[%s2653 + $0x49] sm:$0xff]
        %v2693 = vld [vmem:[%s2653 + $0x51] sm:$0xff]
        %v2694 = vld [vmem:[%s2653 + $0x61] sm:$0xff]
        %v2695 = vld [vmem:[%s2653 + $0x69] sm:$0xff]
        %v2696 = vld [vmem:[%s2653 + $0x79] sm:$0xff]
        %v2697 = vld [vmem:[%s2653 + $0x81] sm:$0xff]
        %v2698 = vld [vmem:[%s2653 + $0x91] sm:$0xff]
        %v2699 = vld [vmem:[%s2653 + $0x99] sm:$0xff]
        %v2700 = vld [vmem:[%s2653 + $0xa9] sm:$0xff]
        %v2701 = vld [vmem:[%s2653 + $0xb1] sm:$0xff]
        %v2702 = vld [vmem:[%s2653 + $0xc1] sm:$0xff]
        %v2703 = vld [vmem:[%s2653 + $0xc9] sm:$0xff]
        %v2704 = vld [vmem:[%s2653 + $0xd9] sm:$0xff]
        %v2705 = vld [vmem:[%s2653 + $0xe1] sm:$0xff]
        %v2706 = vld [vmem:[%s2653 + $0xf1] sm:$0xff]
        %v2707 = vld [vmem:[%s2653 + $0xf9] sm:$0xff]
        %v2708 = vld [vmem:[%s2653 + $0x109] sm:$0xff]
        %v2709 = vld [vmem:[%s2653 + $0x111] sm:$0xff]
        %v2710 = vld [vmem:[%s2653 + $0x121] sm:$0xff]
        %v2711 = vld [vmem:[%s2653 + $0x129] sm:$0xff]
        %v2712 = vld [vmem:[%s2653 + $0x139] sm:$0xff]
        %v2713 = vld [vmem:[%s2653 + $0x141] sm:$0xff]
        %v2714 = vld [vmem:[%s2653 + $0x151] sm:$0xff]
        %v2715 = vld [vmem:[%s2653 + $0x159] sm:$0xff]
        %v2716 = vld [vmem:[%s2653 + $0x169] sm:$0xff]
        %v2717 = vld [vmem:[%s2653 + $0x171] sm:$0xff]
        %v2718 = vld [vmem:[%s2653 + $0x2] sm:$0xff]
        %v2719 = vld [vmem:[%s2653 + $0xa] sm:$0xff]
        %v2720 = vld [vmem:[%s2653 + $0x1a] sm:$0xff]
        %v2721 = vld [vmem:[%s2653 + $0x22] sm:$0xff]
        %v2722 = vld [vmem:[%s2653 + $0x32] sm:$0xff]
        %v2723 = vld [vmem:[%s2653 + $0x3a] sm:$0xff]
        %v2724 = vld [vmem:[%s2653 + $0x4a] sm:$0xff]
        %v2725 = vld [vmem:[%s2653 + $0x52] sm:$0xff]
        %v2726 = vld [vmem:[%s2653 + $0x62] sm:$0xff]
        %v2727 = vld [vmem:[%s2653 + $0x6a] sm:$0xff]
        %v2728 = vld [vmem:[%s2653 + $0x7a] sm:$0xff]
        %v2729 = vld [vmem:[%s2653 + $0x82] sm:$0xff]
        %v2730 = vld [vmem:[%s2653 + $0x92] sm:$0xff]
        %v2731 = vld [vmem:[%s2653 + $0x9a] sm:$0xff]
        %v2732 = vld [vmem:[%s2653 + $0xaa] sm:$0xff]
        %v2733 = vld [vmem:[%s2653 + $0xb2] sm:$0xff]
        %v2734 = vld [vmem:[%s2653 + $0xc2] sm:$0xff]
        %v2735 = vld [vmem:[%s2653 + $0xca] sm:$0xff]
        %v2736 = vld [vmem:[%s2653 + $0xda] sm:$0xff]
        %v2737 = vld [vmem:[%s2653 + $0xe2] sm:$0xff]
        %v2738 = vld [vmem:[%s2653 + $0xf2] sm:$0xff]
        %v2739 = vld [vmem:[%s2653 + $0xfa] sm:$0xff]
        %v2740 = vld [vmem:[%s2653 + $0x10a] sm:$0xff]
        %v2741 = vld [vmem:[%s2653 + $0x112] sm:$0xff]
        %v2742 = vld [vmem:[%s2653 + $0x122] sm:$0xff]
        %v2743 = vld [vmem:[%s2653 + $0x12a] sm:$0xff]
        %v2744 = vld [vmem:[%s2653 + $0x13a] sm:$0xff]
        %v2745 = vld [vmem:[%s2653 + $0x142] sm:$0xff]
        %v2746 = vld [vmem:[%s2653 + $0x152] sm:$0xff]
        %v2747 = vld [vmem:[%s2653 + $0x15a] sm:$0xff]
        %v2748 = vld [vmem:[%s2653 + $0x16a] sm:$0xff]
        %v2749 = vld [vmem:[%s2653 + $0x172] sm:$0xff]
        %v2750 = vpack.c.bf16 %v2462, %v2461
        %v2751 = vpack.c.bf16 %v2494, %v2493
        %v2752 = vpack.c.bf16 %v2526, %v2525
        %v2753 = vpack.c.bf16 %v2558, %v2557
        %v2754 = vpack.c.bf16 %v2590, %v2589
        %v2755 = vpack.c.bf16 %v2622, %v2621
        %v2756 = vpack.c.bf16 %v2655, %v2654
        %v2757 = vpack.c.bf16 %v2687, %v2686
        %v2758 = vpack.c.bf16 %v2719, %v2718
        %v2759 = vpack.c.bf16 %v2464, %v2463
        %v2760 = vpack.c.bf16 %v2496, %v2495
        %v2761 = vpack.c.bf16 %v2528, %v2527
        %v2762 = vpack.c.bf16 %v2560, %v2559
        %v2763 = vpack.c.bf16 %v2592, %v2591
        %v2764 = vpack.c.bf16 %v2624, %v2623
        %v2765 = vpack.c.bf16 %v2657, %v2656
        %v2766 = vpack.c.bf16 %v2689, %v2688
        %v2767 = vpack.c.bf16 %v2721, %v2720
        %v2768 = vpack.c.bf16 %v2466, %v2465
        %v2769 = vpack.c.bf16 %v2498, %v2497
        %v2770 = vpack.c.bf16 %v2530, %v2529
        %v2771 = vpack.c.bf16 %v2562, %v2561
        %v2772 = vpack.c.bf16 %v2594, %v2593
        %v2773 = vpack.c.bf16 %v2626, %v2625
        %v2774 = vpack.c.bf16 %v2659, %v2658
        %v2775 = vpack.c.bf16 %v2691, %v2690
        %v2776 = vpack.c.bf16 %v2723, %v2722
        %v2777 = vpack.c.bf16 %v2468, %v2467
        %v2778 = vpack.c.bf16 %v2500, %v2499
        %v2779 = vpack.c.bf16 %v2532, %v2531
        %v2780 = vpack.c.bf16 %v2564, %v2563
        %v2781 = vpack.c.bf16 %v2596, %v2595
        %v2782 = vpack.c.bf16 %v2628, %v2627
        %v2783 = vpack.c.bf16 %v2661, %v2660
        %v2784 = vpack.c.bf16 %v2693, %v2692
        %v2785 = vpack.c.bf16 %v2725, %v2724
        %v2786 = vpack.c.bf16 %v2470, %v2469
        %v2787 = vpack.c.bf16 %v2502, %v2501
        %v2788 = vpack.c.bf16 %v2534, %v2533
        %v2789 = vpack.c.bf16 %v2566, %v2565
        %v2790 = vpack.c.bf16 %v2598, %v2597
        %v2791 = vpack.c.bf16 %v2630, %v2629
        %v2792 = vpack.c.bf16 %v2663, %v2662
        %v2793 = vpack.c.bf16 %v2695, %v2694
        %v2794 = vpack.c.bf16 %v2727, %v2726
        %v2795 = vpack.c.bf16 %v2472, %v2471
        %v2796 = vpack.c.bf16 %v2504, %v2503
        %v2797 = vpack.c.bf16 %v2536, %v2535
        %v2798 = vpack.c.bf16 %v2568, %v2567
        %v2799 = vpack.c.bf16 %v2600, %v2599
        %v2800 = vpack.c.bf16 %v2632, %v2631
        %v2801 = vpack.c.bf16 %v2665, %v2664
        %v2802 = vpack.c.bf16 %v2697, %v2696
        %v2803 = vpack.c.bf16 %v2729, %v2728
        %v2804 = vpack.c.bf16 %v2474, %v2473
        %v2805 = vpack.c.bf16 %v2506, %v2505
        %v2806 = vpack.c.bf16 %v2538, %v2537
        %v2807 = vpack.c.bf16 %v2570, %v2569
        %v2808 = vpack.c.bf16 %v2602, %v2601
        %v2809 = vpack.c.bf16 %v2634, %v2633
        %v2810 = vpack.c.bf16 %v2667, %v2666
        %v2811 = vpack.c.bf16 %v2699, %v2698
        %v2812 = vpack.c.bf16 %v2731, %v2730
        %v2813 = vpack.c.bf16 %v2476, %v2475
        %v2814 = vpack.c.bf16 %v2508, %v2507
        %v2815 = vpack.c.bf16 %v2540, %v2539
        %v2816 = vpack.c.bf16 %v2572, %v2571
        %v2817 = vpack.c.bf16 %v2604, %v2603
        %v2818 = vpack.c.bf16 %v2636, %v2635
        %v2819 = vpack.c.bf16 %v2669, %v2668
        %v2820 = vpack.c.bf16 %v2701, %v2700
        %v2821 = vpack.c.bf16 %v2733, %v2732
        %v2822 = vpack.c.bf16 %v2478, %v2477
        %v2823 = vpack.c.bf16 %v2510, %v2509
        %v2824 = vpack.c.bf16 %v2542, %v2541
        %v2825 = vpack.c.bf16 %v2574, %v2573
        %v2826 = vpack.c.bf16 %v2606, %v2605
        %v2827 = vpack.c.bf16 %v2638, %v2637
        %v2828 = vpack.c.bf16 %v2671, %v2670
        %v2829 = vpack.c.bf16 %v2703, %v2702
        %v2830 = vpack.c.bf16 %v2735, %v2734
        %v2831 = vpack.c.bf16 %v2480, %v2479
        %v2832 = vpack.c.bf16 %v2512, %v2511
        %v2833 = vpack.c.bf16 %v2544, %v2543
        %v2834 = vpack.c.bf16 %v2576, %v2575
        %v2835 = vpack.c.bf16 %v2608, %v2607
        %v2836 = vpack.c.bf16 %v2640, %v2639
        %v2837 = vpack.c.bf16 %v2673, %v2672
        %v2838 = vpack.c.bf16 %v2705, %v2704
        %v2839 = vpack.c.bf16 %v2737, %v2736
        %v2840 = vpack.c.bf16 %v2482, %v2481
        %v2841 = vpack.c.bf16 %v2514, %v2513
        %v2842 = vpack.c.bf16 %v2546, %v2545
        %v2843 = vpack.c.bf16 %v2578, %v2577
        %v2844 = vpack.c.bf16 %v2610, %v2609
        %v2845 = vpack.c.bf16 %v2642, %v2641
        %v2846 = vpack.c.bf16 %v2675, %v2674
        %v2847 = vpack.c.bf16 %v2707, %v2706
        %v2848 = vpack.c.bf16 %v2739, %v2738
        %v2849 = vpack.c.bf16 %v2484, %v2483
        %v2850 = vpack.c.bf16 %v2516, %v2515
        %v2851 = vpack.c.bf16 %v2548, %v2547
        %v2852 = vpack.c.bf16 %v2580, %v2579
        %v2853 = vpack.c.bf16 %v2612, %v2611
        %v2854 = vpack.c.bf16 %v2644, %v2643
        %v2855 = vpack.c.bf16 %v2677, %v2676
        %v2856 = vpack.c.bf16 %v2709, %v2708
        %v2857 = vpack.c.bf16 %v2741, %v2740
        %v2858 = vpack.c.bf16 %v2486, %v2485
        %v2859 = vpack.c.bf16 %v2518, %v2517
        %v2860 = vpack.c.bf16 %v2550, %v2549
        %v2861 = vpack.c.bf16 %v2582, %v2581
        %v2862 = vpack.c.bf16 %v2614, %v2613
        %v2863 = vpack.c.bf16 %v2646, %v2645
        %v2864 = vpack.c.bf16 %v2679, %v2678
        %v2865 = vpack.c.bf16 %v2711, %v2710
        %v2866 = vpack.c.bf16 %v2743, %v2742
        %v2867 = vpack.c.bf16 %v2488, %v2487
        %v2868 = vpack.c.bf16 %v2520, %v2519
        %v2869 = vpack.c.bf16 %v2552, %v2551
        %v2870 = vpack.c.bf16 %v2584, %v2583
        %v2871 = vpack.c.bf16 %v2616, %v2615
        %v2872 = vpack.c.bf16 %v2648, %v2647
        %v2873 = vpack.c.bf16 %v2681, %v2680
        %v2874 = vpack.c.bf16 %v2713, %v2712
        %v2875 = vpack.c.bf16 %v2745, %v2744
        %v2876 = vpack.c.bf16 %v2490, %v2489
        %v2877 = vpack.c.bf16 %v2522, %v2521
        %v2878 = vpack.c.bf16 %v2554, %v2553
        %v2879 = vpack.c.bf16 %v2586, %v2585
        %v2880 = vpack.c.bf16 %v2618, %v2617
        %v2881 = vpack.c.bf16 %v2650, %v2649
        %v2882 = vpack.c.bf16 %v2683, %v2682
        %v2883 = vpack.c.bf16 %v2715, %v2714
        %v2884 = vpack.c.bf16 %v2747, %v2746
        %v2885 = vpack.c.bf16 %v2492, %v2491
        %v2886 = vpack.c.bf16 %v2524, %v2523
        %v2887 = vpack.c.bf16 %v2556, %v2555
        %v2888 = vpack.c.bf16 %v2588, %v2587
        %v2889 = vpack.c.bf16 %v2620, %v2619
        %v2890 = vpack.c.bf16 %v2652, %v2651
        %v2891 = vpack.c.bf16 %v2685, %v2684
        %v2892 = vpack.c.bf16 %v2717, %v2716
        %v2893 = vpack.c.bf16 %v2749, %v2748
        %v2894 = vld [vmem:[#allocation9] sm:$0xf]
        %v2895 = vld [vmem:[#allocation9 + $0x4] sm:$0xf]
        %v2896 = vld [vmem:[#allocation9 + $0x8] sm:$0xf]
        %v2897 = vld [vmem:[#allocation9 + $0xc] sm:$0xf]
        %v2898 = vld [vmem:[#allocation9 + $0x10] sm:$0xf]
        %v2899 = vld [vmem:[#allocation9 + $0x14] sm:$0xf]
        %v2900 = vld [vmem:[#allocation9 + $0x18] sm:$0xf]
        %v2901 = vld [vmem:[#allocation9 + $0x1c] sm:$0xf]
        %v2902 = vld [vmem:[#allocation9 + $0x20] sm:$0xf]
        %v2903 = vld [vmem:[#allocation9 + $0x24] sm:$0xf]
        %v2904 = vld [vmem:[#allocation9 + $0x28] sm:$0xf]
        %v2905 = vld [vmem:[#allocation9 + $0x2c] sm:$0xf]
        %v2906 = vld [vmem:[#allocation9 + $0x30] sm:$0xf]
        %v2907 = vld [vmem:[#allocation9 + $0x34] sm:$0xf]
        %v2908 = vld [vmem:[#allocation9 + $0x38] sm:$0xf]
        %v2909 = vld [vmem:[#allocation9 + $0x3c] sm:$0xf]
        %v2910 = vld [vmem:[#allocation9 + $0x40] sm:$0xf]
        %v2911 = vld [vmem:[#allocation9 + $0x44] sm:$0xf]
        %v2912 = vld [vmem:[#allocation9 + $0x48] sm:$0xf]
        %v2913 = vld [vmem:[#allocation9 + $0x4c] sm:$0xf]
        %v2914 = vld [vmem:[#allocation9 + $0x50] sm:$0xf]
        %v2915 = vld [vmem:[#allocation9 + $0x54] sm:$0xf]
        %v2916 = vld [vmem:[#allocation9 + $0x58] sm:$0xf]
        %v2917 = vld [vmem:[#allocation9 + $0x5c] sm:$0xf]
        %v2918 = vld [vmem:[#allocation9 + $0x60] sm:$0xf]
        %v2919 = vld [vmem:[#allocation9 + $0x64] sm:$0xf]
        %v2920 = vld [vmem:[#allocation9 + $0x68] sm:$0xf]
        %v2921 = vld [vmem:[#allocation9 + $0x6c] sm:$0xf]
        %v2922 = vld [vmem:[#allocation9 + $0x70] sm:$0xf]
        %v2923 = vld [vmem:[#allocation9 + $0x74] sm:$0xf]
        %v2924 = vld [vmem:[#allocation9 + $0x78] sm:$0xf]
        %v2925 = vld [vmem:[#allocation9 + $0x7c] sm:$0xf]
        %v2926 = vld [vmem:[#allocation9 + $0x80] sm:$0xf]
        %v2927 = vld [vmem:[#allocation9 + $0x84] sm:$0xf]
        %v2928 = vld [vmem:[#allocation9 + $0x88] sm:$0xf]
        %v2929 = vld [vmem:[#allocation9 + $0x8c] sm:$0xf]
        %v2930 = vld [vmem:[#allocation9 + $0x90] sm:$0xf]
        %v2931 = vld [vmem:[#allocation9 + $0x94] sm:$0xf]
        %v2932 = vld [vmem:[#allocation9 + $0x98] sm:$0xf]
        %v2933 = vld [vmem:[#allocation9 + $0x9c] sm:$0xf]
        %v2934 = vld [vmem:[#allocation9 + $0xa0] sm:$0xf]
        %v2935 = vld [vmem:[#allocation9 + $0xa4] sm:$0xf]
        %v2936 = vld [vmem:[#allocation9 + $0xa8] sm:$0xf]
        %v2937 = vld [vmem:[#allocation9 + $0xac] sm:$0xf]
        %v2938 = vld [vmem:[#allocation9 + $0xb0] sm:$0xf]
        %v2939 = vld [vmem:[#allocation9 + $0xb4] sm:$0xf]
        %v2940 = vld [vmem:[#allocation9 + $0xb8] sm:$0xf]
        %v2941 = vld [vmem:[#allocation9 + $0xbc] sm:$0xf]
        %v2942 = vld [vmem:[#allocation9 + $0xc0] sm:$0xf]
        %v2943 = vld [vmem:[#allocation9 + $0xc4] sm:$0xf]
        %v2944 = vld [vmem:[#allocation9 + $0xc8] sm:$0xf]
        %v2945 = vld [vmem:[#allocation9 + $0xcc] sm:$0xf]
        %v2946 = vld [vmem:[#allocation9 + $0xd0] sm:$0xf]
        %v2947 = vld [vmem:[#allocation9 + $0xd4] sm:$0xf]
        %v2948 = vld [vmem:[#allocation9 + $0xd8] sm:$0xf]
        %v2949 = vld [vmem:[#allocation9 + $0xdc] sm:$0xf]
        %v2950 = vld [vmem:[#allocation9 + $0xe0] sm:$0xf]
        %v2951 = vld [vmem:[#allocation9 + $0xe4] sm:$0xf]
        %v2952 = vld [vmem:[#allocation9 + $0xe8] sm:$0xf]
        %v2953 = vld [vmem:[#allocation9 + $0xec] sm:$0xf]
        %v2954 = vld [vmem:[#allocation9 + $0xf0] sm:$0xf]
        %v2955 = vld [vmem:[#allocation9 + $0xf4] sm:$0xf]
        %v2956 = vld [vmem:[#allocation9 + $0xf8] sm:$0xf]
        %v2957 = vld [vmem:[#allocation9 + $0xfc] sm:$0xf]
        %v2958 = vld [vmem:[#allocation9 + $0x100] sm:$0xf]
        %v2959 = vld [vmem:[#allocation9 + $0x104] sm:$0xf]
        %v2960 = vld [vmem:[#allocation9 + $0x108] sm:$0xf]
        %v2961 = vld [vmem:[#allocation9 + $0x10c] sm:$0xf]
        %v2962 = vld [vmem:[#allocation9 + $0x110] sm:$0xf]
        %v2963 = vld [vmem:[#allocation9 + $0x114] sm:$0xf]
        %v2964 = vld [vmem:[#allocation9 + $0x118] sm:$0xf]
        %v2965 = vld [vmem:[#allocation9 + $0x11c] sm:$0xf]
        %v2966 = vld [vmem:[#allocation9 + $0x120] sm:$0xf]
        %v2967 = vld [vmem:[#allocation9 + $0x124] sm:$0xf]
        %v2968 = vld [vmem:[#allocation9 + $0x128] sm:$0xf]
        %v2969 = vld [vmem:[#allocation9 + $0x12c] sm:$0xf]
        %v2970 = vld [vmem:[#allocation9 + $0x130] sm:$0xf]
        %v2971 = vld [vmem:[#allocation9 + $0x134] sm:$0xf]
        %v2972 = vld [vmem:[#allocation9 + $0x138] sm:$0xf]
        %v2973 = vld [vmem:[#allocation9 + $0x13c] sm:$0xf]
        %v2974 = vld [vmem:[#allocation9 + $0x140] sm:$0xf]
        %v2975 = vld [vmem:[#allocation9 + $0x144] sm:$0xf]
        %v2976 = vld [vmem:[#allocation9 + $0x148] sm:$0xf]
        %v2977 = vld [vmem:[#allocation9 + $0x14c] sm:$0xf]
        %v2978 = vld [vmem:[#allocation9 + $0x150] sm:$0xf]
        %v2979 = vld [vmem:[#allocation9 + $0x154] sm:$0xf]
        %v2980 = vld [vmem:[#allocation9 + $0x158] sm:$0xf]
        %v2981 = vld [vmem:[#allocation9 + $0x15c] sm:$0xf]
        %v2982 = vld [vmem:[#allocation9 + $0x160] sm:$0xf]
        %v2983 = vld [vmem:[#allocation9 + $0x164] sm:$0xf]
        %v2984 = vld [vmem:[#allocation9 + $0x168] sm:$0xf]
        %v2985 = vld [vmem:[#allocation9 + $0x16c] sm:$0xf]
        %v2986 = vld [vmem:[#allocation9 + $0x170] sm:$0xf]
        %v2987 = vld [vmem:[#allocation9 + $0x174] sm:$0xf]
        %v2988 = vld [vmem:[#allocation9 + $0x178] sm:$0xf]
        %v2989 = vld [vmem:[#allocation9 + $0x17c] sm:$0xf]
        %v2990 = vld [vmem:[#allocation9 + $0x180] sm:$0xf]
        %v2991 = vld [vmem:[#allocation9 + $0x184] sm:$0xf]
        %v2992 = vld [vmem:[#allocation9 + $0x188] sm:$0xf]
        %v2993 = vld [vmem:[#allocation9 + $0x18c] sm:$0xf]
        %v2994 = vld [vmem:[#allocation9 + $0x190] sm:$0xf]
        %v2995 = vld [vmem:[#allocation9 + $0x194] sm:$0xf]
        %v2996 = vld [vmem:[#allocation9 + $0x198] sm:$0xf]
        %v2997 = vld [vmem:[#allocation9 + $0x19c] sm:$0xf]
        %v2998 = vld [vmem:[#allocation9 + $0x1a0] sm:$0xf]
        %v2999 = vld [vmem:[#allocation9 + $0x1a4] sm:$0xf]
        %v3000 = vld [vmem:[#allocation9 + $0x1a8] sm:$0xf]
        %v3001 = vld [vmem:[#allocation9 + $0x1ac] sm:$0xf]
        %v3002 = vld [vmem:[#allocation9 + $0x1b0] sm:$0xf]
        %v3003 = vld [vmem:[#allocation9 + $0x1b4] sm:$0xf]
        %v3004 = vld [vmem:[#allocation9 + $0x1b8] sm:$0xf]
        %v3005 = vld [vmem:[#allocation9 + $0x1bc] sm:$0xf]
        %v3006 = vld [vmem:[#allocation9 + $0x1c0] sm:$0xf]
        %v3007 = vld [vmem:[#allocation9 + $0x1c4] sm:$0xf]
        %v3008 = vld [vmem:[#allocation9 + $0x1c8] sm:$0xf]
        %v3009 = vld [vmem:[#allocation9 + $0x1cc] sm:$0xf]
        %v3010 = vld [vmem:[#allocation9 + $0x1d0] sm:$0xf]
        %v3011 = vld [vmem:[#allocation9 + $0x1d4] sm:$0xf]
        %v3012 = vld [vmem:[#allocation9 + $0x1d8] sm:$0xf]
        %v3013 = vld [vmem:[#allocation9 + $0x1dc] sm:$0xf]
        %v3014 = vld [vmem:[#allocation9 + $0x1e0] sm:$0xf]
        %v3015 = vld [vmem:[#allocation9 + $0x1e4] sm:$0xf]
        %v3016 = vld [vmem:[#allocation9 + $0x1e8] sm:$0xf]
        %v3017 = vld [vmem:[#allocation9 + $0x1ec] sm:$0xf]
        %v3018 = vld [vmem:[#allocation9 + $0x1f0] sm:$0xf]
        %v3019 = vld [vmem:[#allocation9 + $0x1f4] sm:$0xf]
        %v3020 = vld [vmem:[#allocation9 + $0x1f8] sm:$0xf]
        %v3021 = vld [vmem:[#allocation9 + $0x1fc] sm:$0xf]
        %v3022 = vld [vmem:[#allocation9 + $0x200] sm:$0xf]
        %v3023 = vld [vmem:[#allocation9 + $0x204] sm:$0xf]
        %v3024 = vld [vmem:[#allocation9 + $0x208] sm:$0xf]
        %v3025 = vld [vmem:[#allocation9 + $0x20c] sm:$0xf]
        %v3026 = vld [vmem:[#allocation9 + $0x210] sm:$0xf]
        %v3027 = vld [vmem:[#allocation9 + $0x214] sm:$0xf]
        %v3028 = vld [vmem:[#allocation9 + $0x218] sm:$0xf]
        %v3029 = vld [vmem:[#allocation9 + $0x21c] sm:$0xf]
        %v3030 = vld [vmem:[#allocation9 + $0x220] sm:$0xf]
        %v3031 = vld [vmem:[#allocation9 + $0x224] sm:$0xf]
        %v3032 = vld [vmem:[#allocation9 + $0x228] sm:$0xf]
        %v3033 = vld [vmem:[#allocation9 + $0x22c] sm:$0xf]
        %v3034 = vld [vmem:[#allocation9 + $0x230] sm:$0xf]
        %v3035 = vld [vmem:[#allocation9 + $0x234] sm:$0xf]
        %v3036 = vld [vmem:[#allocation9 + $0x238] sm:$0xf]
        %v3037 = vld [vmem:[#allocation9 + $0x23c] sm:$0xf]
        %v3182 = vunpack.c.l.b16 %v2894
        %v3183 = vunpack.c.l.b16 %v2895
        %v3184 = vunpack.c.l.b16 %v2896
        %v3185 = vunpack.c.l.b16 %v2897
        %v3186 = vunpack.c.l.b16 %v2898
        %v3187 = vunpack.c.l.b16 %v2899
        %v3188 = vunpack.c.l.b16 %v2900
        %v3189 = vunpack.c.l.b16 %v2901
        %v3190 = vunpack.c.l.b16 %v2902
        %v3191 = vunpack.c.l.b16 %v2903
        %v3192 = vunpack.c.l.b16 %v2904
        %v3193 = vunpack.c.l.b16 %v2905
        %v3194 = vunpack.c.l.b16 %v2906
        %v3195 = vunpack.c.l.b16 %v2907
        %v3196 = vunpack.c.l.b16 %v2908
        %v3197 = vunpack.c.l.b16 %v2909
        %v3198 = vunpack.c.l.b16 %v2910
        %v3199 = vunpack.c.l.b16 %v2911
        %v3200 = vunpack.c.l.b16 %v2912
        %v3201 = vunpack.c.l.b16 %v2913
        %v3202 = vunpack.c.l.b16 %v2914
        %v3203 = vunpack.c.l.b16 %v2915
        %v3204 = vunpack.c.l.b16 %v2916
        %v3205 = vunpack.c.l.b16 %v2917
        %v3206 = vunpack.c.l.b16 %v2918
        %v3207 = vunpack.c.l.b16 %v2919
        %v3208 = vunpack.c.l.b16 %v2920
        %v3209 = vunpack.c.l.b16 %v2921
        %v3210 = vunpack.c.l.b16 %v2922
        %v3211 = vunpack.c.l.b16 %v2923
        %v3212 = vunpack.c.l.b16 %v2924
        %v3213 = vunpack.c.l.b16 %v2925
        %v3214 = vunpack.c.l.b16 %v2926
        %v3215 = vunpack.c.l.b16 %v2927
        %v3216 = vunpack.c.l.b16 %v2928
        %v3217 = vunpack.c.l.b16 %v2929
        %v3218 = vunpack.c.l.b16 %v2930
        %v3219 = vunpack.c.l.b16 %v2931
        %v3220 = vunpack.c.l.b16 %v2932
        %v3221 = vunpack.c.l.b16 %v2933
        %v3222 = vunpack.c.l.b16 %v2934
        %v3223 = vunpack.c.l.b16 %v2935
        %v3224 = vunpack.c.l.b16 %v2936
        %v3225 = vunpack.c.l.b16 %v2937
        %v3226 = vunpack.c.l.b16 %v2938
        %v3227 = vunpack.c.l.b16 %v2939
        %v3228 = vunpack.c.l.b16 %v2940
        %v3229 = vunpack.c.l.b16 %v2941
        %v3230 = vunpack.c.l.b16 %v2942
        %v3231 = vunpack.c.l.b16 %v2943
        %v3232 = vunpack.c.l.b16 %v2944
        %v3233 = vunpack.c.l.b16 %v2945
        %v3234 = vunpack.c.l.b16 %v2946
        %v3235 = vunpack.c.l.b16 %v2947
        %v3236 = vunpack.c.l.b16 %v2948
        %v3237 = vunpack.c.l.b16 %v2949
        %v3238 = vunpack.c.l.b16 %v2950
        %v3239 = vunpack.c.l.b16 %v2951
        %v3240 = vunpack.c.l.b16 %v2952
        %v3241 = vunpack.c.l.b16 %v2953
        %v3242 = vunpack.c.l.b16 %v2954
        %v3243 = vunpack.c.l.b16 %v2955
        %v3244 = vunpack.c.l.b16 %v2956
        %v3245 = vunpack.c.l.b16 %v2957
        %v3246 = vunpack.c.l.b16 %v2958
        %v3247 = vunpack.c.l.b16 %v2959
        %v3248 = vunpack.c.l.b16 %v2960
        %v3249 = vunpack.c.l.b16 %v2961
        %v3250 = vunpack.c.l.b16 %v2962
        %v3251 = vunpack.c.l.b16 %v2963
        %v3252 = vunpack.c.l.b16 %v2964
        %v3253 = vunpack.c.l.b16 %v2965
        %v3254 = vunpack.c.l.b16 %v2966
        %v3255 = vunpack.c.l.b16 %v2967
        %v3256 = vunpack.c.l.b16 %v2968
        %v3257 = vunpack.c.l.b16 %v2969
        %v3258 = vunpack.c.l.b16 %v2970
        %v3259 = vunpack.c.l.b16 %v2971
        %v3260 = vunpack.c.l.b16 %v2972
        %v3261 = vunpack.c.l.b16 %v2973
        %v3262 = vunpack.c.l.b16 %v2974
        %v3263 = vunpack.c.l.b16 %v2975
        %v3264 = vunpack.c.l.b16 %v2976
        %v3265 = vunpack.c.l.b16 %v2977
        %v3266 = vunpack.c.l.b16 %v2978
        %v3267 = vunpack.c.l.b16 %v2979
        %v3268 = vunpack.c.l.b16 %v2980
        %v3269 = vunpack.c.l.b16 %v2981
        %v3270 = vunpack.c.l.b16 %v2982
        %v3271 = vunpack.c.l.b16 %v2983
        %v3272 = vunpack.c.l.b16 %v2984
        %v3273 = vunpack.c.l.b16 %v2985
        %v3274 = vunpack.c.l.b16 %v2986
        %v3275 = vunpack.c.l.b16 %v2987
        %v3276 = vunpack.c.l.b16 %v2988
        %v3277 = vunpack.c.l.b16 %v2989
        %v3278 = vunpack.c.l.b16 %v2990
        %v3279 = vunpack.c.l.b16 %v2991
        %v3280 = vunpack.c.l.b16 %v2992
        %v3281 = vunpack.c.l.b16 %v2993
        %v3282 = vunpack.c.l.b16 %v2994
        %v3283 = vunpack.c.l.b16 %v2995
        %v3284 = vunpack.c.l.b16 %v2996
        %v3285 = vunpack.c.l.b16 %v2997
        %v3286 = vunpack.c.l.b16 %v2998
        %v3287 = vunpack.c.l.b16 %v2999
        %v3288 = vunpack.c.l.b16 %v3000
        %v3289 = vunpack.c.l.b16 %v3001
        %v3290 = vunpack.c.l.b16 %v3002
        %v3291 = vunpack.c.l.b16 %v3003
        %v3292 = vunpack.c.l.b16 %v3004
        %v3293 = vunpack.c.l.b16 %v3005
        %v3294 = vunpack.c.l.b16 %v3006
        %v3295 = vunpack.c.l.b16 %v3007
        %v3296 = vunpack.c.l.b16 %v3008
        %v3297 = vunpack.c.l.b16 %v3009
        %v3298 = vunpack.c.l.b16 %v3010
        %v3299 = vunpack.c.l.b16 %v3011
        %v3300 = vunpack.c.l.b16 %v3012
        %v3301 = vunpack.c.l.b16 %v3013
        %v3302 = vunpack.c.l.b16 %v3014
        %v3303 = vunpack.c.l.b16 %v3015
        %v3304 = vunpack.c.l.b16 %v3016
        %v3305 = vunpack.c.l.b16 %v3017
        %v3306 = vunpack.c.l.b16 %v3018
        %v3307 = vunpack.c.l.b16 %v3019
        %v3308 = vunpack.c.l.b16 %v3020
        %v3309 = vunpack.c.l.b16 %v3021
        %v3310 = vunpack.c.l.b16 %v3022
        %v3311 = vunpack.c.l.b16 %v3023
        %v3312 = vunpack.c.l.b16 %v3024
        %v3313 = vunpack.c.l.b16 %v3025
        %v3314 = vunpack.c.l.b16 %v3026
        %v3315 = vunpack.c.l.b16 %v3027
        %v3316 = vunpack.c.l.b16 %v3028
        %v3317 = vunpack.c.l.b16 %v3029
        %v3318 = vunpack.c.l.b16 %v3030
        %v3319 = vunpack.c.l.b16 %v3031
        %v3320 = vunpack.c.l.b16 %v3032
        %v3321 = vunpack.c.l.b16 %v3033
        %v3322 = vunpack.c.l.b16 %v3034
        %v3323 = vunpack.c.l.b16 %v3035
        %v3324 = vunpack.c.l.b16 %v3036
        %v3325 = vunpack.c.l.b16 %v3037
        %v3326 = vpack.c.b16 %v3183, %v3182
        %v3327 = vpack.c.b16 %v3185, %v3184
        %v3328 = vpack.c.b16 %v3187, %v3186
        %v3329 = vpack.c.b16 %v3189, %v3188
        %v3330 = vpack.c.b16 %v3191, %v3190
        %v3331 = vpack.c.b16 %v3193, %v3192
        %v3332 = vpack.c.b16 %v3195, %v3194
        %v3333 = vpack.c.b16 %v3197, %v3196
        %v3334 = vpack.c.b16 %v3199, %v3198
        %v3335 = vpack.c.b16 %v3201, %v3200
        %v3336 = vpack.c.b16 %v3203, %v3202
        %v3337 = vpack.c.b16 %v3205, %v3204
        %v3338 = vpack.c.b16 %v3207, %v3206
        %v3339 = vpack.c.b16 %v3209, %v3208
        %v3340 = vpack.c.b16 %v3211, %v3210
        %v3341 = vpack.c.b16 %v3213, %v3212
        %v3342 = vpack.c.b16 %v3215, %v3214
        %v3343 = vpack.c.b16 %v3217, %v3216
        %v3344 = vpack.c.b16 %v3219, %v3218
        %v3345 = vpack.c.b16 %v3221, %v3220
        %v3346 = vpack.c.b16 %v3223, %v3222
        %v3347 = vpack.c.b16 %v3225, %v3224
        %v3348 = vpack.c.b16 %v3227, %v3226
        %v3349 = vpack.c.b16 %v3229, %v3228
        %v3350 = vpack.c.b16 %v3231, %v3230
        %v3351 = vpack.c.b16 %v3233, %v3232
        %v3352 = vpack.c.b16 %v3235, %v3234
        %v3353 = vpack.c.b16 %v3237, %v3236
        %v3354 = vpack.c.b16 %v3239, %v3238
        %v3355 = vpack.c.b16 %v3241, %v3240
        %v3356 = vpack.c.b16 %v3243, %v3242
        %v3357 = vpack.c.b16 %v3245, %v3244
        %v3358 = vpack.c.b16 %v3247, %v3246
        %v3359 = vpack.c.b16 %v3249, %v3248
        %v3360 = vpack.c.b16 %v3251, %v3250
        %v3361 = vpack.c.b16 %v3253, %v3252
        %v3362 = vpack.c.b16 %v3255, %v3254
        %v3363 = vpack.c.b16 %v3257, %v3256
        %v3364 = vpack.c.b16 %v3259, %v3258
        %v3365 = vpack.c.b16 %v3261, %v3260
        %v3366 = vpack.c.b16 %v3263, %v3262
        %v3367 = vpack.c.b16 %v3265, %v3264
        %v3368 = vpack.c.b16 %v3267, %v3266
        %v3369 = vpack.c.b16 %v3269, %v3268
        %v3370 = vpack.c.b16 %v3271, %v3270
        %v3371 = vpack.c.b16 %v3273, %v3272
        %v3372 = vpack.c.b16 %v3275, %v3274
        %v3373 = vpack.c.b16 %v3277, %v3276
        %v3374 = vpack.c.b16 %v3279, %v3278
        %v3375 = vpack.c.b16 %v3281, %v3280
        %v3376 = vpack.c.b16 %v3283, %v3282
        %v3377 = vpack.c.b16 %v3285, %v3284
        %v3378 = vpack.c.b16 %v3287, %v3286
        %v3379 = vpack.c.b16 %v3289, %v3288
        %v3380 = vpack.c.b16 %v3291, %v3290
        %v3381 = vpack.c.b16 %v3293, %v3292
        %v3382 = vpack.c.b16 %v3295, %v3294
        %v3383 = vpack.c.b16 %v3297, %v3296
        %v3384 = vpack.c.b16 %v3299, %v3298
        %v3385 = vpack.c.b16 %v3301, %v3300
        %v3386 = vpack.c.b16 %v3303, %v3302
        %v3387 = vpack.c.b16 %v3305, %v3304
        %v3388 = vpack.c.b16 %v3307, %v3306
        %v3389 = vpack.c.b16 %v3309, %v3308
        %v3390 = vpack.c.b16 %v3311, %v3310
        %v3391 = vpack.c.b16 %v3313, %v3312
        %v3392 = vpack.c.b16 %v3315, %v3314
        %v3393 = vpack.c.b16 %v3317, %v3316
        %v3394 = vpack.c.b16 %v3319, %v3318
        %v3395 = vpack.c.b16 %v3321, %v3320
        %v3396 = vpack.c.b16 %v3323, %v3322
        %v3397 = vpack.c.b16 %v3325, %v3324
        %3470 = vmatprep.subr.bf16.mxu0 0
        %3471 = vmatpush1.bf16.msra.mxu0 %v3333
        %3472 = vmatprep.subr.bf16.mxu0 0
        %3473 = vmatpush1.bf16.msra.mxu0 %v3332
        %3474 = vmatprep.subr.bf16.mxu0 0
        %3475 = vmatpush1.bf16.msra.mxu0 %v3331
        %3476 = vmatprep.subr.bf16.mxu0 0
        %3477 = vmatpush1.bf16.msra.mxu0 %v3330
        %3478 = vmatprep.subr.bf16.mxu0 0
        %3479 = vmatpush1.bf16.msra.mxu0 %v3329
        %3480 = vmatprep.subr.bf16.mxu0 0
        %3481 = vmatpush1.bf16.msra.mxu0 %v3328
        %3482 = vmatprep.subr.bf16.mxu0 0
        %3483 = vmatpush1.bf16.msra.mxu0 %v3327
        %3484 = vmatprep.subr.bf16.mxu0 0
        %3485 = vmatpush1.bf16.msra.mxu0 %v3326
        %3486 = vmatprep.subr.bf16.mxu0 0
        %3487 = vmatpush2.bf16.msra.mxu0 %v3341
        %3488 = vmatprep.subr.bf16.mxu0 0
        %3489 = vmatpush2.bf16.msra.mxu0 %v3340
        %3490 = vmatprep.subr.bf16.mxu0 0
        %3491 = vmatpush2.bf16.msra.mxu0 %v3339
        %3492 = vmatprep.subr.bf16.mxu0 0
        %3493 = vmatpush2.bf16.msra.mxu0 %v3338
        %3494 = vmatprep.subr.bf16.mxu0 0
        %3495 = vmatpush2.bf16.msra.mxu0 %v3337
        %3496 = vmatprep.subr.bf16.mxu0 0
        %3497 = vmatpush2.bf16.msra.mxu0 %v3336
        %3498 = vmatprep.subr.bf16.mxu0 0
        %3499 = vmatpush2.bf16.msra.mxu0 %v3335
        %3500 = vmatprep.subr.bf16.mxu0 0
        %3501 = vmatpush2.bf16.msra.mxu0 %v3334
        %3502 = vmatprep.mubr.bf16.mxu0 %v2751
        %3503 = vmatmul.mubr.bf16.gmra.mxu0 %v2750
        %v3504 = vpop.f32.mrf.mxu0
        %v3505 = vadd.f32 0.0, %v3504
        %v3506 = vpop.f32.mrf.mxu0
        %v3507 = vpop.f32.mrf.mxu0
        %v3508 = vadd.f32 0.0, %v3507
        %v3509 = vpop.f32.mrf.mxu0
        %3510 = vmatprep.mubr.bf16.mxu0 %v2760
        %3511 = vmatmul.mubr.bf16.gmra.mxu0 %v2759
        %v3512 = vpop.f32.mrf.mxu0
        %v3513 = vadd.f32 0.0, %v3512
        %v3514 = vpop.f32.mrf.mxu0
        %v3515 = vpop.f32.mrf.mxu0
        %v3516 = vadd.f32 0.0, %v3515
        %v3517 = vpop.f32.mrf.mxu0
        %3518 = vmatprep.mubr.bf16.mxu0 %v2769
        %3519 = vmatmul.mubr.bf16.gmra.mxu0 %v2768
        %v3520 = vpop.f32.mrf.mxu0
        %v3521 = vadd.f32 0.0, %v3520
        %v3522 = vpop.f32.mrf.mxu0
        %v3523 = vpop.f32.mrf.mxu0
        %v3524 = vadd.f32 0.0, %v3523
        %v3525 = vpop.f32.mrf.mxu0
        %3526 = vmatprep.mubr.bf16.mxu0 %v2778
        %3527 = vmatmul.mubr.bf16.gmra.mxu0 %v2777
        %v3528 = vpop.f32.mrf.mxu0
        %v3529 = vadd.f32 0.0, %v3528
        %v3530 = vpop.f32.mrf.mxu0
        %v3531 = vpop.f32.mrf.mxu0
        %v3532 = vadd.f32 0.0, %v3531
        %v3533 = vpop.f32.mrf.mxu0
        %3534 = vmatprep.mubr.bf16.mxu0 %v2787
        %3535 = vmatmul.mubr.bf16.gmra.mxu0 %v2786
        %v3536 = vpop.f32.mrf.mxu0
        %v3537 = vadd.f32 0.0, %v3536
        %v3538 = vpop.f32.mrf.mxu0
        %v3539 = vpop.f32.mrf.mxu0
        %v3540 = vadd.f32 0.0, %v3539
        %v3541 = vpop.f32.mrf.mxu0
        %3542 = vmatprep.mubr.bf16.mxu0 %v2796
        %3543 = vmatmul.mubr.bf16.gmra.mxu0 %v2795
        %v3544 = vpop.f32.mrf.mxu0
        %v3545 = vadd.f32 0.0, %v3544
        %v3546 = vpop.f32.mrf.mxu0
        %v3547 = vpop.f32.mrf.mxu0
        %v3548 = vadd.f32 0.0, %v3547
        %v3549 = vpop.f32.mrf.mxu0
        %3550 = vmatprep.mubr.bf16.mxu0 %v2805
        %3551 = vmatmul.mubr.bf16.gmra.mxu0 %v2804
        %v3552 = vpop.f32.mrf.mxu0
        %v3553 = vadd.f32 0.0, %v3552
        %v3554 = vpop.f32.mrf.mxu0
        %v3555 = vpop.f32.mrf.mxu0
        %v3556 = vadd.f32 0.0, %v3555
        %v3557 = vpop.f32.mrf.mxu0
        %3558 = vmatprep.mubr.bf16.mxu0 %v2814
        %3559 = vmatmul.mubr.bf16.gmra.mxu0 %v2813
        %v3560 = vpop.f32.mrf.mxu0
        %v3561 = vadd.f32 0.0, %v3560
        %v3562 = vpop.f32.mrf.mxu0
        %v3563 = vpop.f32.mrf.mxu0
        %v3564 = vadd.f32 0.0, %v3563
        %v3565 = vpop.f32.mrf.mxu0
        %3566 = vmatprep.mubr.bf16.mxu0 %v2823
        %3567 = vmatmul.mubr.bf16.gmra.mxu0 %v2822
        %v3568 = vpop.f32.mrf.mxu0
        %v3569 = vadd.f32 0.0, %v3568
        %v3570 = vpop.f32.mrf.mxu0
        %v3571 = vpop.f32.mrf.mxu0
        %v3572 = vadd.f32 0.0, %v3571
        %v3573 = vpop.f32.mrf.mxu0
        %3574 = vmatprep.mubr.bf16.mxu0 %v2832
        %3575 = vmatmul.mubr.bf16.gmra.mxu0 %v2831
        %v3576 = vpop.f32.mrf.mxu0
        %v3577 = vadd.f32 0.0, %v3576
        %v3578 = vpop.f32.mrf.mxu0
        %v3579 = vpop.f32.mrf.mxu0
        %v3580 = vadd.f32 0.0, %v3579
        %v3581 = vpop.f32.mrf.mxu0
        %3582 = vmatprep.mubr.bf16.mxu0 %v2841
        %3583 = vmatmul.mubr.bf16.gmra.mxu0 %v2840
        %v3584 = vpop.f32.mrf.mxu0
        %v3585 = vadd.f32 0.0, %v3584
        %v3586 = vpop.f32.mrf.mxu0
        %v3587 = vpop.f32.mrf.mxu0
        %v3588 = vadd.f32 0.0, %v3587
        %v3589 = vpop.f32.mrf.mxu0
        %3590 = vmatprep.mubr.bf16.mxu0 %v2850
        %3591 = vmatmul.mubr.bf16.gmra.mxu0 %v2849
        %v3592 = vpop.f32.mrf.mxu0
        %v3593 = vadd.f32 0.0, %v3592
        %v3594 = vpop.f32.mrf.mxu0
        %v3595 = vpop.f32.mrf.mxu0
        %v3596 = vadd.f32 0.0, %v3595
        %v3597 = vpop.f32.mrf.mxu0
        %3598 = vmatprep.mubr.bf16.mxu0 %v2859
        %3599 = vmatmul.mubr.bf16.gmra.mxu0 %v2858
        %v3600 = vpop.f32.mrf.mxu0
        %v3601 = vadd.f32 0.0, %v3600
        %v3602 = vpop.f32.mrf.mxu0
        %v3603 = vpop.f32.mrf.mxu0
        %v3604 = vadd.f32 0.0, %v3603
        %v3605 = vpop.f32.mrf.mxu0
        %3606 = vmatprep.mubr.bf16.mxu0 %v2868
        %3607 = vmatmul.mubr.bf16.gmra.mxu0 %v2867
        %v3608 = vpop.f32.mrf.mxu0
        %v3609 = vadd.f32 0.0, %v3608
        %v3610 = vpop.f32.mrf.mxu0
        %v3611 = vpop.f32.mrf.mxu0
        %v3612 = vadd.f32 0.0, %v3611
        %v3613 = vpop.f32.mrf.mxu0
        %3614 = vmatprep.mubr.bf16.mxu0 %v2877
        %3615 = vmatmul.mubr.bf16.gmra.mxu0 %v2876
        %v3616 = vpop.f32.mrf.mxu0
        %v3617 = vadd.f32 0.0, %v3616
        %v3618 = vpop.f32.mrf.mxu0
        %v3619 = vpop.f32.mrf.mxu0
        %v3620 = vadd.f32 0.0, %v3619
        %v3621 = vpop.f32.mrf.mxu0
        %3622 = vmatprep.mubr.bf16.mxu0 %v2886
        %3623 = vmatmul.mubr.bf16.gmra.mxu0 %v2885
        %v3624 = vpop.f32.mrf.mxu0
        %v3625 = vadd.f32 0.0, %v3624
        %v3626 = vpop.f32.mrf.mxu0
        %v3627 = vpop.f32.mrf.mxu0
        %v3628 = vadd.f32 0.0, %v3627
        %v3629 = vpop.f32.mrf.mxu0
        %3630 = vdwg.mxu0
        %3631 = vmatprep.subr.bf16.mxu0 0
        %3632 = vmatpush1.bf16.msra.mxu0 %v3349
        %3633 = vmatprep.subr.bf16.mxu0 0
        %3634 = vmatpush1.bf16.msra.mxu0 %v3348
        %3635 = vmatprep.subr.bf16.mxu0 0
        %3636 = vmatpush1.bf16.msra.mxu0 %v3347
        %3637 = vmatprep.subr.bf16.mxu0 0
        %3638 = vmatpush1.bf16.msra.mxu0 %v3346
        %3639 = vmatprep.subr.bf16.mxu0 0
        %3640 = vmatpush1.bf16.msra.mxu0 %v3345
        %3641 = vmatprep.subr.bf16.mxu0 0
        %3642 = vmatpush1.bf16.msra.mxu0 %v3344
        %3643 = vmatprep.subr.bf16.mxu0 0
        %3644 = vmatpush1.bf16.msra.mxu0 %v3343
        %3645 = vmatprep.subr.bf16.mxu0 0
        %3646 = vmatpush1.bf16.msra.mxu0 %v3342
        %3647 = vmatprep.subr.bf16.mxu0 0
        %3648 = vmatpush2.bf16.msra.mxu0 %v3357
        %3649 = vmatprep.subr.bf16.mxu0 0
        %3650 = vmatpush2.bf16.msra.mxu0 %v3356
        %3651 = vmatprep.subr.bf16.mxu0 0
        %3652 = vmatpush2.bf16.msra.mxu0 %v3355
        %3653 = vmatprep.subr.bf16.mxu0 0
        %3654 = vmatpush2.bf16.msra.mxu0 %v3354
        %3655 = vmatprep.subr.bf16.mxu0 0
        %3656 = vmatpush2.bf16.msra.mxu0 %v3353
        %3657 = vmatprep.subr.bf16.mxu0 0
        %3658 = vmatpush2.bf16.msra.mxu0 %v3352
        %3659 = vmatprep.subr.bf16.mxu0 0
        %3660 = vmatpush2.bf16.msra.mxu0 %v3351
        %3661 = vmatprep.subr.bf16.mxu0 0
        %3662 = vmatpush2.bf16.msra.mxu0 %v3350
        %3663 = vmatprep.mubr.bf16.mxu0 %v2753
        %3664 = vmatmul.mubr.bf16.gmra.mxu0 %v2752
        %v3665 = vpop.f32.mrf.mxu0
        %v3666 = vadd.f32 %v3505, %v3665
        %v3667 = vpop.f32.mrf.mxu0
        %v3668 = vpop.f32.mrf.mxu0
        %v3669 = vadd.f32 %v3508, %v3668
        %v3670 = vpop.f32.mrf.mxu0
        %3671 = vmatprep.mubr.bf16.mxu0 %v2762
        %3672 = vmatmul.mubr.bf16.gmra.mxu0 %v2761
        %v3673 = vpop.f32.mrf.mxu0
        %v3674 = vadd.f32 %v3513, %v3673
        %v3675 = vpop.f32.mrf.mxu0
        %v3676 = vpop.f32.mrf.mxu0
        %v3677 = vadd.f32 %v3516, %v3676
        %v3678 = vpop.f32.mrf.mxu0
        %3679 = vmatprep.mubr.bf16.mxu0 %v2771
        %3680 = vmatmul.mubr.bf16.gmra.mxu0 %v2770
        %v3681 = vpop.f32.mrf.mxu0
        %v3682 = vadd.f32 %v3521, %v3681
        %v3683 = vpop.f32.mrf.mxu0
        %v3684 = vpop.f32.mrf.mxu0
        %v3685 = vadd.f32 %v3524, %v3684
        %v3686 = vpop.f32.mrf.mxu0
        %3687 = vmatprep.mubr.bf16.mxu0 %v2780
        %3688 = vmatmul.mubr.bf16.gmra.mxu0 %v2779
        %v3689 = vpop.f32.mrf.mxu0
        %v3690 = vadd.f32 %v3529, %v3689
        %v3691 = vpop.f32.mrf.mxu0
        %v3692 = vpop.f32.mrf.mxu0
        %v3693 = vadd.f32 %v3532, %v3692
        %v3694 = vpop.f32.mrf.mxu0
        %3695 = vmatprep.mubr.bf16.mxu0 %v2789
        %3696 = vmatmul.mubr.bf16.gmra.mxu0 %v2788
        %v3697 = vpop.f32.mrf.mxu0
        %v3698 = vadd.f32 %v3537, %v3697
        %v3699 = vpop.f32.mrf.mxu0
        %v3700 = vpop.f32.mrf.mxu0
        %v3701 = vadd.f32 %v3540, %v3700
        %v3702 = vpop.f32.mrf.mxu0
        %3703 = vmatprep.mubr.bf16.mxu0 %v2798
        %3704 = vmatmul.mubr.bf16.gmra.mxu0 %v2797
        %v3705 = vpop.f32.mrf.mxu0
        %v3706 = vadd.f32 %v3545, %v3705
        %v3707 = vpop.f32.mrf.mxu0
        %v3708 = vpop.f32.mrf.mxu0
        %v3709 = vadd.f32 %v3548, %v3708
        %v3710 = vpop.f32.mrf.mxu0
        %3711 = vmatprep.mubr.bf16.mxu0 %v2807
        %3712 = vmatmul.mubr.bf16.gmra.mxu0 %v2806
        %v3713 = vpop.f32.mrf.mxu0
        %v3714 = vadd.f32 %v3553, %v3713
        %v3715 = vpop.f32.mrf.mxu0
        %v3716 = vpop.f32.mrf.mxu0
        %v3717 = vadd.f32 %v3556, %v3716
        %v3718 = vpop.f32.mrf.mxu0
        %3719 = vmatprep.mubr.bf16.mxu0 %v2816
        %3720 = vmatmul.mubr.bf16.gmra.mxu0 %v2815
        %v3721 = vpop.f32.mrf.mxu0
        %v3722 = vadd.f32 %v3561, %v3721
        %v3723 = vpop.f32.mrf.mxu0
        %v3724 = vpop.f32.mrf.mxu0
        %v3725 = vadd.f32 %v3564, %v3724
        %v3726 = vpop.f32.mrf.mxu0
        %3727 = vmatprep.mubr.bf16.mxu0 %v2825
        %3728 = vmatmul.mubr.bf16.gmra.mxu0 %v2824
        %v3729 = vpop.f32.mrf.mxu0
        %v3730 = vadd.f32 %v3569, %v3729
        %v3731 = vpop.f32.mrf.mxu0
        %v3732 = vpop.f32.mrf.mxu0
        %v3733 = vadd.f32 %v3572, %v3732
        %v3734 = vpop.f32.mrf.mxu0
        %3735 = vmatprep.mubr.bf16.mxu0 %v2834
        %3736 = vmatmul.mubr.bf16.gmra.mxu0 %v2833
        %v3737 = vpop.f32.mrf.mxu0
        %v3738 = vadd.f32 %v3577, %v3737
        %v3739 = vpop.f32.mrf.mxu0
        %v3740 = vpop.f32.mrf.mxu0
        %v3741 = vadd.f32 %v3580, %v3740
        %v3742 = vpop.f32.mrf.mxu0
        %3743 = vmatprep.mubr.bf16.mxu0 %v2843
        %3744 = vmatmul.mubr.bf16.gmra.mxu0 %v2842
        %v3745 = vpop.f32.mrf.mxu0
        %v3746 = vadd.f32 %v3585, %v3745
        %v3747 = vpop.f32.mrf.mxu0
        %v3748 = vpop.f32.mrf.mxu0
        %v3749 = vadd.f32 %v3588, %v3748
        %v3750 = vpop.f32.mrf.mxu0
        %3751 = vmatprep.mubr.bf16.mxu0 %v2852
        %3752 = vmatmul.mubr.bf16.gmra.mxu0 %v2851
        %v3753 = vpop.f32.mrf.mxu0
        %v3754 = vadd.f32 %v3593, %v3753
        %v3755 = vpop.f32.mrf.mxu0
        %v3756 = vpop.f32.mrf.mxu0
        %v3757 = vadd.f32 %v3596, %v3756
        %v3758 = vpop.f32.mrf.mxu0
        %3759 = vmatprep.mubr.bf16.mxu0 %v2861
        %3760 = vmatmul.mubr.bf16.gmra.mxu0 %v2860
        %v3761 = vpop.f32.mrf.mxu0
        %v3762 = vadd.f32 %v3601, %v3761
        %v3763 = vpop.f32.mrf.mxu0
        %v3764 = vpop.f32.mrf.mxu0
        %v3765 = vadd.f32 %v3604, %v3764
        %v3766 = vpop.f32.mrf.mxu0
        %3767 = vmatprep.mubr.bf16.mxu0 %v2870
        %3768 = vmatmul.mubr.bf16.gmra.mxu0 %v2869
        %v3769 = vpop.f32.mrf.mxu0
        %v3770 = vadd.f32 %v3609, %v3769
        %v3771 = vpop.f32.mrf.mxu0
        %v3772 = vpop.f32.mrf.mxu0
        %v3773 = vadd.f32 %v3612, %v3772
        %v3774 = vpop.f32.mrf.mxu0
        %3775 = vmatprep.mubr.bf16.mxu0 %v2879
        %3776 = vmatmul.mubr.bf16.gmra.mxu0 %v2878
        %v3777 = vpop.f32.mrf.mxu0
        %v3778 = vadd.f32 %v3617, %v3777
        %v3779 = vpop.f32.mrf.mxu0
        %v3780 = vpop.f32.mrf.mxu0
        %v3781 = vadd.f32 %v3620, %v3780
        %v3782 = vpop.f32.mrf.mxu0
        %3783 = vmatprep.mubr.bf16.mxu0 %v2888
        %3784 = vmatmul.mubr.bf16.gmra.mxu0 %v2887
        %v3785 = vpop.f32.mrf.mxu0
        %v3786 = vadd.f32 %v3625, %v3785
        %v3787 = vpop.f32.mrf.mxu0
        %v3788 = vpop.f32.mrf.mxu0
        %v3789 = vadd.f32 %v3628, %v3788
        %v3790 = vpop.f32.mrf.mxu0
        %3791 = vdwg.mxu0
        %3792 = vmatprep.subr.bf16.mxu0 0
        %3793 = vmatpush1.bf16.msra.mxu0 %v3365
        %3794 = vmatprep.subr.bf16.mxu0 0
        %3795 = vmatpush1.bf16.msra.mxu0 %v3364
        %3796 = vmatprep.subr.bf16.mxu0 0
        %3797 = vmatpush1.bf16.msra.mxu0 %v3363
        %3798 = vmatprep.subr.bf16.mxu0 0
        %3799 = vmatpush1.bf16.msra.mxu0 %v3362
        %3800 = vmatprep.subr.bf16.mxu0 0
        %3801 = vmatpush1.bf16.msra.mxu0 %v3361
        %3802 = vmatprep.subr.bf16.mxu0 0
        %3803 = vmatpush1.bf16.msra.mxu0 %v3360
        %3804 = vmatprep.subr.bf16.mxu0 0
        %3805 = vmatpush1.bf16.msra.mxu0 %v3359
        %3806 = vmatprep.subr.bf16.mxu0 0
        %3807 = vmatpush1.bf16.msra.mxu0 %v3358
        %3808 = vmatprep.subr.bf16.mxu0 0
        %3809 = vmatpush2.bf16.msra.mxu0 %v3373
        %3810 = vmatprep.subr.bf16.mxu0 0
        %3811 = vmatpush2.bf16.msra.mxu0 %v3372
        %3812 = vmatprep.subr.bf16.mxu0 0
        %3813 = vmatpush2.bf16.msra.mxu0 %v3371
        %3814 = vmatprep.subr.bf16.mxu0 0
        %3815 = vmatpush2.bf16.msra.mxu0 %v3370
        %3816 = vmatprep.subr.bf16.mxu0 0
        %3817 = vmatpush2.bf16.msra.mxu0 %v3369
        %3818 = vmatprep.subr.bf16.mxu0 0
        %3819 = vmatpush2.bf16.msra.mxu0 %v3368
        %3820 = vmatprep.subr.bf16.mxu0 0
        %3821 = vmatpush2.bf16.msra.mxu0 %v3367
        %3822 = vmatprep.subr.bf16.mxu0 0
        %3823 = vmatpush2.bf16.msra.mxu0 %v3366
        %3824 = vmatprep.mubr.bf16.mxu0 %v2755
        %3825 = vmatmul.mubr.bf16.gmra.mxu0 %v2754
        %v3826 = vpop.f32.mrf.mxu0
        %v3827 = vadd.f32 %v3666, %v3826
        %v3828 = vpop.f32.mrf.mxu0
        %v3829 = vpop.f32.mrf.mxu0
        %v3830 = vadd.f32 %v3669, %v3829
        %v3831 = vpop.f32.mrf.mxu0
        %3832 = vmatprep.mubr.bf16.mxu0 %v2764
        %3833 = vmatmul.mubr.bf16.gmra.mxu0 %v2763
        %v3834 = vpop.f32.mrf.mxu0
        %v3835 = vadd.f32 %v3674, %v3834
        %v3836 = vpop.f32.mrf.mxu0
        %v3837 = vpop.f32.mrf.mxu0
        %v3838 = vadd.f32 %v3677, %v3837
        %v3839 = vpop.f32.mrf.mxu0
        %3840 = vmatprep.mubr.bf16.mxu0 %v2773
        %3841 = vmatmul.mubr.bf16.gmra.mxu0 %v2772
        %v3842 = vpop.f32.mrf.mxu0
        %v3843 = vadd.f32 %v3682, %v3842
        %v3844 = vpop.f32.mrf.mxu0
        %v3845 = vpop.f32.mrf.mxu0
        %v3846 = vadd.f32 %v3685, %v3845
        %v3847 = vpop.f32.mrf.mxu0
        %3848 = vmatprep.mubr.bf16.mxu0 %v2782
        %3849 = vmatmul.mubr.bf16.gmra.mxu0 %v2781
        %v3850 = vpop.f32.mrf.mxu0
        %v3851 = vadd.f32 %v3690, %v3850
        %v3852 = vpop.f32.mrf.mxu0
        %v3853 = vpop.f32.mrf.mxu0
        %v3854 = vadd.f32 %v3693, %v3853
        %v3855 = vpop.f32.mrf.mxu0
        %3856 = vmatprep.mubr.bf16.mxu0 %v2791
        %3857 = vmatmul.mubr.bf16.gmra.mxu0 %v2790
        %v3858 = vpop.f32.mrf.mxu0
        %v3859 = vadd.f32 %v3698, %v3858
        %v3860 = vpop.f32.mrf.mxu0
        %v3861 = vpop.f32.mrf.mxu0
        %v3862 = vadd.f32 %v3701, %v3861
        %v3863 = vpop.f32.mrf.mxu0
        %3864 = vmatprep.mubr.bf16.mxu0 %v2800
        %3865 = vmatmul.mubr.bf16.gmra.mxu0 %v2799
        %v3866 = vpop.f32.mrf.mxu0
        %v3867 = vadd.f32 %v3706, %v3866
        %v3868 = vpop.f32.mrf.mxu0
        %v3869 = vpop.f32.mrf.mxu0
        %v3870 = vadd.f32 %v3709, %v3869
        %v3871 = vpop.f32.mrf.mxu0
        %3872 = vmatprep.mubr.bf16.mxu0 %v2809
        %3873 = vmatmul.mubr.bf16.gmra.mxu0 %v2808
        %v3874 = vpop.f32.mrf.mxu0
        %v3875 = vadd.f32 %v3714, %v3874
        %v3876 = vpop.f32.mrf.mxu0
        %v3877 = vpop.f32.mrf.mxu0
        %v3878 = vadd.f32 %v3717, %v3877
        %v3879 = vpop.f32.mrf.mxu0
        %3880 = vmatprep.mubr.bf16.mxu0 %v2818
        %3881 = vmatmul.mubr.bf16.gmra.mxu0 %v2817
        %v3882 = vpop.f32.mrf.mxu0
        %v3883 = vadd.f32 %v3722, %v3882
        %v3884 = vpop.f32.mrf.mxu0
        %v3885 = vpop.f32.mrf.mxu0
        %v3886 = vadd.f32 %v3725, %v3885
        %v3887 = vpop.f32.mrf.mxu0
        %3888 = vmatprep.mubr.bf16.mxu0 %v2827
        %3889 = vmatmul.mubr.bf16.gmra.mxu0 %v2826
        %v3890 = vpop.f32.mrf.mxu0
        %v3891 = vadd.f32 %v3730, %v3890
        %v3892 = vpop.f32.mrf.mxu0
        %v3893 = vpop.f32.mrf.mxu0
        %v3894 = vadd.f32 %v3733, %v3893
        %v3895 = vpop.f32.mrf.mxu0
        %3896 = vmatprep.mubr.bf16.mxu0 %v2836
        %3897 = vmatmul.mubr.bf16.gmra.mxu0 %v2835
        %v3898 = vpop.f32.mrf.mxu0
        %v3899 = vadd.f32 %v3738, %v3898
        %v3900 = vpop.f32.mrf.mxu0
        %v3901 = vpop.f32.mrf.mxu0
        %v3902 = vadd.f32 %v3741, %v3901
        %v3903 = vpop.f32.mrf.mxu0
        %3904 = vmatprep.mubr.bf16.mxu0 %v2845
        %3905 = vmatmul.mubr.bf16.gmra.mxu0 %v2844
        %v3906 = vpop.f32.mrf.mxu0
        %v3907 = vadd.f32 %v3746, %v3906
        %v3908 = vpop.f32.mrf.mxu0
        %v3909 = vpop.f32.mrf.mxu0
        %v3910 = vadd.f32 %v3749, %v3909
        %v3911 = vpop.f32.mrf.mxu0
        %3912 = vmatprep.mubr.bf16.mxu0 %v2854
        %3913 = vmatmul.mubr.bf16.gmra.mxu0 %v2853
        %v3914 = vpop.f32.mrf.mxu0
        %v3915 = vadd.f32 %v3754, %v3914
        %v3916 = vpop.f32.mrf.mxu0
        %v3917 = vpop.f32.mrf.mxu0
        %v3918 = vadd.f32 %v3757, %v3917
        %v3919 = vpop.f32.mrf.mxu0
        %3920 = vmatprep.mubr.bf16.mxu0 %v2863
        %3921 = vmatmul.mubr.bf16.gmra.mxu0 %v2862
        %v3922 = vpop.f32.mrf.mxu0
        %v3923 = vadd.f32 %v3762, %v3922
        %v3924 = vpop.f32.mrf.mxu0
        %v3925 = vpop.f32.mrf.mxu0
        %v3926 = vadd.f32 %v3765, %v3925
        %v3927 = vpop.f32.mrf.mxu0
        %3928 = vmatprep.mubr.bf16.mxu0 %v2872
        %3929 = vmatmul.mubr.bf16.gmra.mxu0 %v2871
        %v3930 = vpop.f32.mrf.mxu0
        %v3931 = vadd.f32 %v3770, %v3930
        %v3932 = vpop.f32.mrf.mxu0
        %v3933 = vpop.f32.mrf.mxu0
        %v3934 = vadd.f32 %v3773, %v3933
        %v3935 = vpop.f32.mrf.mxu0
        %3936 = vmatprep.mubr.bf16.mxu0 %v2881
        %3937 = vmatmul.mubr.bf16.gmra.mxu0 %v2880
        %v3938 = vpop.f32.mrf.mxu0
        %v3939 = vadd.f32 %v3778, %v3938
        %v3940 = vpop.f32.mrf.mxu0
        %v3941 = vpop.f32.mrf.mxu0
        %v3942 = vadd.f32 %v3781, %v3941
        %v3943 = vpop.f32.mrf.mxu0
        %3944 = vmatprep.mubr.bf16.mxu0 %v2890
        %3945 = vmatmul.mubr.bf16.gmra.mxu0 %v2889
        %v3946 = vpop.f32.mrf.mxu0
        %v3947 = vadd.f32 %v3786, %v3946
        %v3948 = vpop.f32.mrf.mxu0
        %v3949 = vpop.f32.mrf.mxu0
        %v3950 = vadd.f32 %v3789, %v3949
        %v3951 = vpop.f32.mrf.mxu0
        %3952 = vdwg.mxu0
        %3953 = vmatprep.subr.bf16.mxu0 0
        %3954 = vmatpush1.bf16.msra.mxu0 %v3381
        %3955 = vmatprep.subr.bf16.mxu0 0
        %3956 = vmatpush1.bf16.msra.mxu0 %v3380
        %3957 = vmatprep.subr.bf16.mxu0 0
        %3958 = vmatpush1.bf16.msra.mxu0 %v3379
        %3959 = vmatprep.subr.bf16.mxu0 0
        %3960 = vmatpush1.bf16.msra.mxu0 %v3378
        %3961 = vmatprep.subr.bf16.mxu0 0
        %3962 = vmatpush1.bf16.msra.mxu0 %v3377
        %3963 = vmatprep.subr.bf16.mxu0 0
        %3964 = vmatpush1.bf16.msra.mxu0 %v3376
        %3965 = vmatprep.subr.bf16.mxu0 0
        %3966 = vmatpush1.bf16.msra.mxu0 %v3375
        %3967 = vmatprep.subr.bf16.mxu0 0
        %3968 = vmatpush1.bf16.msra.mxu0 %v3374
        %3969 = vmatprep.subr.bf16.mxu0 0
        %3970 = vmatpush2.bf16.msra.mxu0 %v3389
        %3971 = vmatprep.subr.bf16.mxu0 0
        %3972 = vmatpush2.bf16.msra.mxu0 %v3388
        %3973 = vmatprep.subr.bf16.mxu0 0
        %3974 = vmatpush2.bf16.msra.mxu0 %v3387
        %3975 = vmatprep.subr.bf16.mxu0 0
        %3976 = vmatpush2.bf16.msra.mxu0 %v3386
        %3977 = vmatprep.subr.bf16.mxu0 0
        %3978 = vmatpush2.bf16.msra.mxu0 %v3385
        %3979 = vmatprep.subr.bf16.mxu0 0
        %3980 = vmatpush2.bf16.msra.mxu0 %v3384
        %3981 = vmatprep.subr.bf16.mxu0 0
        %3982 = vmatpush2.bf16.msra.mxu0 %v3383
        %3983 = vmatprep.subr.bf16.mxu0 0
        %3984 = vmatpush2.bf16.msra.mxu0 %v3382
        %3985 = vmatprep.mubr.bf16.mxu0 %v2757
        %3986 = vmatmul.mubr.bf16.gmra.mxu0 %v2756
        %v3987 = vpop.f32.mrf.mxu0
        %v3988 = vadd.f32 %v3827, %v3987
        %v3989 = vpop.f32.mrf.mxu0
        %v3990 = vpop.f32.mrf.mxu0
        %v3991 = vadd.f32 %v3830, %v3990
        %v3992 = vpop.f32.mrf.mxu0
        %3993 = vmatprep.mubr.bf16.mxu0 %v2766
        %3994 = vmatmul.mubr.bf16.gmra.mxu0 %v2765
        %v3995 = vpop.f32.mrf.mxu0
        %v3996 = vadd.f32 %v3835, %v3995
        %v3997 = vpop.f32.mrf.mxu0
        %v3998 = vpop.f32.mrf.mxu0
        %v3999 = vadd.f32 %v3838, %v3998
        %v4000 = vpop.f32.mrf.mxu0
        %4001 = vmatprep.mubr.bf16.mxu0 %v2775
        %4002 = vmatmul.mubr.bf16.gmra.mxu0 %v2774
        %v4003 = vpop.f32.mrf.mxu0
        %v4004 = vadd.f32 %v3843, %v4003
        %v4005 = vpop.f32.mrf.mxu0
        %v4006 = vpop.f32.mrf.mxu0
        %v4007 = vadd.f32 %v3846, %v4006
        %v4008 = vpop.f32.mrf.mxu0
        %4009 = vmatprep.mubr.bf16.mxu0 %v2784
        %4010 = vmatmul.mubr.bf16.gmra.mxu0 %v2783
        %v4011 = vpop.f32.mrf.mxu0
        %v4012 = vadd.f32 %v3851, %v4011
        %v4013 = vpop.f32.mrf.mxu0
        %v4014 = vpop.f32.mrf.mxu0
        %v4015 = vadd.f32 %v3854, %v4014
        %v4016 = vpop.f32.mrf.mxu0
        %4017 = vmatprep.mubr.bf16.mxu0 %v2793
        %4018 = vmatmul.mubr.bf16.gmra.mxu0 %v2792
        %v4019 = vpop.f32.mrf.mxu0
        %v4020 = vadd.f32 %v3859, %v4019
        %v4021 = vpop.f32.mrf.mxu0
        %v4022 = vpop.f32.mrf.mxu0
        %v4023 = vadd.f32 %v3862, %v4022
        %v4024 = vpop.f32.mrf.mxu0
        %4025 = vmatprep.mubr.bf16.mxu0 %v2802
        %4026 = vmatmul.mubr.bf16.gmra.mxu0 %v2801
        %v4027 = vpop.f32.mrf.mxu0
        %v4028 = vadd.f32 %v3867, %v4027
        %v4029 = vpop.f32.mrf.mxu0
        %v4030 = vpop.f32.mrf.mxu0
        %v4031 = vadd.f32 %v3870, %v4030
        %v4032 = vpop.f32.mrf.mxu0
        %4033 = vmatprep.mubr.bf16.mxu0 %v2811
        %4034 = vmatmul.mubr.bf16.gmra.mxu0 %v2810
        %v4035 = vpop.f32.mrf.mxu0
        %v4036 = vadd.f32 %v3875, %v4035
        %v4037 = vpop.f32.mrf.mxu0
        %v4038 = vpop.f32.mrf.mxu0
        %v4039 = vadd.f32 %v3878, %v4038
        %v4040 = vpop.f32.mrf.mxu0
        %4041 = vmatprep.mubr.bf16.mxu0 %v2820
        %4042 = vmatmul.mubr.bf16.gmra.mxu0 %v2819
        %v4043 = vpop.f32.mrf.mxu0
        %v4044 = vadd.f32 %v3883, %v4043
        %v4045 = vpop.f32.mrf.mxu0
        %v4046 = vpop.f32.mrf.mxu0
        %v4047 = vadd.f32 %v3886, %v4046
        %v4048 = vpop.f32.mrf.mxu0
        %4049 = vmatprep.mubr.bf16.mxu0 %v2829
        %4050 = vmatmul.mubr.bf16.gmra.mxu0 %v2828
        %v4051 = vpop.f32.mrf.mxu0
        %v4052 = vadd.f32 %v3891, %v4051
        %v4053 = vpop.f32.mrf.mxu0
        %v4054 = vpop.f32.mrf.mxu0
        %v4055 = vadd.f32 %v3894, %v4054
        %v4056 = vpop.f32.mrf.mxu0
        %4057 = vmatprep.mubr.bf16.mxu0 %v2838
        %4058 = vmatmul.mubr.bf16.gmra.mxu0 %v2837
        %v4059 = vpop.f32.mrf.mxu0
        %v4060 = vadd.f32 %v3899, %v4059
        %v4061 = vpop.f32.mrf.mxu0
        %v4062 = vpop.f32.mrf.mxu0
        %v4063 = vadd.f32 %v3902, %v4062
        %v4064 = vpop.f32.mrf.mxu0
        %4065 = vmatprep.mubr.bf16.mxu0 %v2847
        %4066 = vmatmul.mubr.bf16.gmra.mxu0 %v2846
        %v4067 = vpop.f32.mrf.mxu0
        %v4068 = vadd.f32 %v3907, %v4067
        %v4069 = vpop.f32.mrf.mxu0
        %v4070 = vpop.f32.mrf.mxu0
        %v4071 = vadd.f32 %v3910, %v4070
        %v4072 = vpop.f32.mrf.mxu0
        %4073 = vmatprep.mubr.bf16.mxu0 %v2856
        %4074 = vmatmul.mubr.bf16.gmra.mxu0 %v2855
        %v4075 = vpop.f32.mrf.mxu0
        %v4076 = vadd.f32 %v3915, %v4075
        %v4077 = vpop.f32.mrf.mxu0
        %v4078 = vpop.f32.mrf.mxu0
        %v4079 = vadd.f32 %v3918, %v4078
        %v4080 = vpop.f32.mrf.mxu0
        %4081 = vmatprep.mubr.bf16.mxu0 %v2865
        %4082 = vmatmul.mubr.bf16.gmra.mxu0 %v2864
        %v4083 = vpop.f32.mrf.mxu0
        %v4084 = vadd.f32 %v3923, %v4083
        %v4085 = vpop.f32.mrf.mxu0
        %v4086 = vpop.f32.mrf.mxu0
        %v4087 = vadd.f32 %v3926, %v4086
        %v4088 = vpop.f32.mrf.mxu0
        %4089 = vmatprep.mubr.bf16.mxu0 %v2874
        %4090 = vmatmul.mubr.bf16.gmra.mxu0 %v2873
        %v4091 = vpop.f32.mrf.mxu0
        %v4092 = vadd.f32 %v3931, %v4091
        %v4093 = vpop.f32.mrf.mxu0
        %v4094 = vpop.f32.mrf.mxu0
        %v4095 = vadd.f32 %v3934, %v4094
        %v4096 = vpop.f32.mrf.mxu0
        %4097 = vmatprep.mubr.bf16.mxu0 %v2883
        %4098 = vmatmul.mubr.bf16.gmra.mxu0 %v2882
        %v4099 = vpop.f32.mrf.mxu0
        %v4100 = vadd.f32 %v3939, %v4099
        %v4101 = vpop.f32.mrf.mxu0
        %v4102 = vpop.f32.mrf.mxu0
        %v4103 = vadd.f32 %v3942, %v4102
        %v4104 = vpop.f32.mrf.mxu0
        %4105 = vmatprep.mubr.bf16.mxu0 %v2892
        %4106 = vmatmul.mubr.bf16.gmra.mxu0 %v2891
        %v4107 = vpop.f32.mrf.mxu0
        %v4108 = vadd.f32 %v3947, %v4107
        %v4109 = vpop.f32.mrf.mxu0
        %v4110 = vpop.f32.mrf.mxu0
        %v4111 = vadd.f32 %v3950, %v4110
        %v4112 = vpop.f32.mrf.mxu0
        %4113 = vdwg.mxu0
        %4114 = vmatprep.subr.bf16.mxu0 0
        %4115 = vmatpush1.bf16.msra.mxu0 %v3397
        %4116 = vmatprep.subr.bf16.mxu0 0
        %4117 = vmatpush1.bf16.msra.mxu0 %v3396
        %4118 = vmatprep.subr.bf16.mxu0 0
        %4119 = vmatpush1.bf16.msra.mxu0 %v3395
        %4120 = vmatprep.subr.bf16.mxu0 0
        %4121 = vmatpush1.bf16.msra.mxu0 %v3394
        %4122 = vmatprep.subr.bf16.mxu0 0
        %4123 = vmatpush1.bf16.msra.mxu0 %v3393
        %4124 = vmatprep.subr.bf16.mxu0 0
        %4125 = vmatpush1.bf16.msra.mxu0 %v3392
        %4126 = vmatprep.subr.bf16.mxu0 0
        %4127 = vmatpush1.bf16.msra.mxu0 %v3391
        %4128 = vmatprep.subr.bf16.mxu0 0
        %4129 = vmatpush1.bf16.msra.mxu0 %v3390
        %4130 = vmatprep.subr.bf16.mxu0 0
        %4131 = vmatpush2.bf16.msra.mxu0 0
        %4132 = vmatprep.subr.bf16.mxu0 0
        %4133 = vmatpush2.bf16.msra.mxu0 0
        %4134 = vmatprep.subr.bf16.mxu0 0
        %4135 = vmatpush2.bf16.msra.mxu0 0
        %4136 = vmatprep.subr.bf16.mxu0 0
        %4137 = vmatpush2.bf16.msra.mxu0 0
        %4138 = vmatprep.subr.bf16.mxu0 0
        %4139 = vmatpush2.bf16.msra.mxu0 0
        %4140 = vmatprep.subr.bf16.mxu0 0
        %4141 = vmatpush2.bf16.msra.mxu0 0
        %4142 = vmatprep.subr.bf16.mxu0 0
        %4143 = vmatpush2.bf16.msra.mxu0 0
        %4144 = vmatprep.subr.bf16.mxu0 0
        %4145 = vmatpush2.bf16.msra.mxu0 0
        %4146 = vmatprep.mubr.bf16.mxu0 0
        %4147 = vmatmul.mubr.bf16.gmra.mxu0 %v2758
        %v4148 = vpop.f32.mrf.mxu0
        %v4149 = vadd.f32 %v3988, %v4148
        %v4150 = vpop.f32.mrf.mxu0
        %v4151 = vpop.f32.mrf.mxu0
        %v4152 = vadd.f32 %v3991, %v4151
        %v4153 = vpop.f32.mrf.mxu0
        %4154 = vmatprep.mubr.bf16.mxu0 0
        %4155 = vmatmul.mubr.bf16.gmra.mxu0 %v2767
        %v4156 = vpop.f32.mrf.mxu0
        %v4157 = vadd.f32 %v3996, %v4156
        %v4158 = vpop.f32.mrf.mxu0
        %v4159 = vpop.f32.mrf.mxu0
        %v4160 = vadd.f32 %v3999, %v4159
        %v4161 = vpop.f32.mrf.mxu0
        %4162 = vmatprep.mubr.bf16.mxu0 0
        %4163 = vmatmul.mubr.bf16.gmra.mxu0 %v2776
        %v4164 = vpop.f32.mrf.mxu0
        %v4165 = vadd.f32 %v4004, %v4164
        %v4166 = vpop.f32.mrf.mxu0
        %v4167 = vpop.f32.mrf.mxu0
        %v4168 = vadd.f32 %v4007, %v4167
        %v4169 = vpop.f32.mrf.mxu0
        %4170 = vmatprep.mubr.bf16.mxu0 0
        %4171 = vmatmul.mubr.bf16.gmra.mxu0 %v2785
        %v4172 = vpop.f32.mrf.mxu0
        %v4173 = vadd.f32 %v4012, %v4172
        %v4174 = vpop.f32.mrf.mxu0
        %v4175 = vpop.f32.mrf.mxu0
        %v4176 = vadd.f32 %v4015, %v4175
        %v4177 = vpop.f32.mrf.mxu0
        %4178 = vmatprep.mubr.bf16.mxu0 0
        %4179 = vmatmul.mubr.bf16.gmra.mxu0 %v2794
        %v4180 = vpop.f32.mrf.mxu0
        %v4181 = vadd.f32 %v4020, %v4180
        %v4182 = vpop.f32.mrf.mxu0
        %v4183 = vpop.f32.mrf.mxu0
        %v4184 = vadd.f32 %v4023, %v4183
        %v4185 = vpop.f32.mrf.mxu0
        %4186 = vmatprep.mubr.bf16.mxu0 0
        %4187 = vmatmul.mubr.bf16.gmra.mxu0 %v2803
        %v4188 = vpop.f32.mrf.mxu0
        %v4189 = vadd.f32 %v4028, %v4188
        %v4190 = vpop.f32.mrf.mxu0
        %v4191 = vpop.f32.mrf.mxu0
        %v4192 = vadd.f32 %v4031, %v4191
        %v4193 = vpop.f32.mrf.mxu0
        %4194 = vmatprep.mubr.bf16.mxu0 0
        %4195 = vmatmul.mubr.bf16.gmra.mxu0 %v2812
        %v4196 = vpop.f32.mrf.mxu0
        %v4197 = vadd.f32 %v4036, %v4196
        %v4198 = vpop.f32.mrf.mxu0
        %v4199 = vpop.f32.mrf.mxu0
        %v4200 = vadd.f32 %v4039, %v4199
        %v4201 = vpop.f32.mrf.mxu0
        %4202 = vmatprep.mubr.bf16.mxu0 0
        %4203 = vmatmul.mubr.bf16.gmra.mxu0 %v2821
        %v4204 = vpop.f32.mrf.mxu0
        %v4205 = vadd.f32 %v4044, %v4204
        %v4206 = vpop.f32.mrf.mxu0
        %v4207 = vpop.f32.mrf.mxu0
        %v4208 = vadd.f32 %v4047, %v4207
        %v4209 = vpop.f32.mrf.mxu0
        %4210 = vmatprep.mubr.bf16.mxu0 0
        %4211 = vmatmul.mubr.bf16.gmra.mxu0 %v2830
        %v4212 = vpop.f32.mrf.mxu0
        %v4213 = vadd.f32 %v4052, %v4212
        %v4214 = vpop.f32.mrf.mxu0
        %v4215 = vpop.f32.mrf.mxu0
        %v4216 = vadd.f32 %v4055, %v4215
        %v4217 = vpop.f32.mrf.mxu0
        %4218 = vmatprep.mubr.bf16.mxu0 0
        %4219 = vmatmul.mubr.bf16.gmra.mxu0 %v2839
        %v4220 = vpop.f32.mrf.mxu0
        %v4221 = vadd.f32 %v4060, %v4220
        %v4222 = vpop.f32.mrf.mxu0
        %v4223 = vpop.f32.mrf.mxu0
        %v4224 = vadd.f32 %v4063, %v4223
        %v4225 = vpop.f32.mrf.mxu0
        %4226 = vmatprep.mubr.bf16.mxu0 0
        %4227 = vmatmul.mubr.bf16.gmra.mxu0 %v2848
        %v4228 = vpop.f32.mrf.mxu0
        %v4229 = vadd.f32 %v4068, %v4228
        %v4230 = vpop.f32.mrf.mxu0
        %v4231 = vpop.f32.mrf.mxu0
        %v4232 = vadd.f32 %v4071, %v4231
        %v4233 = vpop.f32.mrf.mxu0
        %4234 = vmatprep.mubr.bf16.mxu0 0
        %4235 = vmatmul.mubr.bf16.gmra.mxu0 %v2857
        %v4236 = vpop.f32.mrf.mxu0
        %v4237 = vadd.f32 %v4076, %v4236
        %v4238 = vpop.f32.mrf.mxu0
        %v4239 = vpop.f32.mrf.mxu0
        %v4240 = vadd.f32 %v4079, %v4239
        %v4241 = vpop.f32.mrf.mxu0
        %4242 = vmatprep.mubr.bf16.mxu0 0
        %4243 = vmatmul.mubr.bf16.gmra.mxu0 %v2866
        %v4244 = vpop.f32.mrf.mxu0
        %v4245 = vadd.f32 %v4084, %v4244
        %v4246 = vpop.f32.mrf.mxu0
        %v4247 = vpop.f32.mrf.mxu0
        %v4248 = vadd.f32 %v4087, %v4247
        %v4249 = vpop.f32.mrf.mxu0
        %4250 = vmatprep.mubr.bf16.mxu0 0
        %4251 = vmatmul.mubr.bf16.gmra.mxu0 %v2875
        %v4252 = vpop.f32.mrf.mxu0
        %v4253 = vadd.f32 %v4092, %v4252
        %v4254 = vpop.f32.mrf.mxu0
        %v4255 = vpop.f32.mrf.mxu0
        %v4256 = vadd.f32 %v4095, %v4255
        %v4257 = vpop.f32.mrf.mxu0
        %4258 = vmatprep.mubr.bf16.mxu0 0
        %4259 = vmatmul.mubr.bf16.gmra.mxu0 %v2884
        %v4260 = vpop.f32.mrf.mxu0
        %v4261 = vadd.f32 %v4100, %v4260
        %v4262 = vpop.f32.mrf.mxu0
        %v4263 = vpop.f32.mrf.mxu0
        %v4264 = vadd.f32 %v4103, %v4263
        %v4265 = vpop.f32.mrf.mxu0
        %4266 = vmatprep.mubr.bf16.mxu0 0
        %4267 = vmatmul.mubr.bf16.gmra.mxu0 %v2893
        %v4268 = vpop.f32.mrf.mxu0
        %v4269 = vadd.f32 %v4108, %v4268
        %v4270 = vpop.f32.mrf.mxu0
        %v4271 = vpop.f32.mrf.mxu0
        %v4272 = vadd.f32 %v4111, %v4271
        %v4273 = vpop.f32.mrf.mxu0
        %4274 = vdwg.mxu0
        %v4275 = vld [vmem:[%s5] sm:$0x1]
        %v4277 = vlaneseq
        %v4278 = vshrl.u32 %v4277, 7
        %v4279 = vsub.s32 0, %v4278
        %v4280 = vrot.slane %v4275, %v4279
        %v4282 = vmul.f32 %v4149, %v4280
        %v4283 = vmul.f32 %v4152, %v4280
        %v4284 = vmul.f32 %v4157, %v4280
        %v4285 = vmul.f32 %v4160, %v4280
        %v4286 = vmul.f32 %v4165, %v4280
        %v4287 = vmul.f32 %v4168, %v4280
        %v4288 = vmul.f32 %v4173, %v4280
        %v4289 = vmul.f32 %v4176, %v4280
        %v4290 = vmul.f32 %v4181, %v4280
        %v4291 = vmul.f32 %v4184, %v4280
        %v4292 = vmul.f32 %v4189, %v4280
        %v4293 = vmul.f32 %v4192, %v4280
        %v4294 = vmul.f32 %v4197, %v4280
        %v4295 = vmul.f32 %v4200, %v4280
        %v4296 = vmul.f32 %v4205, %v4280
        %v4297 = vmul.f32 %v4208, %v4280
        %v4298 = vmul.f32 %v4213, %v4280
        %v4299 = vmul.f32 %v4216, %v4280
        %v4300 = vmul.f32 %v4221, %v4280
        %v4301 = vmul.f32 %v4224, %v4280
        %v4302 = vmul.f32 %v4229, %v4280
        %v4303 = vmul.f32 %v4232, %v4280
        %v4304 = vmul.f32 %v4237, %v4280
        %v4305 = vmul.f32 %v4240, %v4280
        %v4306 = vmul.f32 %v4245, %v4280
        %v4307 = vmul.f32 %v4248, %v4280
        %v4308 = vmul.f32 %v4253, %v4280
        %v4309 = vmul.f32 %v4256, %v4280
        %v4310 = vmul.f32 %v4261, %v4280
        %v4311 = vmul.f32 %v4264, %v4280
        %v4312 = vmul.f32 %v4269, %v4280
        %v4313 = vmul.f32 %v4272, %v4280
        %v4314 = vld [vmem:[%s6] sm:$0x1]
        %v4316 = vlaneseq
        %v4317 = vshrl.u32 %v4316, 7
        %v4318 = vsub.s32 0, %v4317
        %v4319 = vrot.slane %v4314, %v4318
        %v4321 = vadd.f32 %v4282, %v4319
        %v4322 = vadd.f32 %v4283, %v4319
        %v4323 = vadd.f32 %v4284, %v4319
        %v4324 = vadd.f32 %v4285, %v4319
        %v4325 = vadd.f32 %v4286, %v4319
        %v4326 = vadd.f32 %v4287, %v4319
        %v4327 = vadd.f32 %v4288, %v4319
        %v4328 = vadd.f32 %v4289, %v4319
        %v4329 = vadd.f32 %v4290, %v4319
        %v4330 = vadd.f32 %v4291, %v4319
        %v4331 = vadd.f32 %v4292, %v4319
        %v4332 = vadd.f32 %v4293, %v4319
        %v4333 = vadd.f32 %v4294, %v4319
        %v4334 = vadd.f32 %v4295, %v4319
        %v4335 = vadd.f32 %v4296, %v4319
        %v4336 = vadd.f32 %v4297, %v4319
        %v4337 = vadd.f32 %v4298, %v4319
        %v4338 = vadd.f32 %v4299, %v4319
        %v4339 = vadd.f32 %v4300, %v4319
        %v4340 = vadd.f32 %v4301, %v4319
        %v4341 = vadd.f32 %v4302, %v4319
        %v4342 = vadd.f32 %v4303, %v4319
        %v4343 = vadd.f32 %v4304, %v4319
        %v4344 = vadd.f32 %v4305, %v4319
        %v4345 = vadd.f32 %v4306, %v4319
        %v4346 = vadd.f32 %v4307, %v4319
        %v4347 = vadd.f32 %v4308, %v4319
        %v4348 = vadd.f32 %v4309, %v4319
        %v4349 = vadd.f32 %v4310, %v4319
        %v4350 = vadd.f32 %v4311, %v4319
        %v4351 = vadd.f32 %v4312, %v4319
        %v4352 = vadd.f32 %v4313, %v4319
        %v4353 = vadd.f32 %v4321, %v439
        %v4354 = vadd.f32 %v4322, %v440
        %v4355 = vadd.f32 %v4323, %v441
        %v4356 = vadd.f32 %v4324, %v442
        %v4357 = vadd.f32 %v4325, %v443
        %v4358 = vadd.f32 %v4326, %v444
        %v4359 = vadd.f32 %v4327, %v445
        %v4360 = vadd.f32 %v4328, %v446
        %v4361 = vadd.f32 %v4329, %v447
        %v4362 = vadd.f32 %v4330, %v448
        %v4363 = vadd.f32 %v4331, %v449
        %v4364 = vadd.f32 %v4332, %v450
        %v4365 = vadd.f32 %v4333, %v451
        %v4366 = vadd.f32 %v4334, %v452
        %v4367 = vadd.f32 %v4335, %v453
        %v4368 = vadd.f32 %v4336, %v454
        %v4369 = vadd.f32 %v4337, %v455
        %v4370 = vadd.f32 %v4338, %v456
        %v4371 = vadd.f32 %v4339, %v457
        %v4372 = vadd.f32 %v4340, %v458
        %v4373 = vadd.f32 %v4341, %v459
        %v4374 = vadd.f32 %v4342, %v460
        %v4375 = vadd.f32 %v4343, %v461
        %v4376 = vadd.f32 %v4344, %v462
        %v4377 = vadd.f32 %v4345, %v463
        %v4378 = vadd.f32 %v4346, %v464
        %v4379 = vadd.f32 %v4347, %v465
        %v4380 = vadd.f32 %v4348, %v466
        %v4381 = vadd.f32 %v4349, %v467
        %v4382 = vadd.f32 %v4350, %v468
        %v4383 = vadd.f32 %v4351, %v469
        %v4384 = vadd.f32 %v4352, %v470
        %v4385 = vmax.f32 %v4353, 0.0
        %v4386 = vmax.f32 %v4354, 0.0
        %v4387 = vmax.f32 %v4355, 0.0
        %v4388 = vmax.f32 %v4356, 0.0
        %v4389 = vmax.f32 %v4357, 0.0
        %v4390 = vmax.f32 %v4358, 0.0
        %v4391 = vmax.f32 %v4359, 0.0
        %v4392 = vmax.f32 %v4360, 0.0
        %v4393 = vmax.f32 %v4361, 0.0
        %v4394 = vmax.f32 %v4362, 0.0
        %v4395 = vmax.f32 %v4363, 0.0
        %v4396 = vmax.f32 %v4364, 0.0
        %v4397 = vmax.f32 %v4365, 0.0
        %v4398 = vmax.f32 %v4366, 0.0
        %v4399 = vmax.f32 %v4367, 0.0
        %v4400 = vmax.f32 %v4368, 0.0
        %v4401 = vmax.f32 %v4369, 0.0
        %v4402 = vmax.f32 %v4370, 0.0
        %v4403 = vmax.f32 %v4371, 0.0
        %v4404 = vmax.f32 %v4372, 0.0
        %v4405 = vmax.f32 %v4373, 0.0
        %v4406 = vmax.f32 %v4374, 0.0
        %v4407 = vmax.f32 %v4375, 0.0
        %v4408 = vmax.f32 %v4376, 0.0
        %v4409 = vmax.f32 %v4377, 0.0
        %v4410 = vmax.f32 %v4378, 0.0
        %v4411 = vmax.f32 %v4379, 0.0
        %v4412 = vmax.f32 %v4380, 0.0
        %v4413 = vmax.f32 %v4381, 0.0
        %v4414 = vmax.f32 %v4382, 0.0
        %v4415 = vmax.f32 %v4383, 0.0
        %v4416 = vmax.f32 %v4384, 0.0
        %4417 = vst [vmem:[%s325] sm:$0xff] %v4385
        %4418 = vst [vmem:[%s325 + $0x8] sm:$0xff] %v4386
        %4419 = vst [vmem:[%s325 + $0x10] sm:$0xff] %v4387
        %4420 = vst [vmem:[%s325 + $0x18] sm:$0xff] %v4388
        %4421 = vst [vmem:[%s325 + $0x20] sm:$0xff] %v4389
        %4422 = vst [vmem:[%s325 + $0x28] sm:$0xff] %v4390
        %4423 = vst [vmem:[%s325 + $0x30] sm:$0xff] %v4391
        %4424 = vst [vmem:[%s325 + $0x38] sm:$0xff] %v4392
        %4425 = vst [vmem:[%s325 + $0x40] sm:$0xff] %v4393
        %4426 = vst [vmem:[%s325 + $0x48] sm:$0xff] %v4394
        %4427 = vst [vmem:[%s325 + $0x50] sm:$0xff] %v4395
        %4428 = vst [vmem:[%s325 + $0x58] sm:$0xff] %v4396
        %4429 = vst [vmem:[%s325 + $0x60] sm:$0xff] %v4397
        %4430 = vst [vmem:[%s325 + $0x68] sm:$0xff] %v4398
        %4431 = vst [vmem:[%s325 + $0x70] sm:$0xff] %v4399
        %4432 = vst [vmem:[%s325 + $0x78] sm:$0xff] %v4400
        %4433 = vst [vmem:[%s325 + $0x80] sm:$0xff] %v4401
        %4434 = vst [vmem:[%s325 + $0x88] sm:$0xff] %v4402
        %4435 = vst [vmem:[%s325 + $0x90] sm:$0xff] %v4403
        %4436 = vst [vmem:[%s325 + $0x98] sm:$0xff] %v4404
        %4437 = vst [vmem:[%s325 + $0xa0] sm:$0xff] %v4405
        %4438 = vst [vmem:[%s325 + $0xa8] sm:$0xff] %v4406
        %4439 = vst [vmem:[%s325 + $0xb0] sm:$0xff] %v4407
        %4440 = vst [vmem:[%s325 + $0xb8] sm:$0xff] %v4408
        %4441 = vst [vmem:[%s325 + $0xc0] sm:$0xff] %v4409
        %4442 = vst [vmem:[%s325 + $0xc8] sm:$0xff] %v4410
        %4443 = vst [vmem:[%s325 + $0xd0] sm:$0xff] %v4411
        %4444 = vst [vmem:[%s325 + $0xd8] sm:$0xff] %v4412
        %4445 = vst [vmem:[%s325 + $0xe0] sm:$0xff] %v4413
        %4446 = vst [vmem:[%s325 + $0xe8] sm:$0xff] %v4414
        %4447 = vst [vmem:[%s325 + $0xf0] sm:$0xff] %v4415
        %4448 = vst [vmem:[%s325 + $0xf8] sm:$0xff] %v4416
        %s4449 = sand.u32 %s185, 1
        %s4450 = scalar_lea.sflag [#allocation6], %s4449
        %s4451 = sand.u32 %s185, 1
        %s4452 = smul.addr %s4451, 256
        %s4453 = scalar_lea.vmem [#allocation10], %s4452
        // Predicated region
        $region65: #{tpu_custom_call.1} parent=47 // pred_check
          %p4454 = pneg %p195
        $region66: #{tpu_custom_call.1} parent=47 // pred_check_branch
          %4456 = sbr.rel (%p4454) target = $region68
        $region67: #{tpu_custom_call.1} parent=47 // pred_region
          %s4458 = ssub.s32 4096, 4096
          %4459 = vsyncadd %s4450, %s4458
          %s4460 = smul.addr %s25, 32
          %s4461 = smul.addr %s4460, 128
          %s4462 = scalar_lea.hbm %s7, %s4461
          %s4463 = sshll.u32 %s4453, 4
          %s4464 = int_to_ptr.vmem [resolvable:$true] %s4463
          %4469 = dma.vmem_to_hbm [thread:$0]  %s4464, 4096, %s4462, %s4450, 128, 128, 8
        $region68: #{tpu_custom_call.1} parent=47 // pred_fallthru
          _
      $region48: #{tpu_custom_call.1} parent=5 // pred_fallthru
        _
      %p4470 = scmp.le.s32.totalorder 2, %s20
      // Predicated region
      $region69: #{tpu_custom_call.1} parent=5 // pred_check
        %p4471 = pneg %p4470
      $region70: #{tpu_custom_call.1} parent=5 // pred_check_branch
        %4473 = sbr.rel (%p4471) target = $region72
      $region71: #{tpu_custom_call.1} parent=5 // pred_region
        %s4474 = ssub.s32 %s20, 2
        // Predicated region
        $region73: #{tpu_custom_call.1} parent=71 // pred_check
          %p4475 = pneg %p201
        $region74: #{tpu_custom_call.1} parent=71 // pred_check_branch
          %4477 = sbr.rel (%p4475) target = $region76
        $region75: #{tpu_custom_call.1} parent=71 // pred_region
          %s4478 = sand.u32 %s186, 1
          %s4479 = scalar_lea.sflag [#allocation6], %s4478
          %s4480 = sand.u32 %s186, 1
          %s4481 = smul.addr %s4480, 256
          %s4482 = scalar_lea.vmem [#allocation10], %s4481
          %4483 = dma.done %s4479, 4096
        $region76: #{tpu_custom_call.1} parent=71 // pred_fallthru
          _
      $region72: #{tpu_custom_call.1} parent=5 // pred_fallthru
        _
    $region6: #{tpu_custom_call.1} parent=1 // loop_footer
      %s24 = sadd.s32 1, %s20
    $region7: #{tpu_custom_call.1} parent=1 // loop_footer_branch
      %19 = sbr.rel target = $region3
    $region8: #{tpu_custom_call.1} parent=1 // loop_exit
      _
    %4484 = vsyncpa [#allocation5], 1
    %s4485 = scalar_lea.sflag [#allocation5], 1
    %4486 = vsyncpa %s4485, 1
    %4487 = vsyncpa [#allocation8], 1
    %4488 = vsyncpa [#allocation6], 1
    %s4489 = scalar_lea.sflag [#allocation6], 1
    %4490 = vsyncpa %s4489, 1

</llo_original>
